<compile_context>
chip_gen: v7x
topology: tpu7x:2x2x1
jax: 0.10.0
libtpu: 0.0.40
codegen_flags: <defaults>
</compile_context>

<pallas_src>
import functools

import jax
import jax.numpy as jnp
from jax.experimental import pallas as pl
from jax.experimental.pallas import tpu as pltpu

_VMEM_LIMIT = 48 * 1024 * 1024          # safe on v5e/v6e (128 MiB) and v7x (64 MiB) VMEM
_MAX_STREAM_BLOCK = 20 * 1024 * 1024    # single-buffer cap so double-buffering always fits


def _pick_chunk(din):
    """Lane-dense chunk width (multiple of 128) that divides the flattened depth dim."""
    for c in (512, 256, 128):
        if din % c == 0:
            return c
    return din  # degenerate fallback (guarded by _check_stream_bytes below)


def _pick_rows(g, max_rows):
    """Largest sublane-aligned row count <= max_rows dividing g (full dim as fallback)."""
    for align in (16, 8):           # 16 covers bf16 sublane packing, 8 covers f32
        r = (min(g, max_rows) // align) * align
        while r >= align:
            if g % r == 0:
                return r
            r -= align
    return g


def _check_stream_bytes(nbytes, what):
    if nbytes > _MAX_STREAM_BLOCK:
        raise ValueError(
            f"{what}: streamed block of {nbytes} bytes exceeds {_MAX_STREAM_BLOCK}; "
            "reduce max_rows or choose a different chunking.")


# --------- fused VAE encoder + reparameterization + FullyConnectedNet ----------

def _encode_fc_kernel(x_ref, w_ref, encb_ref, eps_ref, xq_ref, *rest,
                      batch, latent, n_rest_layers):
    """x_ref: (B, R, C) f32 activation tile; w_ref: (2*latent, R, C) bf16 weight tile."""
    two_latent = 2 * latent
    n_fc = 3 + 2 * n_rest_layers
    fc = rest[:n_fc]
    mean_ref, logvar_ref, z_ref, y_ref, acc_ref = rest[n_fc:]

    k = pl.program_id(0)

    @pl.when(k == 0)
    def _init():
        acc_ref[...] = jnp.zeros_like(acc_ref)

    # VPU contraction: acc[b, n, :] += sum_over_rows( x[b] * w[n] ).
    # The skinny N=16 GEMM would run the MXU at ~6% utilization; VPU work here
    # stays hidden under the HBM weight stream on every generation.
    xs = [x_ref[b] for b in range(batch)]                       # each (R, C) f32
    for n in range(two_latent):
        wn = w_ref[n].astype(jnp.float32)                       # (R, C)
        for b in range(batch):
            contrib = jnp.sum(xs[b] * wn, axis=0, keepdims=True)[None]   # (1, 1, C)
            cur = acc_ref[pl.ds(b, 1), pl.ds(n, 1), :]
            acc_ref[pl.ds(b, 1), pl.ds(n, 1), :] = cur + contrib

    @pl.when(k == pl.num_programs(0) - 1)
    def _finalize():
        # Lane reduction of the per-lane accumulators + bias -> (B, 2*latent).
        tot = jnp.sum(acc_ref[...], axis=-1) + encb_ref[...]
        mean = tot[:, :latent]
        log_var = tot[:, latent:]
        mean_ref[...] = mean
        logvar_ref[...] = log_var
        # Reparameterization (eps passed explicitly instead of torch.randn).
        z = mean + jnp.exp(0.5 * log_var) * eps_ref[...]
        z_ref[...] = z
        # FullyConnectedNet fused into the epilogue; the torch.cat([x_q, z]) is
        # realised as a split first matmul (mathematically identical).
        w0q, w0z, b0 = fc[0], fc[1], fc[2]
        h = jnp.tanh(
            jnp.dot(xq_ref[...], w0q[...], preferred_element_type=jnp.float32)
            + jnp.dot(z, w0z[...], preferred_element_type=jnp.float32)
            + b0[...])
        for i in range(3, n_fc, 2):   # Dropout = identity (eval); Tanh after every Linear
            h = jnp.tanh(
                jnp.dot(h, fc[i][...], preferred_element_type=jnp.float32)
                + fc[i + 1][...])
        y_ref[...] = h.astype(y_ref.dtype)


def pallas_encode_fc(x3, enc_w, enc_b, eps, x_q, w0_q, w0_z, b0,
                     ws_rest, bs_rest, *, max_rows=512):
    """x3: (B, G, C) f32; enc_w: (2*latent, G, C) bf16.  Returns (mean, log_var, z, y)."""
    B, G, C = x3.shape
    two_latent = enc_w.shape[0]
    latent = two_latent // 2
    rows = _pick_rows(G, max_rows)
    _check_stream_bytes(B * rows * C * 4 + two_latent * rows * C * 2, "encoder")
    n_k = G // rows
    dout = ws_rest[-1].shape[1] if ws_rest else b0.shape[1]

    small_in = [enc_b, eps, x_q, w0_q, w0_z, b0]
    for w, b in zip(ws_rest, bs_rest):
        small_in += [w, b]

    in_specs = [
        pl.BlockSpec((B, rows, C), lambda k: (0, k, 0)),            # activation stream (f32)
        pl.BlockSpec((two_latent, rows, C), lambda k: (0, k, 0)),   # weight stream (bf16)
    ] + [pl.BlockSpec(a.shape, lambda k: (0, 0)) for a in small_in]  # resident small params

    out_small = jax.ShapeDtypeStruct((B, latent), jnp.float32)
    kernel = functools.partial(_encode_fc_kernel, batch=B, latent=latent,
                               n_rest_layers=len(ws_rest))
    bytes_accessed = two_latent * G * C * 2 + B * G * C * 4 + 4 * B * latent * 4
    return pl.pallas_call(
        kernel,
        out_shape=(out_small, out_small, out_small,
                   jax.ShapeDtypeStruct((B, dout), jnp.float32)),
        grid=(n_k,),
        in_specs=in_specs,
        out_specs=(pl.BlockSpec((B, latent), lambda k: (0, 0)),
                   pl.BlockSpec((B, latent), lambda k: (0, 0)),
                   pl.BlockSpec((B, latent), lambda k: (0, 0)),
                   pl.BlockSpec((B, dout), lambda k: (0, 0))),
        scratch_shapes=[pltpu.VMEM((B, two_latent, C), jnp.float32)],
        compiler_params=pltpu.CompilerParams(
            dimension_semantics=("arbitrary",),
            vmem_limit_bytes=_VMEM_LIMIT),
        cost_estimate=pl.CostEstimate(
            flops=2 * B * G * C * two_latent,
            transcendentals=B * latent,
            bytes_accessed=bytes_accessed),
    )(x3, enc_w, *small_in)


# ------------------------------ VAE decoder -----------------------------------

def _decode_kernel(zb_ref, w_ref, b_ref, o_ref, *, batch, latent):
    """zb_ref: (B, latent, C) f32, each row lane-broadcast of z[b, l];
    w_ref: (latent, R, C) bf16; b_ref: (1, R, C) bf16; o_ref: (B, R, C) f32."""
    bias = b_ref[0].astype(jnp.float32)                         # (R, C)
    accs = [bias for _ in range(batch)]
    for l in range(latent):
        wl = w_ref[l].astype(jnp.float32)                       # (R, C)
        for b in range(batch):
            zrow = zb_ref[b, pl.ds(l, 1), :]                    # (1, C), constant per lane
            accs[b] = accs[b] + zrow * wl
    for b in range(batch):
        o_ref[b] = accs[b]


def pallas_vae_decode(z_bcast, dec_w, dec_b, *, max_rows=512):
    """z_bcast: (B, latent, C) f32; dec_w: (latent, G, C) bf16; dec_b: (1, G, C) bf16
    -> recon (B, G, C) f32 with tile-exact streamed blocks."""
    B, latent, C = z_bcast.shape
    _, G, _ = dec_w.shape
    rows = _pick_rows(G, max_rows)
    _check_stream_bytes((latent + 1) * rows * C * 2 + B * rows * C * 4, "decoder")
    n_n = G // rows
    kernel = functools.partial(_decode_kernel, batch=B, latent=latent)
    return pl.pallas_call(
        kernel,
        out_shape=jax.ShapeDtypeStruct((B, G, C), jnp.float32),
        grid=(n_n,),
        in_specs=[
            pl.BlockSpec((B, latent, C), lambda n: (0, 0, 0)),  # z broadcast (resident, 32 KB)
            pl.BlockSpec((latent, rows, C), lambda n: (0, n, 0)),  # weight stream
            pl.BlockSpec((1, rows, C), lambda n: (0, n, 0)),       # bias stream (bf16)
        ],
        out_specs=pl.BlockSpec((B, rows, C), lambda n: (0, n, 0)),
        compiler_params=pltpu.CompilerParams(
            dimension_semantics=("parallel",),   # independent output tiles
            vmem_limit_bytes=_VMEM_LIMIT),
        cost_estimate=pl.CostEstimate(
            flops=2 * B * latent * G * C,
            transcendentals=0,
            bytes_accessed=latent * G * C * 2 + G * C * 2 + B * G * C * 4),
    )(z_bcast, dec_w, dec_b)


# ------------------------------ parameter setup --------------------------------

def xavier_normal(key, fan_in, fan_out, shape):
    # nn.init.xavier_normal_ : std = sqrt(2 / (fan_in + fan_out))
    std = (2.0 / (fan_in + fan_out)) ** 0.5
    return std * jax.random.normal(key, shape, jnp.float32)


def init_params(key, depth_flat_dim, latent_size, fc_layer_sizes, q_dim, *, chunk=None):
    if chunk is None:
        chunk = _pick_chunk(depth_flat_dim)
    assert depth_flat_dim % chunk == 0
    G = depth_flat_dim // chunk
    two_latent = 2 * latent_size
    keys = jax.random.split(key, 3 + len(fc_layer_sizes))
    p = {}
    # Fused encoder weight: mean / log_var heads concatenated on the output axis,
    # stored transposed + 3-D (two_latent, G, chunk) so the streamed blocks are tile-exact bf16.
    enc_mean_w = xavier_normal(keys[0], depth_flat_dim, latent_size,
                               (latent_size, depth_flat_dim))
    enc_logvar_w = xavier_normal(keys[1], depth_flat_dim, latent_size,
                                 (latent_size, depth_flat_dim))
    p["enc_w"] = (jnp.concatenate([enc_mean_w, enc_logvar_w], axis=0)
                  .reshape(two_latent, G, chunk).astype(jnp.bfloat16))
    p["enc_b"] = jnp.zeros((1, two_latent), jnp.float32)
    # Decoder weight / bias in tile-exact 3-D bf16 layouts.
    p["dec_w"] = (xavier_normal(keys[2], latent_size, depth_flat_dim,
                                (latent_size, depth_flat_dim))
                  .reshape(latent_size, G, chunk).astype(jnp.bfloat16))
    p["dec_b"] = jnp.zeros((1, G, chunk), jnp.bfloat16)

    fc_ws, fc_bs = [], []
    for i, (din, dout) in enumerate(zip(fc_layer_sizes[:-1], fc_layer_sizes[1:])):
        fc_ws.append(xavier_normal(keys[3 + i], din, dout, (din, dout)))
        fc_bs.append(jnp.zeros((1, dout), jnp.float32))
    # First FC weight pre-split at q_dim so the kernel fuses torch.cat([x_q, z]).
    p["fc_w0_q"] = fc_ws[0][:q_dim]
    p["fc_w0_z"] = fc_ws[0][q_dim:]
    p["fc_b0"] = fc_bs[0]
    p["fc_ws_rest"] = fc_ws[1:]
    p["fc_bs_rest"] = fc_bs[1:]
    return p


# ---------------------------------- forward ------------------------------------

def collnet_forward(params, x_q, x_depth, eps, *, enc_rows=512, dec_rows=512):
    """Mirrors CollNet.forward: returns (y, x_depth, recon_x, mean, log_var)."""
    B = x_depth.shape[0]
    two_latent, G, C = params["enc_w"].shape
    latent = two_latent // 2
    # Lane/sublane-dense 3-D view of the depth activation; no bf16 pre-cast pass.
    x3 = x_depth.reshape(B, G, C)

    mean, log_var, z, y = pallas_encode_fc(
        x3, params["enc_w"], params["enc_b"], eps, x_q,
        params["fc_w0_q"], params["fc_w0_z"], params["fc_b0"],
        params["fc_ws_rest"], params["fc_bs_rest"], max_rows=enc_rows)

    # Tiny (B, latent, C) lane-broadcast of z (32 KB) so the decoder uses pure
    # trailing-dim broadcasting instead of scalar extraction.
    z_bcast = jnp.broadcast_to(z[:, :, None], (B, latent, C))
    recon3 = pallas_vae_decode(z_bcast, params["dec_w"], params["dec_b"],
                               max_rows=dec_rows)
    recon_x = recon3.reshape(x_depth.shape)
    return y, x_depth, recon_x, mean, log_var


def reference_forward(params, x_q, x_depth, eps):
    """Plain-JAX reference with the same bf16 weight rounding as the kernels."""
    hp = jax.lax.Precision.HIGHEST
    B = x_depth.shape[0]
    two_latent, G, C = params["enc_w"].shape
    latent = two_latent // 2
    flat = x_depth.reshape(B, G * C)
    enc_w = params["enc_w"].reshape(two_latent, G * C).astype(jnp.float32)
    acc = jnp.einsum("bi,ni->bn", flat, enc_w, precision=hp) + params["enc_b"]
    mean, log_var = acc[:, :latent], acc[:, latent:]
    z = mean + jnp.exp(0.5 * log_var) * eps
    dec_w = params["dec_w"].reshape(latent, G * C).astype(jnp.float32)
    dec_b = params["dec_b"].reshape(1, G * C).astype(jnp.float32)
    recon = (jnp.einsum("bl,li->bi", z, dec_w, precision=hp) + dec_b).reshape(x_depth.shape)
    h = jnp.tanh(x_q @ params["fc_w0_q"] + z @ params["fc_w0_z"] + params["fc_b0"])
    for w, b in zip(params["fc_ws_rest"], params["fc_bs_rest"]):
        h = jnp.tanh(h @ w + b)
    return h, x_depth, recon, mean, log_var


# ------------------------------------ main --------------------------------------

if __name__ == "__main__":
    key = jax.random.PRNGKey(0)
    B, Cch, H, W = 2, 4, 64, 64       # small stand-in for depth (4 x 512 x 512)
    q_dim = 21                        # "nerf_q(21)" per the docstring
    latent_size = 8
    fc_layer_sizes = [q_dim + latent_size, 32, 16, 4]

    k_q, k_d, k_eps, k_p = jax.random.split(key, 4)
    x_q = jax.random.normal(k_q, (B, q_dim), jnp.float32)
    x_depth = jax.random.normal(k_d, (B, Cch, H, W), jnp.float32)
    eps = jax.random.normal(k_eps, (B, latent_size), jnp.float32)  # deterministic noise

    params = init_params(k_p, Cch * H * W, latent_size, fc_layer_sizes, q_dim)

    # Small row tiles so the K-/N-streaming pipelines run multiple grid steps even
    # at the toy Din=16384 (defaults are sized for the real 4x512x512 depth).
    fwd = jax.jit(functools.partial(collnet_forward, enc_rows=16, dec_rows=16))
    outs = fwd(params, x_q, x_depth, eps)
    jax.block_until_ready(outs)

    y, xd, recon_x, mean, log_var = outs
    assert y.shape == (B, fc_layer_sizes[-1])
    assert recon_x.shape == x_depth.shape
    assert mean.shape == (B, latent_size) and log_var.shape == (B, latent_size)

    ref_y, _, ref_recon, ref_mean, ref_logvar = reference_forward(params, x_q, x_depth, eps)
    for got, want in ((y, ref_y), (recon_x, ref_recon),
                      (mean, ref_mean), (log_var, ref_logvar)):
        err = float(jnp.max(jnp.abs(got - want)))
        assert jnp.allclose(got, want, atol=5e-2, rtol=5e-2), err

    print("KERNEL_OK")
</pallas_src>

<mosaic_0001>
module attributes {stable_mosaic.version = 11 : i64} {
  func.func @_decode_kernel(%arg0: i32, %arg1: memref<2x8x512xf32, #tpu.memory_space<vmem>>, %arg2: memref<8x16x512xbf16, #tpu.memory_space<vmem>>, %arg3: memref<1x16x512xbf16, #tpu.memory_space<vmem>>, %arg4: memref<2x16x512xf32, #tpu.memory_space<vmem>>) attributes {dimension_semantics = [#tpu.dimension_semantics<parallel>], iteration_bounds = array<i64: 2>, scalar_prefetch = 0 : i64, scratch_operands = 0 : i64, tpu.core_type = #tpu.core_type<tc>, window_params = [{pipeline_mode = #tpu.pipeline_mode<synchronous>, transform_indices = @transform_0, window_bounds = array<i64: 2, 8, 512>}, {transform_indices = @transform_1, window_bounds = array<i64: 8, 16, 512>}, {transform_indices = @transform_2, window_bounds = array<i64: 1, 16, 512>}, {transform_indices = @transform_3, window_bounds = array<i64: 2, 16, 512>}]} {
    %c0 = arith.constant 0 : index
    %c0_0 = arith.constant 0 : index
    %c0_1 = arith.constant 0 : index
    %0 = vector.load %arg3[%c0, %c0_0, %c0_1] : memref<1x16x512xbf16, #tpu.memory_space<vmem>>, vector<1x16x512xbf16>
    %1 = vector.shape_cast %0 : vector<1x16x512xbf16> to vector<16x512xbf16>
    %2 = arith.extf %1 : vector<16x512xbf16> to vector<16x512xf32>
    %c0_2 = arith.constant 0 : index
    %c0_3 = arith.constant 0 : index
    %c0_4 = arith.constant 0 : index
    %3 = vector.load %arg2[%c0_2, %c0_3, %c0_4] : memref<8x16x512xbf16, #tpu.memory_space<vmem>>, vector<1x16x512xbf16>
    %4 = vector.shape_cast %3 : vector<1x16x512xbf16> to vector<16x512xbf16>
    %5 = arith.extf %4 : vector<16x512xbf16> to vector<16x512xf32>
    %c0_5 = arith.constant 0 : index
    %c0_6 = arith.constant 0 : index
    %c0_7 = arith.constant 0 : index
    %6 = vector.load %arg1[%c0_5, %c0_6, %c0_7] : memref<2x8x512xf32, #tpu.memory_space<vmem>>, vector<1x1x512xf32>
    %7 = vector.shape_cast %6 : vector<1x1x512xf32> to vector<1x512xf32>
    %8 = vector.broadcast %7 : vector<1x512xf32> to vector<16x512xf32>
    %9 = arith.mulf %8, %5 : vector<16x512xf32>
    %10 = arith.addf %2, %9 : vector<16x512xf32>
    %c1 = arith.constant 1 : index
    %c0_8 = arith.constant 0 : index
    %c0_9 = arith.constant 0 : index
    %11 = vector.load %arg1[%c1, %c0_8, %c0_9] : memref<2x8x512xf32, #tpu.memory_space<vmem>>, vector<1x1x512xf32>
    %12 = vector.shape_cast %11 : vector<1x1x512xf32> to vector<1x512xf32>
    %13 = vector.broadcast %12 : vector<1x512xf32> to vector<16x512xf32>
    %14 = arith.mulf %13, %5 : vector<16x512xf32>
    %15 = arith.addf %2, %14 : vector<16x512xf32>
    %c1_10 = arith.constant 1 : index
    %c0_11 = arith.constant 0 : index
    %c0_12 = arith.constant 0 : index
    %16 = vector.load %arg2[%c1_10, %c0_11, %c0_12] : memref<8x16x512xbf16, #tpu.memory_space<vmem>>, vector<1x16x512xbf16>
    %17 = vector.shape_cast %16 : vector<1x16x512xbf16> to vector<16x512xbf16>
    %18 = arith.extf %17 : vector<16x512xbf16> to vector<16x512xf32>
    %c0_13 = arith.constant 0 : index
    %c1_14 = arith.constant 1 : index
    %c0_15 = arith.constant 0 : index
    %19 = vector.load %arg1[%c0_13, %c1_14, %c0_15] : memref<2x8x512xf32, #tpu.memory_space<vmem>>, vector<1x1x512xf32>
    %20 = vector.shape_cast %19 : vector<1x1x512xf32> to vector<1x512xf32>
    %21 = vector.broadcast %20 : vector<1x512xf32> to vector<16x512xf32>
    %22 = arith.mulf %21, %18 : vector<16x512xf32>
    %23 = arith.addf %10, %22 : vector<16x512xf32>
    %c1_16 = arith.constant 1 : index
    %c1_17 = arith.constant 1 : index
    %c0_18 = arith.constant 0 : index
    %24 = vector.load %arg1[%c1_16, %c1_17, %c0_18] : memref<2x8x512xf32, #tpu.memory_space<vmem>>, vector<1x1x512xf32>
    %25 = vector.shape_cast %24 : vector<1x1x512xf32> to vector<1x512xf32>
    %26 = vector.broadcast %25 : vector<1x512xf32> to vector<16x512xf32>
    %27 = arith.mulf %26, %18 : vector<16x512xf32>
    %28 = arith.addf %15, %27 : vector<16x512xf32>
    %c2 = arith.constant 2 : index
    %c0_19 = arith.constant 0 : index
    %c0_20 = arith.constant 0 : index
    %29 = vector.load %arg2[%c2, %c0_19, %c0_20] : memref<8x16x512xbf16, #tpu.memory_space<vmem>>, vector<1x16x512xbf16>
    %30 = vector.shape_cast %29 : vector<1x16x512xbf16> to vector<16x512xbf16>
    %31 = arith.extf %30 : vector<16x512xbf16> to vector<16x512xf32>
    %c0_21 = arith.constant 0 : index
    %c2_22 = arith.constant 2 : index
    %c0_23 = arith.constant 0 : index
    %32 = vector.load %arg1[%c0_21, %c2_22, %c0_23] : memref<2x8x512xf32, #tpu.memory_space<vmem>>, vector<1x1x512xf32>
    %33 = vector.shape_cast %32 : vector<1x1x512xf32> to vector<1x512xf32>
    %34 = vector.broadcast %33 : vector<1x512xf32> to vector<16x512xf32>
    %35 = arith.mulf %34, %31 : vector<16x512xf32>
    %36 = arith.addf %23, %35 : vector<16x512xf32>
    %c1_24 = arith.constant 1 : index
    %c2_25 = arith.constant 2 : index
    %c0_26 = arith.constant 0 : index
    %37 = vector.load %arg1[%c1_24, %c2_25, %c0_26] : memref<2x8x512xf32, #tpu.memory_space<vmem>>, vector<1x1x512xf32>
    %38 = vector.shape_cast %37 : vector<1x1x512xf32> to vector<1x512xf32>
    %39 = vector.broadcast %38 : vector<1x512xf32> to vector<16x512xf32>
    %40 = arith.mulf %39, %31 : vector<16x512xf32>
    %41 = arith.addf %28, %40 : vector<16x512xf32>
    %c3 = arith.constant 3 : index
    %c0_27 = arith.constant 0 : index
    %c0_28 = arith.constant 0 : index
    %42 = vector.load %arg2[%c3, %c0_27, %c0_28] : memref<8x16x512xbf16, #tpu.memory_space<vmem>>, vector<1x16x512xbf16>
    %43 = vector.shape_cast %42 : vector<1x16x512xbf16> to vector<16x512xbf16>
    %44 = arith.extf %43 : vector<16x512xbf16> to vector<16x512xf32>
    %c0_29 = arith.constant 0 : index
    %c3_30 = arith.constant 3 : index
    %c0_31 = arith.constant 0 : index
    %45 = vector.load %arg1[%c0_29, %c3_30, %c0_31] : memref<2x8x512xf32, #tpu.memory_space<vmem>>, vector<1x1x512xf32>
    %46 = vector.shape_cast %45 : vector<1x1x512xf32> to vector<1x512xf32>
    %47 = vector.broadcast %46 : vector<1x512xf32> to vector<16x512xf32>
    %48 = arith.mulf %47, %44 : vector<16x512xf32>
    %49 = arith.addf %36, %48 : vector<16x512xf32>
    %c1_32 = arith.constant 1 : index
    %c3_33 = arith.constant 3 : index
    %c0_34 = arith.constant 0 : index
    %50 = vector.load %arg1[%c1_32, %c3_33, %c0_34] : memref<2x8x512xf32, #tpu.memory_space<vmem>>, vector<1x1x512xf32>
    %51 = vector.shape_cast %50 : vector<1x1x512xf32> to vector<1x512xf32>
    %52 = vector.broadcast %51 : vector<1x512xf32> to vector<16x512xf32>
    %53 = arith.mulf %52, %44 : vector<16x512xf32>
    %54 = arith.addf %41, %53 : vector<16x512xf32>
    %c4 = arith.constant 4 : index
    %c0_35 = arith.constant 0 : index
    %c0_36 = arith.constant 0 : index
    %55 = vector.load %arg2[%c4, %c0_35, %c0_36] : memref<8x16x512xbf16, #tpu.memory_space<vmem>>, vector<1x16x512xbf16>
    %56 = vector.shape_cast %55 : vector<1x16x512xbf16> to vector<16x512xbf16>
    %57 = arith.extf %56 : vector<16x512xbf16> to vector<16x512xf32>
    %c0_37 = arith.constant 0 : index
    %c4_38 = arith.constant 4 : index
    %c0_39 = arith.constant 0 : index
    %58 = vector.load %arg1[%c0_37, %c4_38, %c0_39] : memref<2x8x512xf32, #tpu.memory_space<vmem>>, vector<1x1x512xf32>
    %59 = vector.shape_cast %58 : vector<1x1x512xf32> to vector<1x512xf32>
    %60 = vector.broadcast %59 : vector<1x512xf32> to vector<16x512xf32>
    %61 = arith.mulf %60, %57 : vector<16x512xf32>
    %62 = arith.addf %49, %61 : vector<16x512xf32>
    %c1_40 = arith.constant 1 : index
    %c4_41 = arith.constant 4 : index
    %c0_42 = arith.constant 0 : index
    %63 = vector.load %arg1[%c1_40, %c4_41, %c0_42] : memref<2x8x512xf32, #tpu.memory_space<vmem>>, vector<1x1x512xf32>
    %64 = vector.shape_cast %63 : vector<1x1x512xf32> to vector<1x512xf32>
    %65 = vector.broadcast %64 : vector<1x512xf32> to vector<16x512xf32>
    %66 = arith.mulf %65, %57 : vector<16x512xf32>
    %67 = arith.addf %54, %66 : vector<16x512xf32>
    %c5 = arith.constant 5 : index
    %c0_43 = arith.constant 0 : index
    %c0_44 = arith.constant 0 : index
    %68 = vector.load %arg2[%c5, %c0_43, %c0_44] : memref<8x16x512xbf16, #tpu.memory_space<vmem>>, vector<1x16x512xbf16>
    %69 = vector.shape_cast %68 : vector<1x16x512xbf16> to vector<16x512xbf16>
    %70 = arith.extf %69 : vector<16x512xbf16> to vector<16x512xf32>
    %c0_45 = arith.constant 0 : index
    %c5_46 = arith.constant 5 : index
    %c0_47 = arith.constant 0 : index
    %71 = vector.load %arg1[%c0_45, %c5_46, %c0_47] : memref<2x8x512xf32, #tpu.memory_space<vmem>>, vector<1x1x512xf32>
    %72 = vector.shape_cast %71 : vector<1x1x512xf32> to vector<1x512xf32>
    %73 = vector.broadcast %72 : vector<1x512xf32> to vector<16x512xf32>
    %74 = arith.mulf %73, %70 : vector<16x512xf32>
    %75 = arith.addf %62, %74 : vector<16x512xf32>
    %c1_48 = arith.constant 1 : index
    %c5_49 = arith.constant 5 : index
    %c0_50 = arith.constant 0 : index
    %76 = vector.load %arg1[%c1_48, %c5_49, %c0_50] : memref<2x8x512xf32, #tpu.memory_space<vmem>>, vector<1x1x512xf32>
    %77 = vector.shape_cast %76 : vector<1x1x512xf32> to vector<1x512xf32>
    %78 = vector.broadcast %77 : vector<1x512xf32> to vector<16x512xf32>
    %79 = arith.mulf %78, %70 : vector<16x512xf32>
    %80 = arith.addf %67, %79 : vector<16x512xf32>
    %c6 = arith.constant 6 : index
    %c0_51 = arith.constant 0 : index
    %c0_52 = arith.constant 0 : index
    %81 = vector.load %arg2[%c6, %c0_51, %c0_52] : memref<8x16x512xbf16, #tpu.memory_space<vmem>>, vector<1x16x512xbf16>
    %82 = vector.shape_cast %81 : vector<1x16x512xbf16> to vector<16x512xbf16>
    %83 = arith.extf %82 : vector<16x512xbf16> to vector<16x512xf32>
    %c0_53 = arith.constant 0 : index
    %c6_54 = arith.constant 6 : index
    %c0_55 = arith.constant 0 : index
    %84 = vector.load %arg1[%c0_53, %c6_54, %c0_55] : memref<2x8x512xf32, #tpu.memory_space<vmem>>, vector<1x1x512xf32>
    %85 = vector.shape_cast %84 : vector<1x1x512xf32> to vector<1x512xf32>
    %86 = vector.broadcast %85 : vector<1x512xf32> to vector<16x512xf32>
    %87 = arith.mulf %86, %83 : vector<16x512xf32>
    %88 = arith.addf %75, %87 : vector<16x512xf32>
    %c1_56 = arith.constant 1 : index
    %c6_57 = arith.constant 6 : index
    %c0_58 = arith.constant 0 : index
    %89 = vector.load %arg1[%c1_56, %c6_57, %c0_58] : memref<2x8x512xf32, #tpu.memory_space<vmem>>, vector<1x1x512xf32>
    %90 = vector.shape_cast %89 : vector<1x1x512xf32> to vector<1x512xf32>
    %91 = vector.broadcast %90 : vector<1x512xf32> to vector<16x512xf32>
    %92 = arith.mulf %91, %83 : vector<16x512xf32>
    %93 = arith.addf %80, %92 : vector<16x512xf32>
    %c7 = arith.constant 7 : index
    %c0_59 = arith.constant 0 : index
    %c0_60 = arith.constant 0 : index
    %94 = vector.load %arg2[%c7, %c0_59, %c0_60] : memref<8x16x512xbf16, #tpu.memory_space<vmem>>, vector<1x16x512xbf16>
    %95 = vector.shape_cast %94 : vector<1x16x512xbf16> to vector<16x512xbf16>
    %96 = arith.extf %95 : vector<16x512xbf16> to vector<16x512xf32>
    %c0_61 = arith.constant 0 : index
    %c7_62 = arith.constant 7 : index
    %c0_63 = arith.constant 0 : index
    %97 = vector.load %arg1[%c0_61, %c7_62, %c0_63] : memref<2x8x512xf32, #tpu.memory_space<vmem>>, vector<1x1x512xf32>
    %98 = vector.shape_cast %97 : vector<1x1x512xf32> to vector<1x512xf32>
    %99 = vector.broadcast %98 : vector<1x512xf32> to vector<16x512xf32>
    %100 = arith.mulf %99, %96 : vector<16x512xf32>
    %101 = arith.addf %88, %100 : vector<16x512xf32>
    %c1_64 = arith.constant 1 : index
    %c7_65 = arith.constant 7 : index
    %c0_66 = arith.constant 0 : index
    %102 = vector.load %arg1[%c1_64, %c7_65, %c0_66] : memref<2x8x512xf32, #tpu.memory_space<vmem>>, vector<1x1x512xf32>
    %103 = vector.shape_cast %102 : vector<1x1x512xf32> to vector<1x512xf32>
    %104 = vector.broadcast %103 : vector<1x512xf32> to vector<16x512xf32>
    %105 = arith.mulf %104, %96 : vector<16x512xf32>
    %106 = arith.addf %93, %105 : vector<16x512xf32>
    %c0_67 = arith.constant 0 : index
    %c0_68 = arith.constant 0 : index
    %c0_69 = arith.constant 0 : index
    %107 = vector.load %arg4[%c0_67, %c0_68, %c0_69] : memref<2x16x512xf32, #tpu.memory_space<vmem>>, vector<1x16x512xf32>
    %108 = vector.shape_cast %107 : vector<1x16x512xf32> to vector<16x512xf32>
    %109 = vector.shape_cast %101 : vector<16x512xf32> to vector<1x16x512xf32>
    tpu.vector_store %arg4[%c0_67, %c0_68, %c0_69], %109 {strides = array<i32>} : memref<2x16x512xf32, #tpu.memory_space<vmem>>, vector<1x16x512xf32>,
    %c1_70 = arith.constant 1 : index
    %c0_71 = arith.constant 0 : index
    %c0_72 = arith.constant 0 : index
    %110 = vector.load %arg4[%c1_70, %c0_71, %c0_72] : memref<2x16x512xf32, #tpu.memory_space<vmem>>, vector<1x16x512xf32>
    %111 = vector.shape_cast %110 : vector<1x16x512xf32> to vector<16x512xf32>
    %112 = vector.shape_cast %106 : vector<16x512xf32> to vector<1x16x512xf32>
    tpu.vector_store %arg4[%c1_70, %c0_71, %c0_72], %112 {strides = array<i32>} : memref<2x16x512xf32, #tpu.memory_space<vmem>>, vector<1x16x512xf32>,
    return
  }
  func.func @transform_0(%arg0: i32) -> (i32, i32, i32) {
    %c0_i32 = arith.constant 0 : i32
    %c0_i32_0 = arith.constant 0 : i32
    %c0_i32_1 = arith.constant 0 : i32
    %c0_i32_2 = arith.constant 0 : i32
    return %c0_i32, %c0_i32_0, %c0_i32_1 : i32, i32, i32
  }
  func.func @transform_1(%arg0: i32) -> (i32, i32, i32) {
    %c0_i32 = arith.constant 0 : i32
    %c0_i32_0 = arith.constant 0 : i32
    %c0_i32_1 = arith.constant 0 : i32
    return %c0_i32, %arg0, %c0_i32_0 : i32, i32, i32
  }
  func.func @transform_2(%arg0: i32) -> (i32, i32, i32) {
    %c0_i32 = arith.constant 0 : i32
    %c0_i32_0 = arith.constant 0 : i32
    %c0_i32_1 = arith.constant 0 : i32
    return %c0_i32, %arg0, %c0_i32_0 : i32, i32, i32
  }
  func.func @transform_3(%arg0: i32) -> (i32, i32, i32) {
    %c0_i32 = arith.constant 0 : i32
    %c0_i32_0 = arith.constant 0 : i32
    %c0_i32_1 = arith.constant 0 : i32
    return %c0_i32, %arg0, %c0_i32_0 : i32, i32, i32
  }
}

module attributes {stable_mosaic.version = 11 : i64} {
  func.func @_encode_fc_kernel(%arg0: i32, %arg1: memref<2x16x512xf32, #tpu.memory_space<vmem>>, %arg2: memref<16x16x512xbf16, #tpu.memory_space<vmem>>, %arg3: memref<1x16xf32, #tpu.memory_space<vmem>>, %arg4: memref<2x8xf32, #tpu.memory_space<vmem>>, %arg5: memref<2x21xf32, #tpu.memory_space<vmem>>, %arg6: memref<21x32xf32, #tpu.memory_space<vmem>>, %arg7: memref<8x32xf32, #tpu.memory_space<vmem>>, %arg8: memref<1x32xf32, #tpu.memory_space<vmem>>, %arg9: memref<32x16xf32, #tpu.memory_space<vmem>>, %arg10: memref<1x16xf32, #tpu.memory_space<vmem>>, %arg11: memref<16x4xf32, #tpu.memory_space<vmem>>, %arg12: memref<1x4xf32, #tpu.memory_space<vmem>>, %arg13: memref<2x8xf32, #tpu.memory_space<vmem>>, %arg14: memref<2x8xf32, #tpu.memory_space<vmem>>, %arg15: memref<2x8xf32, #tpu.memory_space<vmem>>, %arg16: memref<2x4xf32, #tpu.memory_space<vmem>>, %arg17: memref<2x16x512xf32, #tpu.memory_space<vmem>>) attributes {dimension_semantics = [#tpu.dimension_semantics<arbitrary>], iteration_bounds = array<i64: 2>, scalar_prefetch = 0 : i64, scratch_operands = 1 : i64, tpu.core_type = #tpu.core_type<tc>, window_params = [{transform_indices = @transform_0, window_bounds = array<i64: 2, 16, 512>}, {transform_indices = @transform_1, window_bounds = array<i64: 16, 16, 512>}, {pipeline_mode = #tpu.pipeline_mode<synchronous>, transform_indices = @transform_2, window_bounds = array<i64: 1, 16>}, {pipeline_mode = #tpu.pipeline_mode<synchronous>, transform_indices = @transform_3, window_bounds = array<i64: 2, 8>}, {pipeline_mode = #tpu.pipeline_mode<synchronous>, transform_indices = @transform_4, window_bounds = array<i64: 2, 21>}, {pipeline_mode = #tpu.pipeline_mode<synchronous>, transform_indices = @transform_5, window_bounds = array<i64: 21, 32>}, {pipeline_mode = #tpu.pipeline_mode<synchronous>, transform_indices = @transform_6, window_bounds = array<i64: 8, 32>}, {pipeline_mode = #tpu.pipeline_mode<synchronous>, transform_indices = @transform_7, window_bounds = array<i64: 1, 32>}, {pipeline_mode = #tpu.pipeline_mode<synchronous>, transform_indices = @transform_8, window_bounds = array<i64: 32, 16>}, {pipeline_mode = #tpu.pipeline_mode<synchronous>, transform_indices = @transform_9, window_bounds = array<i64: 1, 16>}, {pipeline_mode = #tpu.pipeline_mode<synchronous>, transform_indices = @transform_10, window_bounds = array<i64: 16, 4>}, {pipeline_mode = #tpu.pipeline_mode<synchronous>, transform_indices = @transform_11, window_bounds = array<i64: 1, 4>}, {pipeline_mode = #tpu.pipeline_mode<synchronous>, transform_indices = @transform_12, window_bounds = array<i64: 2, 8>}, {pipeline_mode = #tpu.pipeline_mode<synchronous>, transform_indices = @transform_13, window_bounds = array<i64: 2, 8>}, {pipeline_mode = #tpu.pipeline_mode<synchronous>, transform_indices = @transform_14, window_bounds = array<i64: 2, 8>}, {pipeline_mode = #tpu.pipeline_mode<synchronous>, transform_indices = @transform_15, window_bounds = array<i64: 2, 4>}]} {
    %c0_i32 = arith.constant 0 : i32
    %0 = arith.cmpi eq, %arg0, %c0_i32 : i32
    %1 = arith.extui %0 : i1 to i32
    %c0_i32_0 = arith.constant 0 : i32
    %2 = arith.cmpi ne, %1, %c0_i32_0 : i32
    scf.if %2 {
      %cst_263 = arith.constant 0.000000e+00 : f32
      %282 = vector.broadcast %cst_263 : f32 to vector<2x16x512xf32>
      %c0_264 = arith.constant 0 : index
      %c0_265 = arith.constant 0 : index
      %c0_266 = arith.constant 0 : index
      %283 = vector.load %arg17[%c0_264, %c0_265, %c0_266] : memref<2x16x512xf32, #tpu.memory_space<vmem>>, vector<2x16x512xf32>
      tpu.vector_store %arg17[%c0_264, %c0_265, %c0_266], %282 {strides = array<i32>} : memref<2x16x512xf32, #tpu.memory_space<vmem>>, vector<2x16x512xf32>,
    } else {
    }
    %c0 = arith.constant 0 : index
    %c0_1 = arith.constant 0 : index
    %c0_2 = arith.constant 0 : index
    %3 = vector.load %arg1[%c0, %c0_1, %c0_2] : memref<2x16x512xf32, #tpu.memory_space<vmem>>, vector<1x16x512xf32>
    %4 = vector.shape_cast %3 : vector<1x16x512xf32> to vector<16x512xf32>
    %c1 = arith.constant 1 : index
    %c0_3 = arith.constant 0 : index
    %c0_4 = arith.constant 0 : index
    %5 = vector.load %arg1[%c1, %c0_3, %c0_4] : memref<2x16x512xf32, #tpu.memory_space<vmem>>, vector<1x16x512xf32>
    %6 = vector.shape_cast %5 : vector<1x16x512xf32> to vector<16x512xf32>
    %c0_5 = arith.constant 0 : index
    %c0_6 = arith.constant 0 : index
    %c0_7 = arith.constant 0 : index
    %7 = vector.load %arg2[%c0_5, %c0_6, %c0_7] : memref<16x16x512xbf16, #tpu.memory_space<vmem>>, vector<1x16x512xbf16>
    %8 = vector.shape_cast %7 : vector<1x16x512xbf16> to vector<16x512xbf16>
    %9 = arith.extf %8 : vector<16x512xbf16> to vector<16x512xf32>
    %10 = arith.mulf %4, %9 : vector<16x512xf32>
    %cst = arith.constant dense<0.000000e+00> : vector<512xf32>
    %11 = vector.multi_reduction <add>, %10, %cst [0] : vector<16x512xf32> to vector<512xf32>
    %12 = vector.shape_cast %11 : vector<512xf32> to vector<1x512xf32>
    %13 = vector.shape_cast %12 : vector<1x512xf32> to vector<1x1x512xf32>
    %c0_8 = arith.constant 0 : index
    %c0_9 = arith.constant 0 : index
    %c0_10 = arith.constant 0 : index
    %14 = vector.load %arg17[%c0_8, %c0_9, %c0_10] : memref<2x16x512xf32, #tpu.memory_space<vmem>>, vector<1x1x512xf32>
    %15 = arith.addf %14, %13 : vector<1x1x512xf32>
    %c0_11 = arith.constant 0 : index
    %c0_12 = arith.constant 0 : index
    %c0_13 = arith.constant 0 : index
    %16 = vector.load %arg17[%c0_11, %c0_12, %c0_13] : memref<2x16x512xf32, #tpu.memory_space<vmem>>, vector<1x1x512xf32>
    tpu.vector_store %arg17[%c0_11, %c0_12, %c0_13], %15 {strides = array<i32>} : memref<2x16x512xf32, #tpu.memory_space<vmem>>, vector<1x1x512xf32>,
    %17 = arith.mulf %6, %9 : vector<16x512xf32>
    %cst_14 = arith.constant dense<0.000000e+00> : vector<512xf32>
    %18 = vector.multi_reduction <add>, %17, %cst_14 [0] : vector<16x512xf32> to vector<512xf32>
    %19 = vector.shape_cast %18 : vector<512xf32> to vector<1x512xf32>
    %20 = vector.shape_cast %19 : vector<1x512xf32> to vector<1x1x512xf32>
    %c1_15 = arith.constant 1 : index
    %c0_16 = arith.constant 0 : index
    %c0_17 = arith.constant 0 : index
    %21 = vector.load %arg17[%c1_15, %c0_16, %c0_17] : memref<2x16x512xf32, #tpu.memory_space<vmem>>, vector<1x1x512xf32>
    %22 = arith.addf %21, %20 : vector<1x1x512xf32>
    %c1_18 = arith.constant 1 : index
    %c0_19 = arith.constant 0 : index
    %c0_20 = arith.constant 0 : index
    %23 = vector.load %arg17[%c1_18, %c0_19, %c0_20] : memref<2x16x512xf32, #tpu.memory_space<vmem>>, vector<1x1x512xf32>
    tpu.vector_store %arg17[%c1_18, %c0_19, %c0_20], %22 {strides = array<i32>} : memref<2x16x512xf32, #tpu.memory_space<vmem>>, vector<1x1x512xf32>,
    %c1_21 = arith.constant 1 : index
    %c0_22 = arith.constant 0 : index
    %c0_23 = arith.constant 0 : index
    %24 = vector.load %arg2[%c1_21, %c0_22, %c0_23] : memref<16x16x512xbf16, #tpu.memory_space<vmem>>, vector<1x16x512xbf16>
    %25 = vector.shape_cast %24 : vector<1x16x512xbf16> to vector<16x512xbf16>
    %26 = arith.extf %25 : vector<16x512xbf16> to vector<16x512xf32>
    %27 = arith.mulf %4, %26 : vector<16x512xf32>
    %cst_24 = arith.constant dense<0.000000e+00> : vector<512xf32>
    %28 = vector.multi_reduction <add>, %27, %cst_24 [0] : vector<16x512xf32> to vector<512xf32>
    %29 = vector.shape_cast %28 : vector<512xf32> to vector<1x512xf32>
    %30 = vector.shape_cast %29 : vector<1x512xf32> to vector<1x1x512xf32>
    %c0_25 = arith.constant 0 : index
    %c1_26 = arith.constant 1 : index
    %c0_27 = arith.constant 0 : index
    %31 = vector.load %arg17[%c0_25, %c1_26, %c0_27] : memref<2x16x512xf32, #tpu.memory_space<vmem>>, vector<1x1x512xf32>
    %32 = arith.addf %31, %30 : vector<1x1x512xf32>
    %c0_28 = arith.constant 0 : index
    %c1_29 = arith.constant 1 : index
    %c0_30 = arith.constant 0 : index
    %33 = vector.load %arg17[%c0_28, %c1_29, %c0_30] : memref<2x16x512xf32, #tpu.memory_space<vmem>>, vector<1x1x512xf32>
    tpu.vector_store %arg17[%c0_28, %c1_29, %c0_30], %32 {strides = array<i32>} : memref<2x16x512xf32, #tpu.memory_space<vmem>>, vector<1x1x512xf32>,
    %34 = arith.mulf %6, %26 : vector<16x512xf32>
    %cst_31 = arith.constant dense<0.000000e+00> : vector<512xf32>
    %35 = vector.multi_reduction <add>, %34, %cst_31 [0] : vector<16x512xf32> to vector<512xf32>
    %36 = vector.shape_cast %35 : vector<512xf32> to vector<1x512xf32>
    %37 = vector.shape_cast %36 : vector<1x512xf32> to vector<1x1x512xf32>
    %c1_32 = arith.constant 1 : index
    %c1_33 = arith.constant 1 : index
    %c0_34 = arith.constant 0 : index
    %38 = vector.load %arg17[%c1_32, %c1_33, %c0_34] : memref<2x16x512xf32, #tpu.memory_space<vmem>>, vector<1x1x512xf32>
    %39 = arith.addf %38, %37 : vector<1x1x512xf32>
    %c1_35 = arith.constant 1 : index
    %c1_36 = arith.constant 1 : index
    %c0_37 = arith.constant 0 : index
    %40 = vector.load %arg17[%c1_35, %c1_36, %c0_37] : memref<2x16x512xf32, #tpu.memory_space<vmem>>, vector<1x1x512xf32>
    tpu.vector_store %arg17[%c1_35, %c1_36, %c0_37], %39 {strides = array<i32>} : memref<2x16x512xf32, #tpu.memory_space<vmem>>, vector<1x1x512xf32>,
    %c2 = arith.constant 2 : index
    %c0_38 = arith.constant 0 : index
    %c0_39 = arith.constant 0 : index
    %41 = vector.load %arg2[%c2, %c0_38, %c0_39] : memref<16x16x512xbf16, #tpu.memory_space<vmem>>, vector<1x16x512xbf16>
    %42 = vector.shape_cast %41 : vector<1x16x512xbf16> to vector<16x512xbf16>
    %43 = arith.extf %42 : vector<16x512xbf16> to vector<16x512xf32>
    %44 = arith.mulf %4, %43 : vector<16x512xf32>
    %cst_40 = arith.constant dense<0.000000e+00> : vector<512xf32>
    %45 = vector.multi_reduction <add>, %44, %cst_40 [0] : vector<16x512xf32> to vector<512xf32>
    %46 = vector.shape_cast %45 : vector<512xf32> to vector<1x512xf32>
    %47 = vector.shape_cast %46 : vector<1x512xf32> to vector<1x1x512xf32>
    %c0_41 = arith.constant 0 : index
    %c2_42 = arith.constant 2 : index
    %c0_43 = arith.constant 0 : index
    %48 = vector.load %arg17[%c0_41, %c2_42, %c0_43] : memref<2x16x512xf32, #tpu.memory_space<vmem>>, vector<1x1x512xf32>
    %49 = arith.addf %48, %47 : vector<1x1x512xf32>
    %c0_44 = arith.constant 0 : index
    %c2_45 = arith.constant 2 : index
    %c0_46 = arith.constant 0 : index
    %50 = vector.load %arg17[%c0_44, %c2_45, %c0_46] : memref<2x16x512xf32, #tpu.memory_space<vmem>>, vector<1x1x512xf32>
    tpu.vector_store %arg17[%c0_44, %c2_45, %c0_46], %49 {strides = array<i32>} : memref<2x16x512xf32, #tpu.memory_space<vmem>>, vector<1x1x512xf32>,
    %51 = arith.mulf %6, %43 : vector<16x512xf32>
    %cst_47 = arith.constant dense<0.000000e+00> : vector<512xf32>
    %52 = vector.multi_reduction <add>, %51, %cst_47 [0] : vector<16x512xf32> to vector<512xf32>
    %53 = vector.shape_cast %52 : vector<512xf32> to vector<1x512xf32>
    %54 = vector.shape_cast %53 : vector<1x512xf32> to vector<1x1x512xf32>
    %c1_48 = arith.constant 1 : index
    %c2_49 = arith.constant 2 : index
    %c0_50 = arith.constant 0 : index
    %55 = vector.load %arg17[%c1_48, %c2_49, %c0_50] : memref<2x16x512xf32, #tpu.memory_space<vmem>>, vector<1x1x512xf32>
    %56 = arith.addf %55, %54 : vector<1x1x512xf32>
    %c1_51 = arith.constant 1 : index
    %c2_52 = arith.constant 2 : index
    %c0_53 = arith.constant 0 : index
    %57 = vector.load %arg17[%c1_51, %c2_52, %c0_53] : memref<2x16x512xf32, #tpu.memory_space<vmem>>, vector<1x1x512xf32>
    tpu.vector_store %arg17[%c1_51, %c2_52, %c0_53], %56 {strides = array<i32>} : memref<2x16x512xf32, #tpu.memory_space<vmem>>, vector<1x1x512xf32>,
    %c3 = arith.constant 3 : index
    %c0_54 = arith.constant 0 : index
    %c0_55 = arith.constant 0 : index
    %58 = vector.load %arg2[%c3, %c0_54, %c0_55] : memref<16x16x512xbf16, #tpu.memory_space<vmem>>, vector<1x16x512xbf16>
    %59 = vector.shape_cast %58 : vector<1x16x512xbf16> to vector<16x512xbf16>
    %60 = arith.extf %59 : vector<16x512xbf16> to vector<16x512xf32>
    %61 = arith.mulf %4, %60 : vector<16x512xf32>
    %cst_56 = arith.constant dense<0.000000e+00> : vector<512xf32>
    %62 = vector.multi_reduction <add>, %61, %cst_56 [0] : vector<16x512xf32> to vector<512xf32>
    %63 = vector.shape_cast %62 : vector<512xf32> to vector<1x512xf32>
    %64 = vector.shape_cast %63 : vector<1x512xf32> to vector<1x1x512xf32>
    %c0_57 = arith.constant 0 : index
    %c3_58 = arith.constant 3 : index
    %c0_59 = arith.constant 0 : index
    %65 = vector.load %arg17[%c0_57, %c3_58, %c0_59] : memref<2x16x512xf32, #tpu.memory_space<vmem>>, vector<1x1x512xf32>
    %66 = arith.addf %65, %64 : vector<1x1x512xf32>
    %c0_60 = arith.constant 0 : index
    %c3_61 = arith.constant 3 : index
    %c0_62 = arith.constant 0 : index
    %67 = vector.load %arg17[%c0_60, %c3_61, %c0_62] : memref<2x16x512xf32, #tpu.memory_space<vmem>>, vector<1x1x512xf32>
    tpu.vector_store %arg17[%c0_60, %c3_61, %c0_62], %66 {strides = array<i32>} : memref<2x16x512xf32, #tpu.memory_space<vmem>>, vector<1x1x512xf32>,
    %68 = arith.mulf %6, %60 : vector<16x512xf32>
    %cst_63 = arith.constant dense<0.000000e+00> : vector<512xf32>
    %69 = vector.multi_reduction <add>, %68, %cst_63 [0] : vector<16x512xf32> to vector<512xf32>
    %70 = vector.shape_cast %69 : vector<512xf32> to vector<1x512xf32>
    %71 = vector.shape_cast %70 : vector<1x512xf32> to vector<1x1x512xf32>
    %c1_64 = arith.constant 1 : index
    %c3_65 = arith.constant 3 : index
    %c0_66 = arith.constant 0 : index
    %72 = vector.load %arg17[%c1_64, %c3_65, %c0_66] : memref<2x16x512xf32, #tpu.memory_space<vmem>>, vector<1x1x512xf32>
    %73 = arith.addf %72, %71 : vector<1x1x512xf32>
    %c1_67 = arith.constant 1 : index
    %c3_68 = arith.constant 3 : index
    %c0_69 = arith.constant 0 : index
    %74 = vector.load %arg17[%c1_67, %c3_68, %c0_69] : memref<2x16x512xf32, #tpu.memory_space<vmem>>, vector<1x1x512xf32>
    tpu.vector_store %arg17[%c1_67, %c3_68, %c0_69], %73 {strides = array<i32>} : memref<2x16x512xf32, #tpu.memory_space<vmem>>, vector<1x1x512xf32>,
    %c4 = arith.constant 4 : index
    %c0_70 = arith.constant 0 : index
    %c0_71 = arith.constant 0 : index
    %75 = vector.load %arg2[%c4, %c0_70, %c0_71] : memref<16x16x512xbf16, #tpu.memory_space<vmem>>, vector<1x16x512xbf16>
    %76 = vector.shape_cast %75 : vector<1x16x512xbf16> to vector<16x512xbf16>
    %77 = arith.extf %76 : vector<16x512xbf16> to vector<16x512xf32>
    %78 = arith.mulf %4, %77 : vector<16x512xf32>
    %cst_72 = arith.constant dense<0.000000e+00> : vector<512xf32>
    %79 = vector.multi_reduction <add>, %78, %cst_72 [0] : vector<16x512xf32> to vector<512xf32>
    %80 = vector.shape_cast %79 : vector<512xf32> to vector<1x512xf32>
    %81 = vector.shape_cast %80 : vector<1x512xf32> to vector<1x1x512xf32>
    %c0_73 = arith.constant 0 : index
    %c4_74 = arith.constant 4 : index
    %c0_75 = arith.constant 0 : index
    %82 = vector.load %arg17[%c0_73, %c4_74, %c0_75] : memref<2x16x512xf32, #tpu.memory_space<vmem>>, vector<1x1x512xf32>
    %83 = arith.addf %82, %81 : vector<1x1x512xf32>
    %c0_76 = arith.constant 0 : index
    %c4_77 = arith.constant 4 : index
    %c0_78 = arith.constant 0 : index
    %84 = vector.load %arg17[%c0_76, %c4_77, %c0_78] : memref<2x16x512xf32, #tpu.memory_space<vmem>>, vector<1x1x512xf32>
    tpu.vector_store %arg17[%c0_76, %c4_77, %c0_78], %83 {strides = array<i32>} : memref<2x16x512xf32, #tpu.memory_space<vmem>>, vector<1x1x512xf32>,
    %85 = arith.mulf %6, %77 : vector<16x512xf32>
    %cst_79 = arith.constant dense<0.000000e+00> : vector<512xf32>
    %86 = vector.multi_reduction <add>, %85, %cst_79 [0] : vector<16x512xf32> to vector<512xf32>
    %87 = vector.shape_cast %86 : vector<512xf32> to vector<1x512xf32>
    %88 = vector.shape_cast %87 : vector<1x512xf32> to vector<1x1x512xf32>
    %c1_80 = arith.constant 1 : index
    %c4_81 = arith.constant 4 : index
    %c0_82 = arith.constant 0 : index
    %89 = vector.load %arg17[%c1_80, %c4_81, %c0_82] : memref<2x16x512xf32, #tpu.memory_space<vmem>>, vector<1x1x512xf32>
    %90 = arith.addf %89, %88 : vector<1x1x512xf32>
    %c1_83 = arith.constant 1 : index
    %c4_84 = arith.constant 4 : index
    %c0_85 = arith.constant 0 : index
    %91 = vector.load %arg17[%c1_83, %c4_84, %c0_85] : memref<2x16x512xf32, #tpu.memory_space<vmem>>, vector<1x1x512xf32>
    tpu.vector_store %arg17[%c1_83, %c4_84, %c0_85], %90 {strides = array<i32>} : memref<2x16x512xf32, #tpu.memory_space<vmem>>, vector<1x1x512xf32>,
    %c5 = arith.constant 5 : index
    %c0_86 = arith.constant 0 : index
    %c0_87 = arith.constant 0 : index
    %92 = vector.load %arg2[%c5, %c0_86, %c0_87] : memref<16x16x512xbf16, #tpu.memory_space<vmem>>, vector<1x16x512xbf16>
    %93 = vector.shape_cast %92 : vector<1x16x512xbf16> to vector<16x512xbf16>
    %94 = arith.extf %93 : vector<16x512xbf16> to vector<16x512xf32>
    %95 = arith.mulf %4, %94 : vector<16x512xf32>
    %cst_88 = arith.constant dense<0.000000e+00> : vector<512xf32>
    %96 = vector.multi_reduction <add>, %95, %cst_88 [0] : vector<16x512xf32> to vector<512xf32>
    %97 = vector.shape_cast %96 : vector<512xf32> to vector<1x512xf32>
    %98 = vector.shape_cast %97 : vector<1x512xf32> to vector<1x1x512xf32>
    %c0_89 = arith.constant 0 : index
    %c5_90 = arith.constant 5 : index
    %c0_91 = arith.constant 0 : index
    %99 = vector.load %arg17[%c0_89, %c5_90, %c0_91] : memref<2x16x512xf32, #tpu.memory_space<vmem>>, vector<1x1x512xf32>
    %100 = arith.addf %99, %98 : vector<1x1x512xf32>
    %c0_92 = arith.constant 0 : index
    %c5_93 = arith.constant 5 : index
    %c0_94 = arith.constant 0 : index
    %101 = vector.load %arg17[%c0_92, %c5_93, %c0_94] : memref<2x16x512xf32, #tpu.memory_space<vmem>>, vector<1x1x512xf32>
    tpu.vector_store %arg17[%c0_92, %c5_93, %c0_94], %100 {strides = array<i32>} : memref<2x16x512xf32, #tpu.memory_space<vmem>>, vector<1x1x512xf32>,
    %102 = arith.mulf %6, %94 : vector<16x512xf32>
    %cst_95 = arith.constant dense<0.000000e+00> : vector<512xf32>
    %103 = vector.multi_reduction <add>, %102, %cst_95 [0] : vector<16x512xf32> to vector<512xf32>
    %104 = vector.shape_cast %103 : vector<512xf32> to vector<1x512xf32>
    %105 = vector.shape_cast %104 : vector<1x512xf32> to vector<1x1x512xf32>
    %c1_96 = arith.constant 1 : index
    %c5_97 = arith.constant 5 : index
    %c0_98 = arith.constant 0 : index
    %106 = vector.load %arg17[%c1_96, %c5_97, %c0_98] : memref<2x16x512xf32, #tpu.memory_space<vmem>>, vector<1x1x512xf32>
    %107 = arith.addf %106, %105 : vector<1x1x512xf32>
    %c1_99 = arith.constant 1 : index
    %c5_100 = arith.constant 5 : index
    %c0_101 = arith.constant 0 : index
    %108 = vector.load %arg17[%c1_99, %c5_100, %c0_101] : memref<2x16x512xf32, #tpu.memory_space<vmem>>, vector<1x1x512xf32>
    tpu.vector_store %arg17[%c1_99, %c5_100, %c0_101], %107 {strides = array<i32>} : memref<2x16x512xf32, #tpu.memory_space<vmem>>, vector<1x1x512xf32>,
    %c6 = arith.constant 6 : index
    %c0_102 = arith.constant 0 : index
    %c0_103 = arith.constant 0 : index
    %109 = vector.load %arg2[%c6, %c0_102, %c0_103] : memref<16x16x512xbf16, #tpu.memory_space<vmem>>, vector<1x16x512xbf16>
    %110 = vector.shape_cast %109 : vector<1x16x512xbf16> to vector<16x512xbf16>
    %111 = arith.extf %110 : vector<16x512xbf16> to vector<16x512xf32>
    %112 = arith.mulf %4, %111 : vector<16x512xf32>
    %cst_104 = arith.constant dense<0.000000e+00> : vector<512xf32>
    %113 = vector.multi_reduction <add>, %112, %cst_104 [0] : vector<16x512xf32> to vector<512xf32>
    %114 = vector.shape_cast %113 : vector<512xf32> to vector<1x512xf32>
    %115 = vector.shape_cast %114 : vector<1x512xf32> to vector<1x1x512xf32>
    %c0_105 = arith.constant 0 : index
    %c6_106 = arith.constant 6 : index
    %c0_107 = arith.constant 0 : index
    %116 = vector.load %arg17[%c0_105, %c6_106, %c0_107] : memref<2x16x512xf32, #tpu.memory_space<vmem>>, vector<1x1x512xf32>
    %117 = arith.addf %116, %115 : vector<1x1x512xf32>
    %c0_108 = arith.constant 0 : index
    %c6_109 = arith.constant 6 : index
    %c0_110 = arith.constant 0 : index
    %118 = vector.load %arg17[%c0_108, %c6_109, %c0_110] : memref<2x16x512xf32, #tpu.memory_space<vmem>>, vector<1x1x512xf32>
    tpu.vector_store %arg17[%c0_108, %c6_109, %c0_110], %117 {strides = array<i32>} : memref<2x16x512xf32, #tpu.memory_space<vmem>>, vector<1x1x512xf32>,
    %119 = arith.mulf %6, %111 : vector<16x512xf32>
    %cst_111 = arith.constant dense<0.000000e+00> : vector<512xf32>
    %120 = vector.multi_reduction <add>, %119, %cst_111 [0] : vector<16x512xf32> to vector<512xf32>
    %121 = vector.shape_cast %120 : vector<512xf32> to vector<1x512xf32>
    %122 = vector.shape_cast %121 : vector<1x512xf32> to vector<1x1x512xf32>
    %c1_112 = arith.constant 1 : index
    %c6_113 = arith.constant 6 : index
    %c0_114 = arith.constant 0 : index
    %123 = vector.load %arg17[%c1_112, %c6_113, %c0_114] : memref<2x16x512xf32, #tpu.memory_space<vmem>>, vector<1x1x512xf32>
    %124 = arith.addf %123, %122 : vector<1x1x512xf32>
    %c1_115 = arith.constant 1 : index
    %c6_116 = arith.constant 6 : index
    %c0_117 = arith.constant 0 : index
    %125 = vector.load %arg17[%c1_115, %c6_116, %c0_117] : memref<2x16x512xf32, #tpu.memory_space<vmem>>, vector<1x1x512xf32>
    tpu.vector_store %arg17[%c1_115, %c6_116, %c0_117], %124 {strides = array<i32>} : memref<2x16x512xf32, #tpu.memory_space<vmem>>, vector<1x1x512xf32>,
    %c7 = arith.constant 7 : index
    %c0_118 = arith.constant 0 : index
    %c0_119 = arith.constant 0 : index
    %126 = vector.load %arg2[%c7, %c0_118, %c0_119] : memref<16x16x512xbf16, #tpu.memory_space<vmem>>, vector<1x16x512xbf16>
    %127 = vector.shape_cast %126 : vector<1x16x512xbf16> to vector<16x512xbf16>
    %128 = arith.extf %127 : vector<16x512xbf16> to vector<16x512xf32>
    %129 = arith.mulf %4, %128 : vector<16x512xf32>
    %cst_120 = arith.constant dense<0.000000e+00> : vector<512xf32>
    %130 = vector.multi_reduction <add>, %129, %cst_120 [0] : vector<16x512xf32> to vector<512xf32>
    %131 = vector.shape_cast %130 : vector<512xf32> to vector<1x512xf32>
    %132 = vector.shape_cast %131 : vector<1x512xf32> to vector<1x1x512xf32>
    %c0_121 = arith.constant 0 : index
    %c7_122 = arith.constant 7 : index
    %c0_123 = arith.constant 0 : index
    %133 = vector.load %arg17[%c0_121, %c7_122, %c0_123] : memref<2x16x512xf32, #tpu.memory_space<vmem>>, vector<1x1x512xf32>
    %134 = arith.addf %133, %132 : vector<1x1x512xf32>
    %c0_124 = arith.constant 0 : index
    %c7_125 = arith.constant 7 : index
    %c0_126 = arith.constant 0 : index
    %135 = vector.load %arg17[%c0_124, %c7_125, %c0_126] : memref<2x16x512xf32, #tpu.memory_space<vmem>>, vector<1x1x512xf32>
    tpu.vector_store %arg17[%c0_124, %c7_125, %c0_126], %134 {strides = array<i32>} : memref<2x16x512xf32, #tpu.memory_space<vmem>>, vector<1x1x512xf32>,
    %136 = arith.mulf %6, %128 : vector<16x512xf32>
    %cst_127 = arith.constant dense<0.000000e+00> : vector<512xf32>
    %137 = vector.multi_reduction <add>, %136, %cst_127 [0] : vector<16x512xf32> to vector<512xf32>
    %138 = vector.shape_cast %137 : vector<512xf32> to vector<1x512xf32>
    %139 = vector.shape_cast %138 : vector<1x512xf32> to vector<1x1x512xf32>
    %c1_128 = arith.constant 1 : index
    %c7_129 = arith.constant 7 : index
    %c0_130 = arith.constant 0 : index
    %140 = vector.load %arg17[%c1_128, %c7_129, %c0_130] : memref<2x16x512xf32, #tpu.memory_space<vmem>>, vector<1x1x512xf32>
    %141 = arith.addf %140, %139 : vector<1x1x512xf32>
    %c1_131 = arith.constant 1 : index
    %c7_132 = arith.constant 7 : index
    %c0_133 = arith.constant 0 : index
    %142 = vector.load %arg17[%c1_131, %c7_132, %c0_133] : memref<2x16x512xf32, #tpu.memory_space<vmem>>, vector<1x1x512xf32>
    tpu.vector_store %arg17[%c1_131, %c7_132, %c0_133], %141 {strides = array<i32>} : memref<2x16x512xf32, #tpu.memory_space<vmem>>, vector<1x1x512xf32>,
    %c8 = arith.constant 8 : index
    %c0_134 = arith.constant 0 : index
    %c0_135 = arith.constant 0 : index
    %143 = vector.load %arg2[%c8, %c0_134, %c0_135] : memref<16x16x512xbf16, #tpu.memory_space<vmem>>, vector<1x16x512xbf16>
    %144 = vector.shape_cast %143 : vector<1x16x512xbf16> to vector<16x512xbf16>
    %145 = arith.extf %144 : vector<16x512xbf16> to vector<16x512xf32>
    %146 = arith.mulf %4, %145 : vector<16x512xf32>
    %cst_136 = arith.constant dense<0.000000e+00> : vector<512xf32>
    %147 = vector.multi_reduction <add>, %146, %cst_136 [0] : vector<16x512xf32> to vector<512xf32>
    %148 = vector.shape_cast %147 : vector<512xf32> to vector<1x512xf32>
    %149 = vector.shape_cast %148 : vector<1x512xf32> to vector<1x1x512xf32>
    %c0_137 = arith.constant 0 : index
    %c8_138 = arith.constant 8 : index
    %c0_139 = arith.constant 0 : index
    %150 = vector.load %arg17[%c0_137, %c8_138, %c0_139] : memref<2x16x512xf32, #tpu.memory_space<vmem>>, vector<1x1x512xf32>
    %151 = arith.addf %150, %149 : vector<1x1x512xf32>
    %c0_140 = arith.constant 0 : index
    %c8_141 = arith.constant 8 : index
    %c0_142 = arith.constant 0 : index
    %152 = vector.load %arg17[%c0_140, %c8_141, %c0_142] : memref<2x16x512xf32, #tpu.memory_space<vmem>>, vector<1x1x512xf32>
    tpu.vector_store %arg17[%c0_140, %c8_141, %c0_142], %151 {strides = array<i32>} : memref<2x16x512xf32, #tpu.memory_space<vmem>>, vector<1x1x512xf32>,
    %153 = arith.mulf %6, %145 : vector<16x512xf32>
    %cst_143 = arith.constant dense<0.000000e+00> : vector<512xf32>
    %154 = vector.multi_reduction <add>, %153, %cst_143 [0] : vector<16x512xf32> to vector<512xf32>
    %155 = vector.shape_cast %154 : vector<512xf32> to vector<1x512xf32>
    %156 = vector.shape_cast %155 : vector<1x512xf32> to vector<1x1x512xf32>
    %c1_144 = arith.constant 1 : index
    %c8_145 = arith.constant 8 : index
    %c0_146 = arith.constant 0 : index
    %157 = vector.load %arg17[%c1_144, %c8_145, %c0_146] : memref<2x16x512xf32, #tpu.memory_space<vmem>>, vector<1x1x512xf32>
    %158 = arith.addf %157, %156 : vector<1x1x512xf32>
    %c1_147 = arith.constant 1 : index
    %c8_148 = arith.constant 8 : index
    %c0_149 = arith.constant 0 : index
    %159 = vector.load %arg17[%c1_147, %c8_148, %c0_149] : memref<2x16x512xf32, #tpu.memory_space<vmem>>, vector<1x1x512xf32>
    tpu.vector_store %arg17[%c1_147, %c8_148, %c0_149], %158 {strides = array<i32>} : memref<2x16x512xf32, #tpu.memory_space<vmem>>, vector<1x1x512xf32>,
    %c9 = arith.constant 9 : index
    %c0_150 = arith.constant 0 : index
    %c0_151 = arith.constant 0 : index
    %160 = vector.load %arg2[%c9, %c0_150, %c0_151] : memref<16x16x512xbf16, #tpu.memory_space<vmem>>, vector<1x16x512xbf16>
    %161 = vector.shape_cast %160 : vector<1x16x512xbf16> to vector<16x512xbf16>
    %162 = arith.extf %161 : vector<16x512xbf16> to vector<16x512xf32>
    %163 = arith.mulf %4, %162 : vector<16x512xf32>
    %cst_152 = arith.constant dense<0.000000e+00> : vector<512xf32>
    %164 = vector.multi_reduction <add>, %163, %cst_152 [0] : vector<16x512xf32> to vector<512xf32>
    %165 = vector.shape_cast %164 : vector<512xf32> to vector<1x512xf32>
    %166 = vector.shape_cast %165 : vector<1x512xf32> to vector<1x1x512xf32>
    %c0_153 = arith.constant 0 : index
    %c9_154 = arith.constant 9 : index
    %c0_155 = arith.constant 0 : index
    %167 = vector.load %arg17[%c0_153, %c9_154, %c0_155] : memref<2x16x512xf32, #tpu.memory_space<vmem>>, vector<1x1x512xf32>
    %168 = arith.addf %167, %166 : vector<1x1x512xf32>
    %c0_156 = arith.constant 0 : index
    %c9_157 = arith.constant 9 : index
    %c0_158 = arith.constant 0 : index
    %169 = vector.load %arg17[%c0_156, %c9_157, %c0_158] : memref<2x16x512xf32, #tpu.memory_space<vmem>>, vector<1x1x512xf32>
    tpu.vector_store %arg17[%c0_156, %c9_157, %c0_158], %168 {strides = array<i32>} : memref<2x16x512xf32, #tpu.memory_space<vmem>>, vector<1x1x512xf32>,
    %170 = arith.mulf %6, %162 : vector<16x512xf32>
    %cst_159 = arith.constant dense<0.000000e+00> : vector<512xf32>
    %171 = vector.multi_reduction <add>, %170, %cst_159 [0] : vector<16x512xf32> to vector<512xf32>
    %172 = vector.shape_cast %171 : vector<512xf32> to vector<1x512xf32>
    %173 = vector.shape_cast %172 : vector<1x512xf32> to vector<1x1x512xf32>
    %c1_160 = arith.constant 1 : index
    %c9_161 = arith.constant 9 : index
    %c0_162 = arith.constant 0 : index
    %174 = vector.load %arg17[%c1_160, %c9_161, %c0_162] : memref<2x16x512xf32, #tpu.memory_space<vmem>>, vector<1x1x512xf32>
    %175 = arith.addf %174, %173 : vector<1x1x512xf32>
    %c1_163 = arith.constant 1 : index
    %c9_164 = arith.constant 9 : index
    %c0_165 = arith.constant 0 : index
    %176 = vector.load %arg17[%c1_163, %c9_164, %c0_165] : memref<2x16x512xf32, #tpu.memory_space<vmem>>, vector<1x1x512xf32>
    tpu.vector_store %arg17[%c1_163, %c9_164, %c0_165], %175 {strides = array<i32>} : memref<2x16x512xf32, #tpu.memory_space<vmem>>, vector<1x1x512xf32>,
    %c10 = arith.constant 10 : index
    %c0_166 = arith.constant 0 : index
    %c0_167 = arith.constant 0 : index
    %177 = vector.load %arg2[%c10, %c0_166, %c0_167] : memref<16x16x512xbf16, #tpu.memory_space<vmem>>, vector<1x16x512xbf16>
    %178 = vector.shape_cast %177 : vector<1x16x512xbf16> to vector<16x512xbf16>
    %179 = arith.extf %178 : vector<16x512xbf16> to vector<16x512xf32>
    %180 = arith.mulf %4, %179 : vector<16x512xf32>
    %cst_168 = arith.constant dense<0.000000e+00> : vector<512xf32>
    %181 = vector.multi_reduction <add>, %180, %cst_168 [0] : vector<16x512xf32> to vector<512xf32>
    %182 = vector.shape_cast %181 : vector<512xf32> to vector<1x512xf32>
    %183 = vector.shape_cast %182 : vector<1x512xf32> to vector<1x1x512xf32>
    %c0_169 = arith.constant 0 : index
    %c10_170 = arith.constant 10 : index
    %c0_171 = arith.constant 0 : index
    %184 = vector.load %arg17[%c0_169, %c10_170, %c0_171] : memref<2x16x512xf32, #tpu.memory_space<vmem>>, vector<1x1x512xf32>
    %185 = arith.addf %184, %183 : vector<1x1x512xf32>
    %c0_172 = arith.constant 0 : index
    %c10_173 = arith.constant 10 : index
    %c0_174 = arith.constant 0 : index
    %186 = vector.load %arg17[%c0_172, %c10_173, %c0_174] : memref<2x16x512xf32, #tpu.memory_space<vmem>>, vector<1x1x512xf32>
    tpu.vector_store %arg17[%c0_172, %c10_173, %c0_174], %185 {strides = array<i32>} : memref<2x16x512xf32, #tpu.memory_space<vmem>>, vector<1x1x512xf32>,
    %187 = arith.mulf %6, %179 : vector<16x512xf32>
    %cst_175 = arith.constant dense<0.000000e+00> : vector<512xf32>
    %188 = vector.multi_reduction <add>, %187, %cst_175 [0] : vector<16x512xf32> to vector<512xf32>
    %189 = vector.shape_cast %188 : vector<512xf32> to vector<1x512xf32>
    %190 = vector.shape_cast %189 : vector<1x512xf32> to vector<1x1x512xf32>
    %c1_176 = arith.constant 1 : index
    %c10_177 = arith.constant 10 : index
    %c0_178 = arith.constant 0 : index
    %191 = vector.load %arg17[%c1_176, %c10_177, %c0_178] : memref<2x16x512xf32, #tpu.memory_space<vmem>>, vector<1x1x512xf32>
    %192 = arith.addf %191, %190 : vector<1x1x512xf32>
    %c1_179 = arith.constant 1 : index
    %c10_180 = arith.constant 10 : index
    %c0_181 = arith.constant 0 : index
    %193 = vector.load %arg17[%c1_179, %c10_180, %c0_181] : memref<2x16x512xf32, #tpu.memory_space<vmem>>, vector<1x1x512xf32>
    tpu.vector_store %arg17[%c1_179, %c10_180, %c0_181], %192 {strides = array<i32>} : memref<2x16x512xf32, #tpu.memory_space<vmem>>, vector<1x1x512xf32>,
    %c11 = arith.constant 11 : index
    %c0_182 = arith.constant 0 : index
    %c0_183 = arith.constant 0 : index
    %194 = vector.load %arg2[%c11, %c0_182, %c0_183] : memref<16x16x512xbf16, #tpu.memory_space<vmem>>, vector<1x16x512xbf16>
    %195 = vector.shape_cast %194 : vector<1x16x512xbf16> to vector<16x512xbf16>
    %196 = arith.extf %195 : vector<16x512xbf16> to vector<16x512xf32>
    %197 = arith.mulf %4, %196 : vector<16x512xf32>
    %cst_184 = arith.constant dense<0.000000e+00> : vector<512xf32>
    %198 = vector.multi_reduction <add>, %197, %cst_184 [0] : vector<16x512xf32> to vector<512xf32>
    %199 = vector.shape_cast %198 : vector<512xf32> to vector<1x512xf32>
    %200 = vector.shape_cast %199 : vector<1x512xf32> to vector<1x1x512xf32>
    %c0_185 = arith.constant 0 : index
    %c11_186 = arith.constant 11 : index
    %c0_187 = arith.constant 0 : index
    %201 = vector.load %arg17[%c0_185, %c11_186, %c0_187] : memref<2x16x512xf32, #tpu.memory_space<vmem>>, vector<1x1x512xf32>
    %202 = arith.addf %201, %200 : vector<1x1x512xf32>
    %c0_188 = arith.constant 0 : index
    %c11_189 = arith.constant 11 : index
    %c0_190 = arith.constant 0 : index
    %203 = vector.load %arg17[%c0_188, %c11_189, %c0_190] : memref<2x16x512xf32, #tpu.memory_space<vmem>>, vector<1x1x512xf32>
    tpu.vector_store %arg17[%c0_188, %c11_189, %c0_190], %202 {strides = array<i32>} : memref<2x16x512xf32, #tpu.memory_space<vmem>>, vector<1x1x512xf32>,
    %204 = arith.mulf %6, %196 : vector<16x512xf32>
    %cst_191 = arith.constant dense<0.000000e+00> : vector<512xf32>
    %205 = vector.multi_reduction <add>, %204, %cst_191 [0] : vector<16x512xf32> to vector<512xf32>
    %206 = vector.shape_cast %205 : vector<512xf32> to vector<1x512xf32>
    %207 = vector.shape_cast %206 : vector<1x512xf32> to vector<1x1x512xf32>
    %c1_192 = arith.constant 1 : index
    %c11_193 = arith.constant 11 : index
    %c0_194 = arith.constant 0 : index
    %208 = vector.load %arg17[%c1_192, %c11_193, %c0_194] : memref<2x16x512xf32, #tpu.memory_space<vmem>>, vector<1x1x512xf32>
    %209 = arith.addf %208, %207 : vector<1x1x512xf32>
    %c1_195 = arith.constant 1 : index
    %c11_196 = arith.constant 11 : index
    %c0_197 = arith.constant 0 : index
    %210 = vector.load %arg17[%c1_195, %c11_196, %c0_197] : memref<2x16x512xf32, #tpu.memory_space<vmem>>, vector<1x1x512xf32>
    tpu.vector_store %arg17[%c1_195, %c11_196, %c0_197], %209 {strides = array<i32>} : memref<2x16x512xf32, #tpu.memory_space<vmem>>, vector<1x1x512xf32>,
    %c12 = arith.constant 12 : index
    %c0_198 = arith.constant 0 : index
    %c0_199 = arith.constant 0 : index
    %211 = vector.load %arg2[%c12, %c0_198, %c0_199] : memref<16x16x512xbf16, #tpu.memory_space<vmem>>, vector<1x16x512xbf16>
    %212 = vector.shape_cast %211 : vector<1x16x512xbf16> to vector<16x512xbf16>
    %213 = arith.extf %212 : vector<16x512xbf16> to vector<16x512xf32>
    %214 = arith.mulf %4, %213 : vector<16x512xf32>
    %cst_200 = arith.constant dense<0.000000e+00> : vector<512xf32>
    %215 = vector.multi_reduction <add>, %214, %cst_200 [0] : vector<16x512xf32> to vector<512xf32>
    %216 = vector.shape_cast %215 : vector<512xf32> to vector<1x512xf32>
    %217 = vector.shape_cast %216 : vector<1x512xf32> to vector<1x1x512xf32>
    %c0_201 = arith.constant 0 : index
    %c12_202 = arith.constant 12 : index
    %c0_203 = arith.constant 0 : index
    %218 = vector.load %arg17[%c0_201, %c12_202, %c0_203] : memref<2x16x512xf32, #tpu.memory_space<vmem>>, vector<1x1x512xf32>
    %219 = arith.addf %218, %217 : vector<1x1x512xf32>
    %c0_204 = arith.constant 0 : index
    %c12_205 = arith.constant 12 : index
    %c0_206 = arith.constant 0 : index
    %220 = vector.load %arg17[%c0_204, %c12_205, %c0_206] : memref<2x16x512xf32, #tpu.memory_space<vmem>>, vector<1x1x512xf32>
    tpu.vector_store %arg17[%c0_204, %c12_205, %c0_206], %219 {strides = array<i32>} : memref<2x16x512xf32, #tpu.memory_space<vmem>>, vector<1x1x512xf32>,
    %221 = arith.mulf %6, %213 : vector<16x512xf32>
    %cst_207 = arith.constant dense<0.000000e+00> : vector<512xf32>
    %222 = vector.multi_reduction <add>, %221, %cst_207 [0] : vector<16x512xf32> to vector<512xf32>
    %223 = vector.shape_cast %222 : vector<512xf32> to vector<1x512xf32>
    %224 = vector.shape_cast %223 : vector<1x512xf32> to vector<1x1x512xf32>
    %c1_208 = arith.constant 1 : index
    %c12_209 = arith.constant 12 : index
    %c0_210 = arith.constant 0 : index
    %225 = vector.load %arg17[%c1_208, %c12_209, %c0_210] : memref<2x16x512xf32, #tpu.memory_space<vmem>>, vector<1x1x512xf32>
    %226 = arith.addf %225, %224 : vector<1x1x512xf32>
    %c1_211 = arith.constant 1 : index
    %c12_212 = arith.constant 12 : index
    %c0_213 = arith.constant 0 : index
    %227 = vector.load %arg17[%c1_211, %c12_212, %c0_213] : memref<2x16x512xf32, #tpu.memory_space<vmem>>, vector<1x1x512xf32>
    tpu.vector_store %arg17[%c1_211, %c12_212, %c0_213], %226 {strides = array<i32>} : memref<2x16x512xf32, #tpu.memory_space<vmem>>, vector<1x1x512xf32>,
    %c13 = arith.constant 13 : index
    %c0_214 = arith.constant 0 : index
    %c0_215 = arith.constant 0 : index
    %228 = vector.load %arg2[%c13, %c0_214, %c0_215] : memref<16x16x512xbf16, #tpu.memory_space<vmem>>, vector<1x16x512xbf16>
    %229 = vector.shape_cast %228 : vector<1x16x512xbf16> to vector<16x512xbf16>
    %230 = arith.extf %229 : vector<16x512xbf16> to vector<16x512xf32>
    %231 = arith.mulf %4, %230 : vector<16x512xf32>
    %cst_216 = arith.constant dense<0.000000e+00> : vector<512xf32>
    %232 = vector.multi_reduction <add>, %231, %cst_216 [0] : vector<16x512xf32> to vector<512xf32>
    %233 = vector.shape_cast %232 : vector<512xf32> to vector<1x512xf32>
    %234 = vector.shape_cast %233 : vector<1x512xf32> to vector<1x1x512xf32>
    %c0_217 = arith.constant 0 : index
    %c13_218 = arith.constant 13 : index
    %c0_219 = arith.constant 0 : index
    %235 = vector.load %arg17[%c0_217, %c13_218, %c0_219] : memref<2x16x512xf32, #tpu.memory_space<vmem>>, vector<1x1x512xf32>
    %236 = arith.addf %235, %234 : vector<1x1x512xf32>
    %c0_220 = arith.constant 0 : index
    %c13_221 = arith.constant 13 : index
    %c0_222 = arith.constant 0 : index
    %237 = vector.load %arg17[%c0_220, %c13_221, %c0_222] : memref<2x16x512xf32, #tpu.memory_space<vmem>>, vector<1x1x512xf32>
    tpu.vector_store %arg17[%c0_220, %c13_221, %c0_222], %236 {strides = array<i32>} : memref<2x16x512xf32, #tpu.memory_space<vmem>>, vector<1x1x512xf32>,
    %238 = arith.mulf %6, %230 : vector<16x512xf32>
    %cst_223 = arith.constant dense<0.000000e+00> : vector<512xf32>
    %239 = vector.multi_reduction <add>, %238, %cst_223 [0] : vector<16x512xf32> to vector<512xf32>
    %240 = vector.shape_cast %239 : vector<512xf32> to vector<1x512xf32>
    %241 = vector.shape_cast %240 : vector<1x512xf32> to vector<1x1x512xf32>
    %c1_224 = arith.constant 1 : index
    %c13_225 = arith.constant 13 : index
    %c0_226 = arith.constant 0 : index
    %242 = vector.load %arg17[%c1_224, %c13_225, %c0_226] : memref<2x16x512xf32, #tpu.memory_space<vmem>>, vector<1x1x512xf32>
    %243 = arith.addf %242, %241 : vector<1x1x512xf32>
    %c1_227 = arith.constant 1 : index
    %c13_228 = arith.constant 13 : index
    %c0_229 = arith.constant 0 : index
    %244 = vector.load %arg17[%c1_227, %c13_228, %c0_229] : memref<2x16x512xf32, #tpu.memory_space<vmem>>, vector<1x1x512xf32>
    tpu.vector_store %arg17[%c1_227, %c13_228, %c0_229], %243 {strides = array<i32>} : memref<2x16x512xf32, #tpu.memory_space<vmem>>, vector<1x1x512xf32>,
    %c14 = arith.constant 14 : index
    %c0_230 = arith.constant 0 : index
    %c0_231 = arith.constant 0 : index
    %245 = vector.load %arg2[%c14, %c0_230, %c0_231] : memref<16x16x512xbf16, #tpu.memory_space<vmem>>, vector<1x16x512xbf16>
    %246 = vector.shape_cast %245 : vector<1x16x512xbf16> to vector<16x512xbf16>
    %247 = arith.extf %246 : vector<16x512xbf16> to vector<16x512xf32>
    %248 = arith.mulf %4, %247 : vector<16x512xf32>
    %cst_232 = arith.constant dense<0.000000e+00> : vector<512xf32>
    %249 = vector.multi_reduction <add>, %248, %cst_232 [0] : vector<16x512xf32> to vector<512xf32>
    %250 = vector.shape_cast %249 : vector<512xf32> to vector<1x512xf32>
    %251 = vector.shape_cast %250 : vector<1x512xf32> to vector<1x1x512xf32>
    %c0_233 = arith.constant 0 : index
    %c14_234 = arith.constant 14 : index
    %c0_235 = arith.constant 0 : index
    %252 = vector.load %arg17[%c0_233, %c14_234, %c0_235] : memref<2x16x512xf32, #tpu.memory_space<vmem>>, vector<1x1x512xf32>
    %253 = arith.addf %252, %251 : vector<1x1x512xf32>
    %c0_236 = arith.constant 0 : index
    %c14_237 = arith.constant 14 : index
    %c0_238 = arith.constant 0 : index
    %254 = vector.load %arg17[%c0_236, %c14_237, %c0_238] : memref<2x16x512xf32, #tpu.memory_space<vmem>>, vector<1x1x512xf32>
    tpu.vector_store %arg17[%c0_236, %c14_237, %c0_238], %253 {strides = array<i32>} : memref<2x16x512xf32, #tpu.memory_space<vmem>>, vector<1x1x512xf32>,
    %255 = arith.mulf %6, %247 : vector<16x512xf32>
    %cst_239 = arith.constant dense<0.000000e+00> : vector<512xf32>
    %256 = vector.multi_reduction <add>, %255, %cst_239 [0] : vector<16x512xf32> to vector<512xf32>
    %257 = vector.shape_cast %256 : vector<512xf32> to vector<1x512xf32>
    %258 = vector.shape_cast %257 : vector<1x512xf32> to vector<1x1x512xf32>
    %c1_240 = arith.constant 1 : index
    %c14_241 = arith.constant 14 : index
    %c0_242 = arith.constant 0 : index
    %259 = vector.load %arg17[%c1_240, %c14_241, %c0_242] : memref<2x16x512xf32, #tpu.memory_space<vmem>>, vector<1x1x512xf32>
    %260 = arith.addf %259, %258 : vector<1x1x512xf32>
    %c1_243 = arith.constant 1 : index
    %c14_244 = arith.constant 14 : index
    %c0_245 = arith.constant 0 : index
    %261 = vector.load %arg17[%c1_243, %c14_244, %c0_245] : memref<2x16x512xf32, #tpu.memory_space<vmem>>, vector<1x1x512xf32>
    tpu.vector_store %arg17[%c1_243, %c14_244, %c0_245], %260 {strides = array<i32>} : memref<2x16x512xf32, #tpu.memory_space<vmem>>, vector<1x1x512xf32>,
    %c15 = arith.constant 15 : index
    %c0_246 = arith.constant 0 : index
    %c0_247 = arith.constant 0 : index
    %262 = vector.load %arg2[%c15, %c0_246, %c0_247] : memref<16x16x512xbf16, #tpu.memory_space<vmem>>, vector<1x16x512xbf16>
    %263 = vector.shape_cast %262 : vector<1x16x512xbf16> to vector<16x512xbf16>
    %264 = arith.extf %263 : vector<16x512xbf16> to vector<16x512xf32>
    %265 = arith.mulf %4, %264 : vector<16x512xf32>
    %cst_248 = arith.constant dense<0.000000e+00> : vector<512xf32>
    %266 = vector.multi_reduction <add>, %265, %cst_248 [0] : vector<16x512xf32> to vector<512xf32>
    %267 = vector.shape_cast %266 : vector<512xf32> to vector<1x512xf32>
    %268 = vector.shape_cast %267 : vector<1x512xf32> to vector<1x1x512xf32>
    %c0_249 = arith.constant 0 : index
    %c15_250 = arith.constant 15 : index
    %c0_251 = arith.constant 0 : index
    %269 = vector.load %arg17[%c0_249, %c15_250, %c0_251] : memref<2x16x512xf32, #tpu.memory_space<vmem>>, vector<1x1x512xf32>
    %270 = arith.addf %269, %268 : vector<1x1x512xf32>
    %c0_252 = arith.constant 0 : index
    %c15_253 = arith.constant 15 : index
    %c0_254 = arith.constant 0 : index
    %271 = vector.load %arg17[%c0_252, %c15_253, %c0_254] : memref<2x16x512xf32, #tpu.memory_space<vmem>>, vector<1x1x512xf32>
    tpu.vector_store %arg17[%c0_252, %c15_253, %c0_254], %270 {strides = array<i32>} : memref<2x16x512xf32, #tpu.memory_space<vmem>>, vector<1x1x512xf32>,
    %272 = arith.mulf %6, %264 : vector<16x512xf32>
    %cst_255 = arith.constant dense<0.000000e+00> : vector<512xf32>
    %273 = vector.multi_reduction <add>, %272, %cst_255 [0] : vector<16x512xf32> to vector<512xf32>
    %274 = vector.shape_cast %273 : vector<512xf32> to vector<1x512xf32>
    %275 = vector.shape_cast %274 : vector<1x512xf32> to vector<1x1x512xf32>
    %c1_256 = arith.constant 1 : index
    %c15_257 = arith.constant 15 : index
    %c0_258 = arith.constant 0 : index
    %276 = vector.load %arg17[%c1_256, %c15_257, %c0_258] : memref<2x16x512xf32, #tpu.memory_space<vmem>>, vector<1x1x512xf32>
    %277 = arith.addf %276, %275 : vector<1x1x512xf32>
    %c1_259 = arith.constant 1 : index
    %c15_260 = arith.constant 15 : index
    %c0_261 = arith.constant 0 : index
    %278 = vector.load %arg17[%c1_259, %c15_260, %c0_261] : memref<2x16x512xf32, #tpu.memory_space<vmem>>, vector<1x1x512xf32>
    tpu.vector_store %arg17[%c1_259, %c15_260, %c0_261], %277 {strides = array<i32>} : memref<2x16x512xf32, #tpu.memory_space<vmem>>, vector<1x1x512xf32>,
    %c1_i32 = arith.constant 1 : i32
    %279 = arith.cmpi eq, %arg0, %c1_i32 : i32
    %280 = arith.extui %279 : i1 to i32
    %c0_i32_262 = arith.constant 0 : i32
    %281 = arith.cmpi ne, %280, %c0_i32_262 : i32
    scf.if %281 {
      %c0_263 = arith.constant 0 : index
      %c0_264 = arith.constant 0 : index
      %c0_265 = arith.constant 0 : index
      %282 = vector.load %arg17[%c0_263, %c0_264, %c0_265] : memref<2x16x512xf32, #tpu.memory_space<vmem>>, vector<2x16x512xf32>
      %cst_266 = arith.constant dense<0.000000e+00> : vector<2x16xf32>
      %283 = vector.multi_reduction <add>, %282, %cst_266 [2] : vector<2x16x512xf32> to vector<2x16xf32>
      %c0_267 = arith.constant 0 : index
      %c0_268 = arith.constant 0 : index
      %284 = vector.load %arg3[%c0_267, %c0_268] : memref<1x16xf32, #tpu.memory_space<vmem>>, vector<1x16xf32>
      %285 = vector.broadcast %284 : vector<1x16xf32> to vector<2x16xf32>
      %286 = arith.addf %283, %285 : vector<2x16xf32>
      %287 = vector.extract_strided_slice %286 {offsets = [0, 0], sizes = [2, 8], strides = [1, 1]} : vector<2x16xf32> to vector<2x8xf32>
      %288 = vector.extract_strided_slice %286 {offsets = [0, 8], sizes = [2, 8], strides = [1, 1]} : vector<2x16xf32> to vector<2x8xf32>
      %c0_269 = arith.constant 0 : index
      %c0_270 = arith.constant 0 : index
      %289 = vector.load %arg13[%c0_269, %c0_270] : memref<2x8xf32, #tpu.memory_space<vmem>>, vector<2x8xf32>
      tpu.vector_store %arg13[%c0_269, %c0_270], %287 {strides = array<i32>} : memref<2x8xf32, #tpu.memory_space<vmem>>, vector<2x8xf32>,
      %c0_271 = arith.constant 0 : index
      %c0_272 = arith.constant 0 : index
      %290 = vector.load %arg14[%c0_271, %c0_272] : memref<2x8xf32, #tpu.memory_space<vmem>>, vector<2x8xf32>
      tpu.vector_store %arg14[%c0_271, %c0_272], %288 {strides = array<i32>} : memref<2x8xf32, #tpu.memory_space<vmem>>, vector<2x8xf32>,
      %cst_273 = arith.constant 5.000000e-01 : f32
      %291 = vector.broadcast %cst_273 : f32 to vector<2x8xf32>
      %292 = arith.mulf %291, %288 : vector<2x8xf32>
      %293 = math.exp %292 : vector<2x8xf32>
      %c0_274 = arith.constant 0 : index
      %c0_275 = arith.constant 0 : index
      %294 = vector.load %arg4[%c0_274, %c0_275] : memref<2x8xf32, #tpu.memory_space<vmem>>, vector<2x8xf32>
      %295 = arith.mulf %293, %294 : vector<2x8xf32>
      %296 = arith.addf %287, %295 : vector<2x8xf32>
      %c0_276 = arith.constant 0 : index
      %c0_277 = arith.constant 0 : index
      %297 = vector.load %arg15[%c0_276, %c0_277] : memref<2x8xf32, #tpu.memory_space<vmem>>, vector<2x8xf32>
      tpu.vector_store %arg15[%c0_276, %c0_277], %296 {strides = array<i32>} : memref<2x8xf32, #tpu.memory_space<vmem>>, vector<2x8xf32>,
      %c0_278 = arith.constant 0 : index
      %c0_279 = arith.constant 0 : index
      %298 = vector.load %arg5[%c0_278, %c0_279] : memref<2x21xf32, #tpu.memory_space<vmem>>, vector<2x21xf32>
      %c0_280 = arith.constant 0 : index
      %c0_281 = arith.constant 0 : index
      %299 = vector.load %arg6[%c0_280, %c0_281] : memref<21x32xf32, #tpu.memory_space<vmem>>, vector<21x32xf32>
      %cst_282 = arith.constant dense<0.000000e+00> : vector<2x32xf32>
      %300 = tpu.matmul %298, %299, %cst_282 {dimension_numbers = #tpu.dot_dimension_numbers<[1], [0], [0], [1], [0, 0, 1, 1], [], []>} : vector<2x21xf32>, vector<21x32xf32>, vector<2x32xf32> -> vector<2x32xf32>
      %c0_283 = arith.constant 0 : index
      %c0_284 = arith.constant 0 : index
      %301 = vector.load %arg7[%c0_283, %c0_284] : memref<8x32xf32, #tpu.memory_space<vmem>>, vector<8x32xf32>
      %cst_285 = arith.constant dense<0.000000e+00> : vector<2x32xf32>
      %302 = tpu.matmul %296, %301, %cst_285 {dimension_numbers = #tpu.dot_dimension_numbers<[1], [0], [0], [1], [0, 0, 1, 1], [], []>} : vector<2x8xf32>, vector<8x32xf32>, vector<2x32xf32> -> vector<2x32xf32>
      %303 = arith.addf %300, %302 : vector<2x32xf32>
      %c0_286 = arith.constant 0 : index
      %c0_287 = arith.constant 0 : index
      %304 = vector.load %arg8[%c0_286, %c0_287] : memref<1x32xf32, #tpu.memory_space<vmem>>, vector<1x32xf32>
      %305 = vector.broadcast %304 : vector<1x32xf32> to vector<2x32xf32>
      %306 = arith.addf %303, %305 : vector<2x32xf32>
      %307 = math.tanh %306 : vector<2x32xf32>
      %c0_288 = arith.constant 0 : index
      %c0_289 = arith.constant 0 : index
      %308 = vector.load %arg9[%c0_288, %c0_289] : memref<32x16xf32, #tpu.memory_space<vmem>>, vector<32x16xf32>
      %cst_290 = arith.constant dense<0.000000e+00> : vector<2x16xf32>
      %309 = tpu.matmul %307, %308, %cst_290 {dimension_numbers = #tpu.dot_dimension_numbers<[1], [0], [0], [1], [0, 0, 1, 1], [], []>} : vector<2x32xf32>, vector<32x16xf32>, vector<2x16xf32> -> vector<2x16xf32>
      %c0_291 = arith.constant 0 : index
      %c0_292 = arith.constant 0 : index
      %310 = vector.load %arg10[%c0_291, %c0_292] : memref<1x16xf32, #tpu.memory_space<vmem>>, vector<1x16xf32>
      %311 = vector.broadcast %310 : vector<1x16xf32> to vector<2x16xf32>
      %312 = arith.addf %309, %311 : vector<2x16xf32>
      %313 = math.tanh %312 : vector<2x16xf32>
      %c0_293 = arith.constant 0 : index
      %c0_294 = arith.constant 0 : index
      %314 = vector.load %arg11[%c0_293, %c0_294] : memref<16x4xf32, #tpu.memory_space<vmem>>, vector<16x4xf32>
      %cst_295 = arith.constant dense<0.000000e+00> : vector<2x4xf32>
      %315 = tpu.matmul %313, %314, %cst_295 {dimension_numbers = #tpu.dot_dimension_numbers<[1], [0], [0], [1], [0, 0, 1, 1], [], []>} : vector<2x16xf32>, vector<16x4xf32>, vector<2x4xf32> -> vector<2x4xf32>
      %c0_296 = arith.constant 0 : index
      %c0_297 = arith.constant 0 : index
      %316 = vector.load %arg12[%c0_296, %c0_297] : memref<1x4xf32, #tpu.memory_space<vmem>>, vector<1x4xf32>
      %317 = vector.broadcast %316 : vector<1x4xf32> to vector<2x4xf32>
      %318 = arith.addf %315, %317 : vector<2x4xf32>
      %319 = math.tanh %318 : vector<2x4xf32>
      %c0_298 = arith.constant 0 : index
      %c0_299 = arith.constant 0 : index
      %320 = vector.load %arg16[%c0_298, %c0_299] : memref<2x4xf32, #tpu.memory_space<vmem>>, vector<2x4xf32>
      tpu.vector_store %arg16[%c0_298, %c0_299], %319 {strides = array<i32>} : memref<2x4xf32, #tpu.memory_space<vmem>>, vector<2x4xf32>,
    } else {
    }
    return
  }
  func.func @transform_0(%arg0: i32) -> (i32, i32, i32) {
    %c0_i32 = arith.constant 0 : i32
    %c0_i32_0 = arith.constant 0 : i32
    %c0_i32_1 = arith.constant 0 : i32
    return %c0_i32, %arg0, %c0_i32_0 : i32, i32, i32
  }
  func.func @transform_1(%arg0: i32) -> (i32, i32, i32) {
    %c0_i32 = arith.constant 0 : i32
    %c0_i32_0 = arith.constant 0 : i32
    %c0_i32_1 = arith.constant 0 : i32
    return %c0_i32, %arg0, %c0_i32_0 : i32, i32, i32
  }
  func.func @transform_2(%arg0: i32) -> (i32, i32) {
    %c0_i32 = arith.constant 0 : i32
    %c0_i32_0 = arith.constant 0 : i32
    %c0_i32_1 = arith.constant 0 : i32
    return %c0_i32, %c0_i32_0 : i32, i32
  }
  func.func @transform_3(%arg0: i32) -> (i32, i32) {
    %c0_i32 = arith.constant 0 : i32
    %c0_i32_0 = arith.constant 0 : i32
    %c0_i32_1 = arith.constant 0 : i32
    return %c0_i32, %c0_i32_0 : i32, i32
  }
  func.func @transform_4(%arg0: i32) -> (i32, i32) {
    %c0_i32 = arith.constant 0 : i32
    %c0_i32_0 = arith.constant 0 : i32
    %c0_i32_1 = arith.constant 0 : i32
    return %c0_i32, %c0_i32_0 : i32, i32
  }
  func.func @transform_5(%arg0: i32) -> (i32, i32) {
    %c0_i32 = arith.constant 0 : i32
    %c0_i32_0 = arith.constant 0 : i32
    %c0_i32_1 = arith.constant 0 : i32
    return %c0_i32, %c0_i32_0 : i32, i32
  }
  func.func @transform_6(%arg0: i32) -> (i32, i32) {
    %c0_i32 = arith.constant 0 : i32
    %c0_i32_0 = arith.constant 0 : i32
    %c0_i32_1 = arith.constant 0 : i32
    return %c0_i32, %c0_i32_0 : i32, i32
  }
  func.func @transform_7(%arg0: i32) -> (i32, i32) {
    %c0_i32 = arith.constant 0 : i32
    %c0_i32_0 = arith.constant 0 : i32
    %c0_i32_1 = arith.constant 0 : i32
    return %c0_i32, %c0_i32_0 : i32, i32
  }
  func.func @transform_8(%arg0: i32) -> (i32, i32) {
    %c0_i32 = arith.constant 0 : i32
    %c0_i32_0 = arith.constant 0 : i32
    %c0_i32_1 = arith.constant 0 : i32
    return %c0_i32, %c0_i32_0 : i32, i32
  }
  func.func @transform_9(%arg0: i32) -> (i32, i32) {
    %c0_i32 = arith.constant 0 : i32
    %c0_i32_0 = arith.constant 0 : i32
    %c0_i32_1 = arith.constant 0 : i32
    return %c0_i32, %c0_i32_0 : i32, i32
  }
  func.func @transform_10(%arg0: i32) -> (i32, i32) {
    %c0_i32 = arith.constant 0 : i32
    %c0_i32_0 = arith.constant 0 : i32
    %c0_i32_1 = arith.constant 0 : i32
    return %c0_i32, %c0_i32_0 : i32, i32
  }
  func.func @transform_11(%arg0: i32) -> (i32, i32) {
    %c0_i32 = arith.constant 0 : i32
    %c0_i32_0 = arith.constant 0 : i32
    %c0_i32_1 = arith.constant 0 : i32
    return %c0_i32, %c0_i32_0 : i32, i32
  }
  func.func @transform_12(%arg0: i32) -> (i32, i32) {
    %c0_i32 = arith.constant 0 : i32
    %c0_i32_0 = arith.constant 0 : i32
    %c0_i32_1 = arith.constant 0 : i32
    return %c0_i32, %c0_i32_0 : i32, i32
  }
  func.func @transform_13(%arg0: i32) -> (i32, i32) {
    %c0_i32 = arith.constant 0 : i32
    %c0_i32_0 = arith.constant 0 : i32
    %c0_i32_1 = arith.constant 0 : i32
    return %c0_i32, %c0_i32_0 : i32, i32
  }
  func.func @transform_14(%arg0: i32) -> (i32, i32) {
    %c0_i32 = arith.constant 0 : i32
    %c0_i32_0 = arith.constant 0 : i32
    %c0_i32_1 = arith.constant 0 : i32
    return %c0_i32, %c0_i32_0 : i32, i32
  }
  func.func @transform_15(%arg0: i32) -> (i32, i32) {
    %c0_i32 = arith.constant 0 : i32
    %c0_i32_0 = arith.constant 0 : i32
    %c0_i32_1 = arith.constant 0 : i32
    return %c0_i32, %c0_i32_0 : i32, i32
  }
}

</mosaic_0001>

<llo_original>
// kernel: collnet_forward.3
$region0: #{collnet_forward.3}
  #allocation0 [shape = 'u32[]', space=smem, size = 0x4, offset = 0x4, fixed_abs, tag = 'smem constant byte address 0x4 - core index']
  #allocation1 [shape = 'u32[144,128]{1,0:T(1,128)}', space=vmem, size = 0x12000, scoped, tag = 'internal scratch']
  %s0 = inlined_call_operand.vmem [shape: f32[2,8,512], index: 0, kind: input, shape index: {}]
  %s1 = inlined_call_operand.vmem [shape: bf16[8,32,512], index: 1, kind: input, shape index: {}]
  %s2 = inlined_call_operand.vmem [shape: bf16[1,32,512], index: 2, kind: input, shape index: {}]
  %s3 = inlined_call_operand.vmem [shape: f32[2,32,512], index: 3, kind: output, shape index: {}]
  %s4 = sld [smem:[#allocation0]]
  $region87: #{collnet_forward.3} parent=0
    _
  %s6 = ssub.s32 1, %s4
  %s7 = scalar_select 0, %s6, %s4
  $region1: #{collnet_forward.3} parent=0
    #allocation2 [shape = 'u8[262144]{0}', space=vmem, size = 0x40000, scoped, tag = 'input window, operand 1']
    #allocation3 [shape = 'u8[131072]{0}', space=vmem, size = 0x20000, scoped, tag = 'output window, operand 0']
    loop: start=0, step=1, limit=4
    $region2: #{collnet_forward.3} parent=1 // loop_pre_header
      _
    $region3: #{collnet_forward.3} parent=1 // loop_header
      %s9 = sphi 0, %s13
      %p10 = scmp.ge.s32.totalorder %s9, 4
      %s17 = sphi 0, %s17
      %s19 = sphi 0, %s17
      %s20 = sphi 0, %s19
      %s34 = sphi 0, %s20
      %s40 = sphi 0, %s42
      %s43 = sphi 0, %s40
      %s44 = sphi 0, %s43
      %s60 = sphi 0, %s44
      %s66 = sphi 0, %s68
      %s69 = sphi 0, %s66
      %s70 = sphi 0, %s69
      %s86 = sphi 0, %s70
      %s92 = sphi 0, %s94
      %s95 = sphi 0, %s92
      %s96 = sphi 0, %s95
      %s112 = sphi 0, %s96
    $region4: #{collnet_forward.3} parent=1 // loop_header_branch
      %12 = sbr.rel (%p10) target = $region8
    $region5: #{collnet_forward.3} parent=1 // loop_body
      %s14 = ssub.s32 %s9, 1
      %s15 = ssub.s32 %s9, 2
      %s16 = sadd.s32 %s9, 1
      %s18 = sadd.s32 %s17, 1
      %p21 = scmp.eq.s32.totalorder %s9, 1
      %p22 = scmp.ne.s32.totalorder %s17, %s19
      %p23 = scmp.eq.s32.totalorder %s9, 0
      %p24 = por %p22, %p23
      %p25 = scmp.ne.s32.totalorder %s17, %s19
      %p26 = scmp.eq.s32.totalorder %s14, 1
      %p27 = por %p25, %p26
      %p28 = scmp.ne.s32.totalorder %s19, %s20
      %p29 = scmp.eq.s32.totalorder %s14, 0
      %p30 = por %p28, %p29
      %p31 = scmp.ne.s32.totalorder %s19, %s20
      %p32 = scmp.eq.s32.totalorder %s15, 1
      %p33 = por %p31, %p32
      %p35 = scmp.ne.s32.totalorder %s20, %s34
      %p36 = scmp.eq.s32.totalorder %s15, 0
      %p37 = por %p35, %p36
      %s38 = ssub.s32 %s9, %s16
      %p39 = scmp.eq.s32.totalorder %s38, 0
      %s41 = sadd.s32 %s40, 1
      %s42 = scalar_select %p39, %s40, %s41
      %p45 = pneg %p39
      %p46 = scmp.eq.s32.totalorder %s9, 1
      %p47 = por %p45, %p46
      %p48 = scmp.ne.s32.totalorder %s40, %s43
      %p49 = scmp.eq.s32.totalorder %s9, 0
      %p50 = por %p48, %p49
      %p51 = scmp.ne.s32.totalorder %s40, %s43
      %p52 = scmp.eq.s32.totalorder %s14, 1
      %p53 = por %p51, %p52
      %p54 = scmp.ne.s32.totalorder %s43, %s44
      %p55 = scmp.eq.s32.totalorder %s14, 0
      %p56 = por %p54, %p55
      %p57 = scmp.ne.s32.totalorder %s43, %s44
      %p58 = scmp.eq.s32.totalorder %s15, 1
      %p59 = por %p57, %p58
      %p61 = scmp.ne.s32.totalorder %s44, %s60
      %p62 = scmp.eq.s32.totalorder %s15, 0
      %p63 = por %p61, %p62
      %s64 = ssub.s32 %s9, %s16
      %p65 = scmp.eq.s32.totalorder %s64, 0
      %s67 = sadd.s32 %s66, 1
      %s68 = scalar_select %p65, %s66, %s67
      %p71 = pneg %p65
      %p72 = scmp.eq.s32.totalorder %s9, 1
      %p73 = por %p71, %p72
      %p74 = scmp.ne.s32.totalorder %s66, %s69
      %p75 = scmp.eq.s32.totalorder %s9, 0
      %p76 = por %p74, %p75
      %p77 = scmp.ne.s32.totalorder %s66, %s69
      %p78 = scmp.eq.s32.totalorder %s14, 1
      %p79 = por %p77, %p78
      %p80 = scmp.ne.s32.totalorder %s69, %s70
      %p81 = scmp.eq.s32.totalorder %s14, 0
      %p82 = por %p80, %p81
      %p83 = scmp.ne.s32.totalorder %s69, %s70
      %p84 = scmp.eq.s32.totalorder %s15, 1
      %p85 = por %p83, %p84
      %p87 = scmp.ne.s32.totalorder %s70, %s86
      %p88 = scmp.eq.s32.totalorder %s15, 0
      %p89 = por %p87, %p88
      %s90 = ssub.s32 %s9, %s16
      %p91 = scmp.eq.s32.totalorder %s90, 0
      %s93 = sadd.s32 %s92, 1
      %s94 = scalar_select %p91, %s92, %s93
      %p97 = pneg %p91
      %p98 = scmp.eq.s32.totalorder %s9, 1
      %p99 = por %p97, %p98
      %p100 = scmp.ne.s32.totalorder %s92, %s95
      %p101 = scmp.eq.s32.totalorder %s9, 0
      %p102 = por %p100, %p101
      %p103 = scmp.ne.s32.totalorder %s92, %s95
      %p104 = scmp.eq.s32.totalorder %s14, 1
      %p105 = por %p103, %p104
      %p106 = scmp.ne.s32.totalorder %s95, %s96
      %p107 = scmp.eq.s32.totalorder %s14, 0
      %p108 = por %p106, %p107
      %p109 = scmp.ne.s32.totalorder %s95, %s96
      %p110 = scmp.eq.s32.totalorder %s15, 1
      %p111 = por %p109, %p110
      %p113 = scmp.ne.s32.totalorder %s96, %s112
      %p114 = scmp.eq.s32.totalorder %s15, 0
      %p115 = por %p113, %p114
      %p116 = scmp.le.s32.totalorder 1, %s9
      %p117 = scmp.lt.s32.totalorder %s9, 3
      %p118 = pnand %p116, %p117
      %p119 = pneg %p118
      // Predicated region
      $region9: #{collnet_forward.3} parent=5 // pred_check
        _
      $region10: #{collnet_forward.3} parent=5 // pred_check_branch
        %121 = sbr.rel (%p118) target = $region12
      $region11: #{collnet_forward.3} parent=5 // pred_region
        %s122 = ssub.s32 %s9, 1
        // Predicated region
        $region13: #{collnet_forward.3} parent=11 // pred_check
          %p123 = pneg %p30
        $region14: #{collnet_forward.3} parent=11 // pred_check_branch
          %125 = sbr.rel (%p123) target = $region16
        $region15: #{collnet_forward.3} parent=11 // pred_region
          _
        $region16: #{collnet_forward.3} parent=11 // pred_fallthru
          _
      $region12: #{collnet_forward.3} parent=5 // pred_fallthru
        _
      %p126 = scmp.lt.s32.totalorder %s9, 2
      // Predicated region
      $region17: #{collnet_forward.3} parent=5 // pred_check
        %p127 = pneg %p126
      $region18: #{collnet_forward.3} parent=5 // pred_check_branch
        %129 = sbr.rel (%p127) target = $region20
      $region19: #{collnet_forward.3} parent=5 // pred_region
        // Predicated region
        $region21: #{collnet_forward.3} parent=19 // pred_check
          %p130 = pneg %p50
        $region22: #{collnet_forward.3} parent=19 // pred_check_branch
          %132 = sbr.rel (%p130) target = $region24
        $region23: #{collnet_forward.3} parent=19 // pred_region
          %s133 = sand.u32 %s40, 1
          %s134 = sand.u32 %s40, 1
          %s135 = smul.addr %s134, 256
          %s136 = scalar_lea.vmem [#allocation2], %s135
          %s137 = smul.u32 2, %s9
          %s138 = smul.addr %s137, 4
          %s139 = smul.addr %s138, 4
          %s140 = scalar_lea.vmem %s1, %s139
          // Predicated region
          $region25: #{collnet_forward.3} parent=23 // pred_check
            _
          $region26: #{collnet_forward.3} parent=23 // pred_check_branch
            %142 = sbr.rel (0) target = $region28
          $region27: #{collnet_forward.3} parent=23 // pred_region
            // Predicated region
            $region29: #{collnet_forward.3} parent=27 // pred_check
              _
            $region30: #{collnet_forward.3} parent=27 // pred_check_branch
              %144 = sbr.rel (0) target = $region32
            $region31: #{collnet_forward.3} parent=27 // pred_region
              loop: start=0, step=1, limit=1
              $region33: #{collnet_forward.3} parent=31 // loop_pre_header
                _
              $region34: #{collnet_forward.3} parent=31 // loop_header
                %s146 = sphi 0, %s150
                %p147 = scmp.ge.s32.totalorder %s146, 1
                %s151 = sphi %s140, %s140
                %s152 = sphi %s136, %s136
              $region35: #{collnet_forward.3} parent=31 // loop_header_branch
                %149 = sbr.rel (%p147) target = $region39
              $region36: #{collnet_forward.3} parent=31 // loop_body
                %v153 = vld [vmem:[%s151] sm:$0xff]
                %154 = vst [vmem:[%s152] sm:$0xff] %v153
                %v155 = vld [vmem:[%s151 + $0x8] sm:$0xff]
                %156 = vst [vmem:[%s152 + $0x8] sm:$0xff] %v155
                %v157 = vld [vmem:[%s151 + $0x10] sm:$0xff]
                %158 = vst [vmem:[%s152 + $0x10] sm:$0xff] %v157
                %v159 = vld [vmem:[%s151 + $0x18] sm:$0xff]
                %160 = vst [vmem:[%s152 + $0x18] sm:$0xff] %v159
                %v161 = vld [vmem:[%s151 + $0x40] sm:$0xff]
                %162 = vst [vmem:[%s152 + $0x20] sm:$0xff] %v161
                %v163 = vld [vmem:[%s151 + $0x48] sm:$0xff]
                %164 = vst [vmem:[%s152 + $0x28] sm:$0xff] %v163
                %v165 = vld [vmem:[%s151 + $0x50] sm:$0xff]
                %166 = vst [vmem:[%s152 + $0x30] sm:$0xff] %v165
                %v167 = vld [vmem:[%s151 + $0x58] sm:$0xff]
                %168 = vst [vmem:[%s152 + $0x38] sm:$0xff] %v167
                %v169 = vld [vmem:[%s151 + $0x80] sm:$0xff]
                %170 = vst [vmem:[%s152 + $0x40] sm:$0xff] %v169
                %v171 = vld [vmem:[%s151 + $0x88] sm:$0xff]
                %172 = vst [vmem:[%s152 + $0x48] sm:$0xff] %v171
                %v173 = vld [vmem:[%s151 + $0x90] sm:$0xff]
                %174 = vst [vmem:[%s152 + $0x50] sm:$0xff] %v173
                %v175 = vld [vmem:[%s151 + $0x98] sm:$0xff]
                %176 = vst [vmem:[%s152 + $0x58] sm:$0xff] %v175
                %v177 = vld [vmem:[%s151 + $0xc0] sm:$0xff]
                %178 = vst [vmem:[%s152 + $0x60] sm:$0xff] %v177
                %v179 = vld [vmem:[%s151 + $0xc8] sm:$0xff]
                %180 = vst [vmem:[%s152 + $0x68] sm:$0xff] %v179
                %v181 = vld [vmem:[%s151 + $0xd0] sm:$0xff]
                %182 = vst [vmem:[%s152 + $0x70] sm:$0xff] %v181
                %v183 = vld [vmem:[%s151 + $0xd8] sm:$0xff]
                %184 = vst [vmem:[%s152 + $0x78] sm:$0xff] %v183
                %v185 = vld [vmem:[%s151 + $0x100] sm:$0xff]
                %186 = vst [vmem:[%s152 + $0x80] sm:$0xff] %v185
                %v187 = vld [vmem:[%s151 + $0x108] sm:$0xff]
                %188 = vst [vmem:[%s152 + $0x88] sm:$0xff] %v187
                %v189 = vld [vmem:[%s151 + $0x110] sm:$0xff]
                %190 = vst [vmem:[%s152 + $0x90] sm:$0xff] %v189
                %v191 = vld [vmem:[%s151 + $0x118] sm:$0xff]
                %192 = vst [vmem:[%s152 + $0x98] sm:$0xff] %v191
                %v193 = vld [vmem:[%s151 + $0x140] sm:$0xff]
                %194 = vst [vmem:[%s152 + $0xa0] sm:$0xff] %v193
                %v195 = vld [vmem:[%s151 + $0x148] sm:$0xff]
                %196 = vst [vmem:[%s152 + $0xa8] sm:$0xff] %v195
                %v197 = vld [vmem:[%s151 + $0x150] sm:$0xff]
                %198 = vst [vmem:[%s152 + $0xb0] sm:$0xff] %v197
                %v199 = vld [vmem:[%s151 + $0x158] sm:$0xff]
                %200 = vst [vmem:[%s152 + $0xb8] sm:$0xff] %v199
                %v201 = vld [vmem:[%s151 + $0x180] sm:$0xff]
                %202 = vst [vmem:[%s152 + $0xc0] sm:$0xff] %v201
                %v203 = vld [vmem:[%s151 + $0x188] sm:$0xff]
                %204 = vst [vmem:[%s152 + $0xc8] sm:$0xff] %v203
                %v205 = vld [vmem:[%s151 + $0x190] sm:$0xff]
                %206 = vst [vmem:[%s152 + $0xd0] sm:$0xff] %v205
                %v207 = vld [vmem:[%s151 + $0x198] sm:$0xff]
                %208 = vst [vmem:[%s152 + $0xd8] sm:$0xff] %v207
                %v209 = vld [vmem:[%s151 + $0x1c0] sm:$0xff]
                %210 = vst [vmem:[%s152 + $0xe0] sm:$0xff] %v209
                %v211 = vld [vmem:[%s151 + $0x1c8] sm:$0xff]
                %212 = vst [vmem:[%s152 + $0xe8] sm:$0xff] %v211
                %v213 = vld [vmem:[%s151 + $0x1d0] sm:$0xff]
                %214 = vst [vmem:[%s152 + $0xf0] sm:$0xff] %v213
                %v215 = vld [vmem:[%s151 + $0x1d8] sm:$0xff]
                %216 = vst [vmem:[%s152 + $0xf8] sm:$0xff] %v215
              $region37: #{collnet_forward.3} parent=31 // loop_footer
                %s150 = sadd.s32 1, %s146
              $region38: #{collnet_forward.3} parent=31 // loop_footer_branch
                %145 = sbr.rel target = $region34
              $region39: #{collnet_forward.3} parent=31 // loop_exit
                _
            $region32: #{collnet_forward.3} parent=27 // pred_fallthru
              _
            // Predicated region
            $region40: #{collnet_forward.3} parent=27 // pred_check
              _
            $region41: #{collnet_forward.3} parent=27 // pred_check_branch
              %218 = sbr.rel target = $region43
            $region42: #{collnet_forward.3} parent=27 // pred_region
              _
            $region43: #{collnet_forward.3} parent=27 // pred_fallthru
              _
          $region28: #{collnet_forward.3} parent=23 // pred_fallthru
            _
          %219 = vnop
        $region24: #{collnet_forward.3} parent=19 // pred_fallthru
          _
        // Predicated region
        $region44: #{collnet_forward.3} parent=19 // pred_check
          %p220 = pneg %p76
        $region45: #{collnet_forward.3} parent=19 // pred_check_branch
          %222 = sbr.rel (%p220) target = $region47
        $region46: #{collnet_forward.3} parent=19 // pred_region
          %s223 = smul.u32 2, %s9
          %p224 = scmp.lt.s32.totalorder %s223, 3
          %s225 = scalar_select %p224, %s223, 3
          %s226 = smul.addr %s225, 4
          %s227 = smul.addr %s226, 4
          %s228 = scalar_lea.vmem %s2, %s227
          %s229 = smul.u32 2, %s9
        $region47: #{collnet_forward.3} parent=19 // pred_fallthru
          _
      $region20: #{collnet_forward.3} parent=5 // pred_fallthru
        _
      %p230 = scmp.le.s32.totalorder 1, %s9
      %p231 = scmp.lt.s32.totalorder %s9, 3
      %p232 = pnand %p230, %p231
      %p233 = pneg %p232
      // Predicated region
      $region48: #{collnet_forward.3} parent=5 // pred_check
        _
      $region49: #{collnet_forward.3} parent=5 // pred_check_branch
        %235 = sbr.rel (%p232) target = $region51
      $region50: #{collnet_forward.3} parent=5 // pred_region
        %s236 = ssub.s32 %s9, 1
        %s237 = sand.u32 %s43, 1
        %s238 = sand.u32 %s43, 1
        %s239 = smul.addr %s238, 256
        %s240 = scalar_lea.vmem [#allocation2], %s239
        // Predicated region
        $region52: #{collnet_forward.3} parent=50 // pred_check
          %p241 = pneg %p56
        $region53: #{collnet_forward.3} parent=50 // pred_check_branch
          %243 = sbr.rel (%p241) target = $region55
        $region54: #{collnet_forward.3} parent=50 // pred_region
          _
        $region55: #{collnet_forward.3} parent=50 // pred_fallthru
          _
        %p244 = pneg %p30
        %p245 = pneg %p27
        %s246 = sand.u32 %s43, 1
        %s247 = sand.u32 %s43, 1
        %s248 = smul.addr %s247, 256
        %s249 = scalar_lea.vmem [#allocation2], %s248
        %p250 = pneg %p56
        %p251 = pneg %p53
        %s252 = smul.u32 2, %s14
        %p253 = scmp.lt.s32.totalorder %s252, 3
        %s254 = scalar_select %p253, %s252, 3
        %s255 = smul.addr %s254, 4
        %s256 = smul.addr %s255, 4
        %s257 = scalar_lea.vmem %s2, %s256
        %p258 = pneg %p82
        %p259 = pneg %p79
        %p260 = pneg %p108
        %p261 = pneg %p105
        %s262 = sand.u32 %s95, 1
        %s263 = sand.u32 %s95, 1
        %s264 = smul.addr %s263, 128
        %s265 = scalar_lea.vmem [#allocation3], %s264
        %s266 = smul.u32 2, %s14
        %s267 = smul.u32 2, %s14
        %p268 = scmp.lt.s32.totalorder %s267, 3
        %s269 = scalar_select %p268, %s267, 3
        %s270 = smul.addr %s269, 4
        %s271 = smul.addr %s270, 4
        %s272 = scalar_lea.vmem %s2, %s271
        %s273 = smul.u32 2, %s14
        %s274 = smul.u32 2, %s14
        %v275 = vld [vmem:[%s272] sm:$0xff]
        %v276 = vld [vmem:[%s272 + $0x8] sm:$0xff]
        %v277 = vld [vmem:[%s272 + $0x10] sm:$0xff]
        %v278 = vld [vmem:[%s272 + $0x18] sm:$0xff]
        %v279 = vunpack.c.l.bf16 %v275
        %v280 = vunpack.c.h.bf16 %v275
        %v281 = vunpack.c.l.bf16 %v276
        %v282 = vunpack.c.h.bf16 %v276
        %v283 = vunpack.c.l.bf16 %v277
        %v284 = vunpack.c.h.bf16 %v277
        %v285 = vunpack.c.l.bf16 %v278
        %v286 = vunpack.c.h.bf16 %v278
        %v287 = vld [vmem:[%s240] sm:$0xff]
        %v288 = vld [vmem:[%s240 + $0x8] sm:$0xff]
        %v289 = vld [vmem:[%s240 + $0x10] sm:$0xff]
        %v290 = vld [vmem:[%s240 + $0x18] sm:$0xff]
        %v291 = vunpack.c.l.bf16 %v287
        %v292 = vunpack.c.h.bf16 %v287
        %v293 = vunpack.c.l.bf16 %v288
        %v294 = vunpack.c.h.bf16 %v288
        %v295 = vunpack.c.l.bf16 %v289
        %v296 = vunpack.c.h.bf16 %v289
        %v297 = vunpack.c.l.bf16 %v290
        %v298 = vunpack.c.h.bf16 %v290
        %v299 = vld [vmem:[%s0] ss:$8 sm:$0xf]
        %v301 = vlaneseq
        %v302 = vshrl.u32 %v301, 7
        %v303 = vsub.s32 0, %v302
        %v304 = vrot.slane %v299, %v303
        %v305 = vlaneseq
        %v306 = vshrl.u32 %v305, 7
        %v307 = vsub.s32 1, %v306
        %v308 = vrot.slane %v299, %v307
        %v309 = vlaneseq
        %v310 = vshrl.u32 %v309, 7
        %v311 = vsub.s32 2, %v310
        %v312 = vrot.slane %v299, %v311
        %v313 = vlaneseq
        %v314 = vshrl.u32 %v313, 7
        %v315 = vsub.s32 3, %v314
        %v316 = vrot.slane %v299, %v315
        %v321 = vmul.f32 %v304, %v291
        %v322 = vmul.f32 %v308, %v292
        %v323 = vmul.f32 %v312, %v293
        %v324 = vmul.f32 %v316, %v294
        %v325 = vmul.f32 %v304, %v295
        %v326 = vmul.f32 %v308, %v296
        %v327 = vmul.f32 %v312, %v297
        %v328 = vmul.f32 %v316, %v298
        %v329 = vadd.f32 %v279, %v321
        %v330 = vadd.f32 %v280, %v322
        %v331 = vadd.f32 %v281, %v323
        %v332 = vadd.f32 %v282, %v324
        %v333 = vadd.f32 %v283, %v325
        %v334 = vadd.f32 %v284, %v326
        %v335 = vadd.f32 %v285, %v327
        %v336 = vadd.f32 %v286, %v328
        %s337 = scalar_lea.vmem %s0, 32
        %v338 = vld [vmem:[%s337] ss:$8 sm:$0xf]
        %v340 = vlaneseq
        %v341 = vshrl.u32 %v340, 7
        %v342 = vsub.s32 0, %v341
        %v343 = vrot.slane %v338, %v342
        %v344 = vlaneseq
        %v345 = vshrl.u32 %v344, 7
        %v346 = vsub.s32 1, %v345
        %v347 = vrot.slane %v338, %v346
        %v348 = vlaneseq
        %v349 = vshrl.u32 %v348, 7
        %v350 = vsub.s32 2, %v349
        %v351 = vrot.slane %v338, %v350
        %v352 = vlaneseq
        %v353 = vshrl.u32 %v352, 7
        %v354 = vsub.s32 3, %v353
        %v355 = vrot.slane %v338, %v354
        %v360 = vmul.f32 %v343, %v291
        %v361 = vmul.f32 %v347, %v292
        %v362 = vmul.f32 %v351, %v293
        %v363 = vmul.f32 %v355, %v294
        %v364 = vmul.f32 %v343, %v295
        %v365 = vmul.f32 %v347, %v296
        %v366 = vmul.f32 %v351, %v297
        %v367 = vmul.f32 %v355, %v298
        %v368 = vadd.f32 %v279, %v360
        %v369 = vadd.f32 %v280, %v361
        %v370 = vadd.f32 %v281, %v362
        %v371 = vadd.f32 %v282, %v363
        %v372 = vadd.f32 %v283, %v364
        %v373 = vadd.f32 %v284, %v365
        %v374 = vadd.f32 %v285, %v366
        %v375 = vadd.f32 %v286, %v367
        %s376 = scalar_lea.vmem %s240, 32 [#allocation2]
        %v377 = vld [vmem:[%s376] sm:$0xff]
        %v378 = vld [vmem:[%s376 + $0x8] sm:$0xff]
        %v379 = vld [vmem:[%s376 + $0x10] sm:$0xff]
        %v380 = vld [vmem:[%s376 + $0x18] sm:$0xff]
        %v381 = vunpack.c.l.bf16 %v377
        %v382 = vunpack.c.h.bf16 %v377
        %v383 = vunpack.c.l.bf16 %v378
        %v384 = vunpack.c.h.bf16 %v378
        %v385 = vunpack.c.l.bf16 %v379
        %v386 = vunpack.c.h.bf16 %v379
        %v387 = vunpack.c.l.bf16 %v380
        %v388 = vunpack.c.h.bf16 %v380
        %s389 = scalar_lea.vmem %s0, 1
        %v390 = vld [vmem:[%s389] ss:$8 sm:$0xf]
        %v392 = vlaneseq
        %v393 = vshrl.u32 %v392, 7
        %v394 = vsub.s32 0, %v393
        %v395 = vrot.slane %v390, %v394
        %v396 = vlaneseq
        %v397 = vshrl.u32 %v396, 7
        %v398 = vsub.s32 1, %v397
        %v399 = vrot.slane %v390, %v398
        %v400 = vlaneseq
        %v401 = vshrl.u32 %v400, 7
        %v402 = vsub.s32 2, %v401
        %v403 = vrot.slane %v390, %v402
        %v404 = vlaneseq
        %v405 = vshrl.u32 %v404, 7
        %v406 = vsub.s32 3, %v405
        %v407 = vrot.slane %v390, %v406
        %v412 = vmul.f32 %v395, %v381
        %v413 = vmul.f32 %v399, %v382
        %v414 = vmul.f32 %v403, %v383
        %v415 = vmul.f32 %v407, %v384
        %v416 = vmul.f32 %v395, %v385
        %v417 = vmul.f32 %v399, %v386
        %v418 = vmul.f32 %v403, %v387
        %v419 = vmul.f32 %v407, %v388
        %v420 = vadd.f32 %v329, %v412
        %v421 = vadd.f32 %v330, %v413
        %v422 = vadd.f32 %v331, %v414
        %v423 = vadd.f32 %v332, %v415
        %v424 = vadd.f32 %v333, %v416
        %v425 = vadd.f32 %v334, %v417
        %v426 = vadd.f32 %v335, %v418
        %v427 = vadd.f32 %v336, %v419
        %s428 = scalar_lea.vmem %s337, 1
        %v429 = vld [vmem:[%s428] ss:$8 sm:$0xf]
        %v431 = vlaneseq
        %v432 = vshrl.u32 %v431, 7
        %v433 = vsub.s32 0, %v432
        %v434 = vrot.slane %v429, %v433
        %v435 = vlaneseq
        %v436 = vshrl.u32 %v435, 7
        %v437 = vsub.s32 1, %v436
        %v438 = vrot.slane %v429, %v437
        %v439 = vlaneseq
        %v440 = vshrl.u32 %v439, 7
        %v441 = vsub.s32 2, %v440
        %v442 = vrot.slane %v429, %v441
        %v443 = vlaneseq
        %v444 = vshrl.u32 %v443, 7
        %v445 = vsub.s32 3, %v444
        %v446 = vrot.slane %v429, %v445
        %v451 = vmul.f32 %v434, %v381
        %v452 = vmul.f32 %v438, %v382
        %v453 = vmul.f32 %v442, %v383
        %v454 = vmul.f32 %v446, %v384
        %v455 = vmul.f32 %v434, %v385
        %v456 = vmul.f32 %v438, %v386
        %v457 = vmul.f32 %v442, %v387
        %v458 = vmul.f32 %v446, %v388
        %v459 = vadd.f32 %v368, %v451
        %v460 = vadd.f32 %v369, %v452
        %v461 = vadd.f32 %v370, %v453
        %v462 = vadd.f32 %v371, %v454
        %v463 = vadd.f32 %v372, %v455
        %v464 = vadd.f32 %v373, %v456
        %v465 = vadd.f32 %v374, %v457
        %v466 = vadd.f32 %v375, %v458
        %s467 = scalar_lea.vmem %s240, 64 [#allocation2]
        %v468 = vld [vmem:[%s467] sm:$0xff]
        %v469 = vld [vmem:[%s467 + $0x8] sm:$0xff]
        %v470 = vld [vmem:[%s467 + $0x10] sm:$0xff]
        %v471 = vld [vmem:[%s467 + $0x18] sm:$0xff]
        %v472 = vunpack.c.l.bf16 %v468
        %v473 = vunpack.c.h.bf16 %v468
        %v474 = vunpack.c.l.bf16 %v469
        %v475 = vunpack.c.h.bf16 %v469
        %v476 = vunpack.c.l.bf16 %v470
        %v477 = vunpack.c.h.bf16 %v470
        %v478 = vunpack.c.l.bf16 %v471
        %v479 = vunpack.c.h.bf16 %v471
        %s480 = scalar_lea.vmem %s0, 2
        %v481 = vld [vmem:[%s480] ss:$8 sm:$0xf]
        %v483 = vlaneseq
        %v484 = vshrl.u32 %v483, 7
        %v485 = vsub.s32 0, %v484
        %v486 = vrot.slane %v481, %v485
        %v487 = vlaneseq
        %v488 = vshrl.u32 %v487, 7
        %v489 = vsub.s32 1, %v488
        %v490 = vrot.slane %v481, %v489
        %v491 = vlaneseq
        %v492 = vshrl.u32 %v491, 7
        %v493 = vsub.s32 2, %v492
        %v494 = vrot.slane %v481, %v493
        %v495 = vlaneseq
        %v496 = vshrl.u32 %v495, 7
        %v497 = vsub.s32 3, %v496
        %v498 = vrot.slane %v481, %v497
        %v503 = vmul.f32 %v486, %v472
        %v504 = vmul.f32 %v490, %v473
        %v505 = vmul.f32 %v494, %v474
        %v506 = vmul.f32 %v498, %v475
        %v507 = vmul.f32 %v486, %v476
        %v508 = vmul.f32 %v490, %v477
        %v509 = vmul.f32 %v494, %v478
        %v510 = vmul.f32 %v498, %v479
        %v511 = vadd.f32 %v420, %v503
        %v512 = vadd.f32 %v421, %v504
        %v513 = vadd.f32 %v422, %v505
        %v514 = vadd.f32 %v423, %v506
        %v515 = vadd.f32 %v424, %v507
        %v516 = vadd.f32 %v425, %v508
        %v517 = vadd.f32 %v426, %v509
        %v518 = vadd.f32 %v427, %v510
        %s519 = scalar_lea.vmem %s337, 2
        %v520 = vld [vmem:[%s519] ss:$8 sm:$0xf]
        %v522 = vlaneseq
        %v523 = vshrl.u32 %v522, 7
        %v524 = vsub.s32 0, %v523
        %v525 = vrot.slane %v520, %v524
        %v526 = vlaneseq
        %v527 = vshrl.u32 %v526, 7
        %v528 = vsub.s32 1, %v527
        %v529 = vrot.slane %v520, %v528
        %v530 = vlaneseq
        %v531 = vshrl.u32 %v530, 7
        %v532 = vsub.s32 2, %v531
        %v533 = vrot.slane %v520, %v532
        %v534 = vlaneseq
        %v535 = vshrl.u32 %v534, 7
        %v536 = vsub.s32 3, %v535
        %v537 = vrot.slane %v520, %v536
        %v542 = vmul.f32 %v525, %v472
        %v543 = vmul.f32 %v529, %v473
        %v544 = vmul.f32 %v533, %v474
        %v545 = vmul.f32 %v537, %v475
        %v546 = vmul.f32 %v525, %v476
        %v547 = vmul.f32 %v529, %v477
        %v548 = vmul.f32 %v533, %v478
        %v549 = vmul.f32 %v537, %v479
        %v550 = vadd.f32 %v459, %v542
        %v551 = vadd.f32 %v460, %v543
        %v552 = vadd.f32 %v461, %v544
        %v553 = vadd.f32 %v462, %v545
        %v554 = vadd.f32 %v463, %v546
        %v555 = vadd.f32 %v464, %v547
        %v556 = vadd.f32 %v465, %v548
        %v557 = vadd.f32 %v466, %v549
        %s558 = scalar_lea.vmem %s240, 96 [#allocation2]
        %v559 = vld [vmem:[%s558] sm:$0xff]
        %v560 = vld [vmem:[%s558 + $0x8] sm:$0xff]
        %v561 = vld [vmem:[%s558 + $0x10] sm:$0xff]
        %v562 = vld [vmem:[%s558 + $0x18] sm:$0xff]
        %v563 = vunpack.c.l.bf16 %v559
        %v564 = vunpack.c.h.bf16 %v559
        %v565 = vunpack.c.l.bf16 %v560
        %v566 = vunpack.c.h.bf16 %v560
        %v567 = vunpack.c.l.bf16 %v561
        %v568 = vunpack.c.h.bf16 %v561
        %v569 = vunpack.c.l.bf16 %v562
        %v570 = vunpack.c.h.bf16 %v562
        %s571 = scalar_lea.vmem %s0, 3
        %v572 = vld [vmem:[%s571] ss:$8 sm:$0xf]
        %v574 = vlaneseq
        %v575 = vshrl.u32 %v574, 7
        %v576 = vsub.s32 0, %v575
        %v577 = vrot.slane %v572, %v576
        %v578 = vlaneseq
        %v579 = vshrl.u32 %v578, 7
        %v580 = vsub.s32 1, %v579
        %v581 = vrot.slane %v572, %v580
        %v582 = vlaneseq
        %v583 = vshrl.u32 %v582, 7
        %v584 = vsub.s32 2, %v583
        %v585 = vrot.slane %v572, %v584
        %v586 = vlaneseq
        %v587 = vshrl.u32 %v586, 7
        %v588 = vsub.s32 3, %v587
        %v589 = vrot.slane %v572, %v588
        %v594 = vmul.f32 %v577, %v563
        %v595 = vmul.f32 %v581, %v564
        %v596 = vmul.f32 %v585, %v565
        %v597 = vmul.f32 %v589, %v566
        %v598 = vmul.f32 %v577, %v567
        %v599 = vmul.f32 %v581, %v568
        %v600 = vmul.f32 %v585, %v569
        %v601 = vmul.f32 %v589, %v570
        %v602 = vadd.f32 %v511, %v594
        %v603 = vadd.f32 %v512, %v595
        %v604 = vadd.f32 %v513, %v596
        %v605 = vadd.f32 %v514, %v597
        %v606 = vadd.f32 %v515, %v598
        %v607 = vadd.f32 %v516, %v599
        %v608 = vadd.f32 %v517, %v600
        %v609 = vadd.f32 %v518, %v601
        %s610 = scalar_lea.vmem %s337, 3
        %v611 = vld [vmem:[%s610] ss:$8 sm:$0xf]
        %v613 = vlaneseq
        %v614 = vshrl.u32 %v613, 7
        %v615 = vsub.s32 0, %v614
        %v616 = vrot.slane %v611, %v615
        %v617 = vlaneseq
        %v618 = vshrl.u32 %v617, 7
        %v619 = vsub.s32 1, %v618
        %v620 = vrot.slane %v611, %v619
        %v621 = vlaneseq
        %v622 = vshrl.u32 %v621, 7
        %v623 = vsub.s32 2, %v622
        %v624 = vrot.slane %v611, %v623
        %v625 = vlaneseq
        %v626 = vshrl.u32 %v625, 7
        %v627 = vsub.s32 3, %v626
        %v628 = vrot.slane %v611, %v627
        %v633 = vmul.f32 %v616, %v563
        %v634 = vmul.f32 %v620, %v564
        %v635 = vmul.f32 %v624, %v565
        %v636 = vmul.f32 %v628, %v566
        %v637 = vmul.f32 %v616, %v567
        %v638 = vmul.f32 %v620, %v568
        %v639 = vmul.f32 %v624, %v569
        %v640 = vmul.f32 %v628, %v570
        %v641 = vadd.f32 %v550, %v633
        %v642 = vadd.f32 %v551, %v634
        %v643 = vadd.f32 %v552, %v635
        %v644 = vadd.f32 %v553, %v636
        %v645 = vadd.f32 %v554, %v637
        %v646 = vadd.f32 %v555, %v638
        %v647 = vadd.f32 %v556, %v639
        %v648 = vadd.f32 %v557, %v640
        %s649 = scalar_lea.vmem %s240, 128 [#allocation2]
        %v650 = vld [vmem:[%s649] sm:$0xff]
        %v651 = vld [vmem:[%s649 + $0x8] sm:$0xff]
        %v652 = vld [vmem:[%s649 + $0x10] sm:$0xff]
        %v653 = vld [vmem:[%s649 + $0x18] sm:$0xff]
        %v654 = vunpack.c.l.bf16 %v650
        %v655 = vunpack.c.h.bf16 %v650
        %v656 = vunpack.c.l.bf16 %v651
        %v657 = vunpack.c.h.bf16 %v651
        %v658 = vunpack.c.l.bf16 %v652
        %v659 = vunpack.c.h.bf16 %v652
        %v660 = vunpack.c.l.bf16 %v653
        %v661 = vunpack.c.h.bf16 %v653
        %s662 = scalar_lea.vmem %s0, 4
        %v663 = vld [vmem:[%s662] ss:$8 sm:$0xf]
        %v665 = vlaneseq
        %v666 = vshrl.u32 %v665, 7
        %v667 = vsub.s32 0, %v666
        %v668 = vrot.slane %v663, %v667
        %v669 = vlaneseq
        %v670 = vshrl.u32 %v669, 7
        %v671 = vsub.s32 1, %v670
        %v672 = vrot.slane %v663, %v671
        %v673 = vlaneseq
        %v674 = vshrl.u32 %v673, 7
        %v675 = vsub.s32 2, %v674
        %v676 = vrot.slane %v663, %v675
        %v677 = vlaneseq
        %v678 = vshrl.u32 %v677, 7
        %v679 = vsub.s32 3, %v678
        %v680 = vrot.slane %v663, %v679
        %v685 = vmul.f32 %v668, %v654
        %v686 = vmul.f32 %v672, %v655
        %v687 = vmul.f32 %v676, %v656
        %v688 = vmul.f32 %v680, %v657
        %v689 = vmul.f32 %v668, %v658
        %v690 = vmul.f32 %v672, %v659
        %v691 = vmul.f32 %v676, %v660
        %v692 = vmul.f32 %v680, %v661
        %v693 = vadd.f32 %v602, %v685
        %v694 = vadd.f32 %v603, %v686
        %v695 = vadd.f32 %v604, %v687
        %v696 = vadd.f32 %v605, %v688
        %v697 = vadd.f32 %v606, %v689
        %v698 = vadd.f32 %v607, %v690
        %v699 = vadd.f32 %v608, %v691
        %v700 = vadd.f32 %v609, %v692
        %s701 = scalar_lea.vmem %s337, 4
        %v702 = vld [vmem:[%s701] ss:$8 sm:$0xf]
        %v704 = vlaneseq
        %v705 = vshrl.u32 %v704, 7
        %v706 = vsub.s32 0, %v705
        %v707 = vrot.slane %v702, %v706
        %v708 = vlaneseq
        %v709 = vshrl.u32 %v708, 7
        %v710 = vsub.s32 1, %v709
        %v711 = vrot.slane %v702, %v710
        %v712 = vlaneseq
        %v713 = vshrl.u32 %v712, 7
        %v714 = vsub.s32 2, %v713
        %v715 = vrot.slane %v702, %v714
        %v716 = vlaneseq
        %v717 = vshrl.u32 %v716, 7
        %v718 = vsub.s32 3, %v717
        %v719 = vrot.slane %v702, %v718
        %v724 = vmul.f32 %v707, %v654
        %v725 = vmul.f32 %v711, %v655
        %v726 = vmul.f32 %v715, %v656
        %v727 = vmul.f32 %v719, %v657
        %v728 = vmul.f32 %v707, %v658
        %v729 = vmul.f32 %v711, %v659
        %v730 = vmul.f32 %v715, %v660
        %v731 = vmul.f32 %v719, %v661
        %v732 = vadd.f32 %v641, %v724
        %v733 = vadd.f32 %v642, %v725
        %v734 = vadd.f32 %v643, %v726
        %v735 = vadd.f32 %v644, %v727
        %v736 = vadd.f32 %v645, %v728
        %v737 = vadd.f32 %v646, %v729
        %v738 = vadd.f32 %v647, %v730
        %v739 = vadd.f32 %v648, %v731
        %s740 = scalar_lea.vmem %s240, 160 [#allocation2]
        %v741 = vld [vmem:[%s740] sm:$0xff]
        %v742 = vld [vmem:[%s740 + $0x8] sm:$0xff]
        %v743 = vld [vmem:[%s740 + $0x10] sm:$0xff]
        %v744 = vld [vmem:[%s740 + $0x18] sm:$0xff]
        %v745 = vunpack.c.l.bf16 %v741
        %v746 = vunpack.c.h.bf16 %v741
        %v747 = vunpack.c.l.bf16 %v742
        %v748 = vunpack.c.h.bf16 %v742
        %v749 = vunpack.c.l.bf16 %v743
        %v750 = vunpack.c.h.bf16 %v743
        %v751 = vunpack.c.l.bf16 %v744
        %v752 = vunpack.c.h.bf16 %v744
        %s753 = scalar_lea.vmem %s0, 5
        %v754 = vld [vmem:[%s753] ss:$8 sm:$0xf]
        %v756 = vlaneseq
        %v757 = vshrl.u32 %v756, 7
        %v758 = vsub.s32 0, %v757
        %v759 = vrot.slane %v754, %v758
        %v760 = vlaneseq
        %v761 = vshrl.u32 %v760, 7
        %v762 = vsub.s32 1, %v761
        %v763 = vrot.slane %v754, %v762
        %v764 = vlaneseq
        %v765 = vshrl.u32 %v764, 7
        %v766 = vsub.s32 2, %v765
        %v767 = vrot.slane %v754, %v766
        %v768 = vlaneseq
        %v769 = vshrl.u32 %v768, 7
        %v770 = vsub.s32 3, %v769
        %v771 = vrot.slane %v754, %v770
        %v776 = vmul.f32 %v759, %v745
        %v777 = vmul.f32 %v763, %v746
        %v778 = vmul.f32 %v767, %v747
        %v779 = vmul.f32 %v771, %v748
        %v780 = vmul.f32 %v759, %v749
        %v781 = vmul.f32 %v763, %v750
        %v782 = vmul.f32 %v767, %v751
        %v783 = vmul.f32 %v771, %v752
        %v784 = vadd.f32 %v693, %v776
        %v785 = vadd.f32 %v694, %v777
        %v786 = vadd.f32 %v695, %v778
        %v787 = vadd.f32 %v696, %v779
        %v788 = vadd.f32 %v697, %v780
        %v789 = vadd.f32 %v698, %v781
        %v790 = vadd.f32 %v699, %v782
        %v791 = vadd.f32 %v700, %v783
        %s792 = scalar_lea.vmem %s337, 5
        %v793 = vld [vmem:[%s792] ss:$8 sm:$0xf]
        %v795 = vlaneseq
        %v796 = vshrl.u32 %v795, 7
        %v797 = vsub.s32 0, %v796
        %v798 = vrot.slane %v793, %v797
        %v799 = vlaneseq
        %v800 = vshrl.u32 %v799, 7
        %v801 = vsub.s32 1, %v800
        %v802 = vrot.slane %v793, %v801
        %v803 = vlaneseq
        %v804 = vshrl.u32 %v803, 7
        %v805 = vsub.s32 2, %v804
        %v806 = vrot.slane %v793, %v805
        %v807 = vlaneseq
        %v808 = vshrl.u32 %v807, 7
        %v809 = vsub.s32 3, %v808
        %v810 = vrot.slane %v793, %v809
        %v815 = vmul.f32 %v798, %v745
        %v816 = vmul.f32 %v802, %v746
        %v817 = vmul.f32 %v806, %v747
        %v818 = vmul.f32 %v810, %v748
        %v819 = vmul.f32 %v798, %v749
        %v820 = vmul.f32 %v802, %v750
        %v821 = vmul.f32 %v806, %v751
        %v822 = vmul.f32 %v810, %v752
        %v823 = vadd.f32 %v732, %v815
        %v824 = vadd.f32 %v733, %v816
        %v825 = vadd.f32 %v734, %v817
        %v826 = vadd.f32 %v735, %v818
        %v827 = vadd.f32 %v736, %v819
        %v828 = vadd.f32 %v737, %v820
        %v829 = vadd.f32 %v738, %v821
        %v830 = vadd.f32 %v739, %v822
        %s831 = scalar_lea.vmem %s240, 192 [#allocation2]
        %v832 = vld [vmem:[%s831] sm:$0xff]
        %v833 = vld [vmem:[%s831 + $0x8] sm:$0xff]
        %v834 = vld [vmem:[%s831 + $0x10] sm:$0xff]
        %v835 = vld [vmem:[%s831 + $0x18] sm:$0xff]
        %v836 = vunpack.c.l.bf16 %v832
        %v837 = vunpack.c.h.bf16 %v832
        %v838 = vunpack.c.l.bf16 %v833
        %v839 = vunpack.c.h.bf16 %v833
        %v840 = vunpack.c.l.bf16 %v834
        %v841 = vunpack.c.h.bf16 %v834
        %v842 = vunpack.c.l.bf16 %v835
        %v843 = vunpack.c.h.bf16 %v835
        %s844 = scalar_lea.vmem %s0, 6
        %v845 = vld [vmem:[%s844] ss:$8 sm:$0xf]
        %v847 = vlaneseq
        %v848 = vshrl.u32 %v847, 7
        %v849 = vsub.s32 0, %v848
        %v850 = vrot.slane %v845, %v849
        %v851 = vlaneseq
        %v852 = vshrl.u32 %v851, 7
        %v853 = vsub.s32 1, %v852
        %v854 = vrot.slane %v845, %v853
        %v855 = vlaneseq
        %v856 = vshrl.u32 %v855, 7
        %v857 = vsub.s32 2, %v856
        %v858 = vrot.slane %v845, %v857
        %v859 = vlaneseq
        %v860 = vshrl.u32 %v859, 7
        %v861 = vsub.s32 3, %v860
        %v862 = vrot.slane %v845, %v861
        %v867 = vmul.f32 %v850, %v836
        %v868 = vmul.f32 %v854, %v837
        %v869 = vmul.f32 %v858, %v838
        %v870 = vmul.f32 %v862, %v839
        %v871 = vmul.f32 %v850, %v840
        %v872 = vmul.f32 %v854, %v841
        %v873 = vmul.f32 %v858, %v842
        %v874 = vmul.f32 %v862, %v843
        %v875 = vadd.f32 %v784, %v867
        %v876 = vadd.f32 %v785, %v868
        %v877 = vadd.f32 %v786, %v869
        %v878 = vadd.f32 %v787, %v870
        %v879 = vadd.f32 %v788, %v871
        %v880 = vadd.f32 %v789, %v872
        %v881 = vadd.f32 %v790, %v873
        %v882 = vadd.f32 %v791, %v874
        %s883 = scalar_lea.vmem %s337, 6
        %v884 = vld [vmem:[%s883] ss:$8 sm:$0xf]
        %v886 = vlaneseq
        %v887 = vshrl.u32 %v886, 7
        %v888 = vsub.s32 0, %v887
        %v889 = vrot.slane %v884, %v888
        %v890 = vlaneseq
        %v891 = vshrl.u32 %v890, 7
        %v892 = vsub.s32 1, %v891
        %v893 = vrot.slane %v884, %v892
        %v894 = vlaneseq
        %v895 = vshrl.u32 %v894, 7
        %v896 = vsub.s32 2, %v895
        %v897 = vrot.slane %v884, %v896
        %v898 = vlaneseq
        %v899 = vshrl.u32 %v898, 7
        %v900 = vsub.s32 3, %v899
        %v901 = vrot.slane %v884, %v900
        %v906 = vmul.f32 %v889, %v836
        %v907 = vmul.f32 %v893, %v837
        %v908 = vmul.f32 %v897, %v838
        %v909 = vmul.f32 %v901, %v839
        %v910 = vmul.f32 %v889, %v840
        %v911 = vmul.f32 %v893, %v841
        %v912 = vmul.f32 %v897, %v842
        %v913 = vmul.f32 %v901, %v843
        %v914 = vadd.f32 %v823, %v906
        %v915 = vadd.f32 %v824, %v907
        %v916 = vadd.f32 %v825, %v908
        %v917 = vadd.f32 %v826, %v909
        %v918 = vadd.f32 %v827, %v910
        %v919 = vadd.f32 %v828, %v911
        %v920 = vadd.f32 %v829, %v912
        %v921 = vadd.f32 %v830, %v913
        %s922 = scalar_lea.vmem %s240, 224 [#allocation2]
        %v923 = vld [vmem:[%s922] sm:$0xff]
        %v924 = vld [vmem:[%s922 + $0x8] sm:$0xff]
        %v925 = vld [vmem:[%s922 + $0x10] sm:$0xff]
        %v926 = vld [vmem:[%s922 + $0x18] sm:$0xff]
        %v927 = vunpack.c.l.bf16 %v923
        %v928 = vunpack.c.h.bf16 %v923
        %v929 = vunpack.c.l.bf16 %v924
        %v930 = vunpack.c.h.bf16 %v924
        %v931 = vunpack.c.l.bf16 %v925
        %v932 = vunpack.c.h.bf16 %v925
        %v933 = vunpack.c.l.bf16 %v926
        %v934 = vunpack.c.h.bf16 %v926
        %s935 = scalar_lea.vmem %s0, 7
        %v936 = vld [vmem:[%s935] ss:$8 sm:$0xf]
        %v938 = vlaneseq
        %v939 = vshrl.u32 %v938, 7
        %v940 = vsub.s32 0, %v939
        %v941 = vrot.slane %v936, %v940
        %v942 = vlaneseq
        %v943 = vshrl.u32 %v942, 7
        %v944 = vsub.s32 1, %v943
        %v945 = vrot.slane %v936, %v944
        %v946 = vlaneseq
        %v947 = vshrl.u32 %v946, 7
        %v948 = vsub.s32 2, %v947
        %v949 = vrot.slane %v936, %v948
        %v950 = vlaneseq
        %v951 = vshrl.u32 %v950, 7
        %v952 = vsub.s32 3, %v951
        %v953 = vrot.slane %v936, %v952
        %v958 = vmul.f32 %v941, %v927
        %v959 = vmul.f32 %v945, %v928
        %v960 = vmul.f32 %v949, %v929
        %v961 = vmul.f32 %v953, %v930
        %v962 = vmul.f32 %v941, %v931
        %v963 = vmul.f32 %v945, %v932
        %v964 = vmul.f32 %v949, %v933
        %v965 = vmul.f32 %v953, %v934
        %v966 = vadd.f32 %v875, %v958
        %v967 = vadd.f32 %v876, %v959
        %v968 = vadd.f32 %v877, %v960
        %v969 = vadd.f32 %v878, %v961
        %v970 = vadd.f32 %v879, %v962
        %v971 = vadd.f32 %v880, %v963
        %v972 = vadd.f32 %v881, %v964
        %v973 = vadd.f32 %v882, %v965
        %s974 = scalar_lea.vmem %s337, 7
        %v975 = vld [vmem:[%s974] ss:$8 sm:$0xf]
        %v977 = vlaneseq
        %v978 = vshrl.u32 %v977, 7
        %v979 = vsub.s32 0, %v978
        %v980 = vrot.slane %v975, %v979
        %v981 = vlaneseq
        %v982 = vshrl.u32 %v981, 7
        %v983 = vsub.s32 1, %v982
        %v984 = vrot.slane %v975, %v983
        %v985 = vlaneseq
        %v986 = vshrl.u32 %v985, 7
        %v987 = vsub.s32 2, %v986
        %v988 = vrot.slane %v975, %v987
        %v989 = vlaneseq
        %v990 = vshrl.u32 %v989, 7
        %v991 = vsub.s32 3, %v990
        %v992 = vrot.slane %v975, %v991
        %v997 = vmul.f32 %v980, %v927
        %v998 = vmul.f32 %v984, %v928
        %v999 = vmul.f32 %v988, %v929
        %v1000 = vmul.f32 %v992, %v930
        %v1001 = vmul.f32 %v980, %v931
        %v1002 = vmul.f32 %v984, %v932
        %v1003 = vmul.f32 %v988, %v933
        %v1004 = vmul.f32 %v992, %v934
        %v1005 = vadd.f32 %v914, %v997
        %v1006 = vadd.f32 %v915, %v998
        %v1007 = vadd.f32 %v916, %v999
        %v1008 = vadd.f32 %v917, %v1000
        %v1009 = vadd.f32 %v918, %v1001
        %v1010 = vadd.f32 %v919, %v1002
        %v1011 = vadd.f32 %v920, %v1003
        %v1012 = vadd.f32 %v921, %v1004
        %1013 = vst [vmem:[%s265] sm:$0xff] %v966
        %1014 = vst [vmem:[%s265 + $0x8] sm:$0xff] %v967
        %1015 = vst [vmem:[%s265 + $0x10] sm:$0xff] %v968
        %1016 = vst [vmem:[%s265 + $0x18] sm:$0xff] %v969
        %1017 = vst [vmem:[%s265 + $0x20] sm:$0xff] %v970
        %1018 = vst [vmem:[%s265 + $0x28] sm:$0xff] %v971
        %1019 = vst [vmem:[%s265 + $0x30] sm:$0xff] %v972
        %1020 = vst [vmem:[%s265 + $0x38] sm:$0xff] %v973
        %s1021 = scalar_lea.vmem %s265, 64 [#allocation3]
        %1022 = vst [vmem:[%s1021] sm:$0xff] %v1005
        %1023 = vst [vmem:[%s1021 + $0x8] sm:$0xff] %v1006
        %1024 = vst [vmem:[%s1021 + $0x10] sm:$0xff] %v1007
        %1025 = vst [vmem:[%s1021 + $0x18] sm:$0xff] %v1008
        %1026 = vst [vmem:[%s1021 + $0x20] sm:$0xff] %v1009
        %1027 = vst [vmem:[%s1021 + $0x28] sm:$0xff] %v1010
        %1028 = vst [vmem:[%s1021 + $0x30] sm:$0xff] %v1011
        %1029 = vst [vmem:[%s1021 + $0x38] sm:$0xff] %v1012
        %s1030 = sand.u32 %s95, 1
        %s1031 = sand.u32 %s95, 1
        %s1032 = smul.addr %s1031, 128
        %s1033 = scalar_lea.vmem [#allocation3], %s1032
        // Predicated region
        $region56: #{collnet_forward.3} parent=50 // pred_check
          %p1034 = pneg %p105
        $region57: #{collnet_forward.3} parent=50 // pred_check_branch
          %1036 = sbr.rel (%p1034) target = $region59
        $region58: #{collnet_forward.3} parent=50 // pred_region
          %s1037 = smul.u32 2, %s14
          %s1038 = smul.addr %s1037, 4
          %s1039 = smul.addr %s1038, 8
          %s1040 = scalar_lea.vmem %s3, %s1039
          // Predicated region
          $region60: #{collnet_forward.3} parent=58 // pred_check
            _
          $region61: #{collnet_forward.3} parent=58 // pred_check_branch
            %1042 = sbr.rel (0) target = $region63
          $region62: #{collnet_forward.3} parent=58 // pred_region
            // Predicated region
            $region64: #{collnet_forward.3} parent=62 // pred_check
              _
            $region65: #{collnet_forward.3} parent=62 // pred_check_branch
              %1044 = sbr.rel (0) target = $region67
            $region66: #{collnet_forward.3} parent=62 // pred_region
              loop: start=0, step=1, limit=1
              $region68: #{collnet_forward.3} parent=66 // loop_pre_header
                _
              $region69: #{collnet_forward.3} parent=66 // loop_header
                %s1046 = sphi 0, %s1050
                %p1047 = scmp.ge.s32.totalorder %s1046, 1
                %s1051 = sphi %s1033, %s1033
                %s1052 = sphi %s1040, %s1040
              $region70: #{collnet_forward.3} parent=66 // loop_header_branch
                %1049 = sbr.rel (%p1047) target = $region74
              $region71: #{collnet_forward.3} parent=66 // loop_body
                %v1053 = vld [vmem:[%s1051] sm:$0xff]
                %1054 = vst [vmem:[%s1052] sm:$0xff] %v1053
                %v1055 = vld [vmem:[%s1051 + $0x8] sm:$0xff]
                %1056 = vst [vmem:[%s1052 + $0x8] sm:$0xff] %v1055
                %v1057 = vld [vmem:[%s1051 + $0x10] sm:$0xff]
                %1058 = vst [vmem:[%s1052 + $0x10] sm:$0xff] %v1057
                %v1059 = vld [vmem:[%s1051 + $0x18] sm:$0xff]
                %1060 = vst [vmem:[%s1052 + $0x18] sm:$0xff] %v1059
                %v1061 = vld [vmem:[%s1051 + $0x20] sm:$0xff]
                %1062 = vst [vmem:[%s1052 + $0x20] sm:$0xff] %v1061
                %v1063 = vld [vmem:[%s1051 + $0x28] sm:$0xff]
                %1064 = vst [vmem:[%s1052 + $0x28] sm:$0xff] %v1063
                %v1065 = vld [vmem:[%s1051 + $0x30] sm:$0xff]
                %1066 = vst [vmem:[%s1052 + $0x30] sm:$0xff] %v1065
                %v1067 = vld [vmem:[%s1051 + $0x38] sm:$0xff]
                %1068 = vst [vmem:[%s1052 + $0x38] sm:$0xff] %v1067
                %v1069 = vld [vmem:[%s1051 + $0x40] sm:$0xff]
                %1070 = vst [vmem:[%s1052 + $0x80] sm:$0xff] %v1069
                %v1071 = vld [vmem:[%s1051 + $0x48] sm:$0xff]
                %1072 = vst [vmem:[%s1052 + $0x88] sm:$0xff] %v1071
                %v1073 = vld [vmem:[%s1051 + $0x50] sm:$0xff]
                %1074 = vst [vmem:[%s1052 + $0x90] sm:$0xff] %v1073
                %v1075 = vld [vmem:[%s1051 + $0x58] sm:$0xff]
                %1076 = vst [vmem:[%s1052 + $0x98] sm:$0xff] %v1075
                %v1077 = vld [vmem:[%s1051 + $0x60] sm:$0xff]
                %1078 = vst [vmem:[%s1052 + $0xa0] sm:$0xff] %v1077
                %v1079 = vld [vmem:[%s1051 + $0x68] sm:$0xff]
                %1080 = vst [vmem:[%s1052 + $0xa8] sm:$0xff] %v1079
                %v1081 = vld [vmem:[%s1051 + $0x70] sm:$0xff]
                %1082 = vst [vmem:[%s1052 + $0xb0] sm:$0xff] %v1081
                %v1083 = vld [vmem:[%s1051 + $0x78] sm:$0xff]
                %1084 = vst [vmem:[%s1052 + $0xb8] sm:$0xff] %v1083
              $region72: #{collnet_forward.3} parent=66 // loop_footer
                %s1050 = sadd.s32 1, %s1046
              $region73: #{collnet_forward.3} parent=66 // loop_footer_branch
                %1045 = sbr.rel target = $region69
              $region74: #{collnet_forward.3} parent=66 // loop_exit
                _
            $region67: #{collnet_forward.3} parent=62 // pred_fallthru
              _
            // Predicated region
            $region75: #{collnet_forward.3} parent=62 // pred_check
              _
            $region76: #{collnet_forward.3} parent=62 // pred_check_branch
              %1086 = sbr.rel target = $region78
            $region77: #{collnet_forward.3} parent=62 // pred_region
              _
            $region78: #{collnet_forward.3} parent=62 // pred_fallthru
              _
          $region63: #{collnet_forward.3} parent=58 // pred_fallthru
            _
          %1087 = vnop
        $region59: #{collnet_forward.3} parent=50 // pred_fallthru
          _
      $region51: #{collnet_forward.3} parent=5 // pred_fallthru
        _
      %p1088 = scmp.le.s32.totalorder 2, %s9
      // Predicated region
      $region79: #{collnet_forward.3} parent=5 // pred_check
        %p1089 = pneg %p1088
      $region80: #{collnet_forward.3} parent=5 // pred_check_branch
        %1091 = sbr.rel (%p1089) target = $region82
      $region81: #{collnet_forward.3} parent=5 // pred_region
        %s1092 = ssub.s32 %s9, 2
        // Predicated region
        $region83: #{collnet_forward.3} parent=81 // pred_check
          %p1093 = pneg %p111
        $region84: #{collnet_forward.3} parent=81 // pred_check_branch
          %1095 = sbr.rel (%p1093) target = $region86
        $region85: #{collnet_forward.3} parent=81 // pred_region
          %s1096 = sand.u32 %s96, 1
          %s1097 = sand.u32 %s96, 1
          %s1098 = smul.addr %s1097, 128
          %s1099 = scalar_lea.vmem [#allocation3], %s1098
        $region86: #{collnet_forward.3} parent=81 // pred_fallthru
          _
      $region82: #{collnet_forward.3} parent=5 // pred_fallthru
        _
    $region6: #{collnet_forward.3} parent=1 // loop_footer
      %s13 = sadd.s32 1, %s9
    $region7: #{collnet_forward.3} parent=1 // loop_footer_branch
      %8 = sbr.rel target = $region3
    $region8: #{collnet_forward.3} parent=1 // loop_exit
      _

// kernel: collnet_forward.2
$region0: #{collnet_forward.2}
  #allocation0 [shape = 'u32[]', space=smem, size = 0x4, offset = 0x4, fixed_abs, tag = 'smem constant byte address 0x4 - core index']
  #allocation1 [shape = 'u32[144,128]{1,0:T(1,128)}', space=vmem, size = 0x12000, scoped, tag = 'internal scratch']
  #allocation2 [shape = 'f32[2,16,512]{2,1,0:T(8,128)}', space=vmem, size = 0x10000, scoped, tag = 'scratch operand']
  #allocation11 [shape = 's32[]', space=sflag, size = 0x4, offset = 0, fixed_abs, tag = 'sflag constant byte address 0x0 - dummy sync flag']
  %s0 = inlined_call_operand.vmem [shape: f32[2,32,512], index: 0, kind: input, shape index: {}]
  %s1 = inlined_call_operand.hbm [shape: bf16[16,32,512], index: 1, kind: input, shape index: {}]
  %s2 = inlined_call_operand.vmem [shape: f32[1,16], index: 2, kind: input, shape index: {}]
  %s3 = inlined_call_operand.vmem [shape: f32[2,8], index: 3, kind: input, shape index: {}]
  %s4 = inlined_call_operand.vmem [shape: f32[2,21], index: 4, kind: input, shape index: {}]
  %s5 = inlined_call_operand.vmem [shape: f32[21,32], index: 5, kind: input, shape index: {}]
  %s6 = inlined_call_operand.vmem [shape: f32[8,32], index: 6, kind: input, shape index: {}]
  %s7 = inlined_call_operand.vmem [shape: f32[1,32], index: 7, kind: input, shape index: {}]
  %s8 = inlined_call_operand.vmem [shape: f32[32,16], index: 8, kind: input, shape index: {}]
  %s9 = inlined_call_operand.vmem [shape: f32[1,16], index: 9, kind: input, shape index: {}]
  %s10 = inlined_call_operand.vmem [shape: f32[16,4], index: 10, kind: input, shape index: {}]
  %s11 = inlined_call_operand.vmem [shape: f32[1,4], index: 11, kind: input, shape index: {}]
  %s12 = inlined_call_operand.hbm [shape: f32[2,8], index: 12, kind: output, shape index: {0}]
  %s13 = inlined_call_operand.hbm [shape: f32[2,8], index: 13, kind: output, shape index: {1}]
  %s14 = inlined_call_operand.vmem [shape: f32[2,8], index: 14, kind: output, shape index: {2}]
  %s15 = inlined_call_operand.hbm [shape: f32[2,4], index: 15, kind: output, shape index: {3}]
  %16 = xla_tuple %s12, %s13, %s14, %s15
  %s17 = sld [smem:[#allocation0]]
  $region140: #{collnet_forward.2} parent=0
    _
  %s19 = ssub.s32 1, %s17
  %s20 = scalar_select 0, %s19, %s17
  $region1: #{collnet_forward.2} parent=0
    #allocation3 [shape = 'u8[131072]{0}', space=vmem, size = 0x20000, scoped, tag = 'input window, operand 0']
    #allocation4 [shape = 'u8[524288]{0}', space=vmem, size = 0x80000, scoped, tag = 'input window, operand 1']
    #allocation5 [shape = 's32[2]{0}', space=sflag, size = 0x8, scoped, tag = 'scoped memory for collnet_forward.2']
    #allocation6 [shape = 's32[2]{0}', space=sflag, size = 0x8, scoped, tag = 'scoped memory for collnet_forward.2']
    #allocation7 [shape = 'u8[1024]{0}', space=vmem, size = 0x400, scoped, tag = 'output window, operand 0, single buffered']
    #allocation8 [shape = 'u8[1024]{0}', space=vmem, size = 0x400, scoped, tag = 'output window, operand 1, single buffered']
    #allocation9 [shape = 's32[1]{0}', space=sflag, size = 0x4, scoped, tag = 'scoped memory for collnet_forward.2']
    #allocation10 [shape = 'u8[1024]{0}', space=vmem, size = 0x400, scoped, tag = 'output window, operand 3, single buffered']
    %21 = vsyncpa [#allocation5], 0
    %s22 = scalar_lea.sflag [#allocation5], 1
    %23 = vsyncpa %s22, 0
    %24 = vsyncpa [#allocation6], 0
    %25 = vsyncpa [#allocation9], 0
    loop: start=0, step=1, limit=4
    $region2: #{collnet_forward.2} parent=1 // loop_pre_header
      _
    $region3: #{collnet_forward.2} parent=1 // loop_header
      %s27 = sphi 0, %s31
      %p28 = scmp.ge.s32.totalorder %s27, 4
      %s37 = sphi 0, %s39
      %s40 = sphi 0, %s37
      %s41 = sphi 0, %s40
      %s57 = sphi 0, %s41
      %s63 = sphi 0, %s65
      %s66 = sphi 0, %s63
      %s67 = sphi 0, %s66
      %s83 = sphi 0, %s67
      %s87 = sphi 0, %s87
      %s89 = sphi 0, %s87
      %s90 = sphi 0, %s89
      %s104 = sphi 0, %s90
      %s108 = sphi 0, %s108
      %s110 = sphi 0, %s108
      %s111 = sphi 0, %s110
      %s125 = sphi 0, %s111
      %s129 = sphi 0, %s129
      %s131 = sphi 0, %s129
      %s132 = sphi 0, %s131
      %s146 = sphi 0, %s132
      %s150 = sphi 0, %s150
      %s152 = sphi 0, %s150
      %s153 = sphi 0, %s152
      %s167 = sphi 0, %s153
      %s171 = sphi 0, %s171
      %s173 = sphi 0, %s171
      %s174 = sphi 0, %s173
      %s188 = sphi 0, %s174
      %s192 = sphi 0, %s192
      %s194 = sphi 0, %s192
      %s195 = sphi 0, %s194
      %s209 = sphi 0, %s195
      %s213 = sphi 0, %s213
      %s215 = sphi 0, %s213
      %s216 = sphi 0, %s215
      %s230 = sphi 0, %s216
      %s234 = sphi 0, %s234
      %s236 = sphi 0, %s234
      %s237 = sphi 0, %s236
      %s251 = sphi 0, %s237
      %s255 = sphi 0, %s255
      %s257 = sphi 0, %s255
      %s258 = sphi 0, %s257
      %s272 = sphi 0, %s258
      %s276 = sphi 0, %s276
      %s278 = sphi 0, %s276
      %s279 = sphi 0, %s278
      %s293 = sphi 0, %s279
      %s297 = sphi 0, %s297
      %s299 = sphi 0, %s297
      %s300 = sphi 0, %s299
      %s314 = sphi 0, %s300
      %s318 = sphi 0, %s318
      %s320 = sphi 0, %s318
      %s321 = sphi 0, %s320
      %s335 = sphi 0, %s321
      %s339 = sphi 0, %s339
      %s341 = sphi 0, %s339
      %s342 = sphi 0, %s341
      %s356 = sphi 0, %s342
      %s360 = sphi 0, %s360
      %s362 = sphi 0, %s360
      %s363 = sphi 0, %s362
      %s377 = sphi 0, %s363
    $region4: #{collnet_forward.2} parent=1 // loop_header_branch
      %30 = sbr.rel (%p28) target = $region8
    $region5: #{collnet_forward.2} parent=1 // loop_body
      %s32 = ssub.s32 %s27, 1
      %s33 = ssub.s32 %s27, 2
      %s34 = sadd.s32 %s27, 1
      %s35 = ssub.s32 %s27, %s34
      %p36 = scmp.eq.s32.totalorder %s35, 0
      %s38 = sadd.s32 %s37, 1
      %s39 = scalar_select %p36, %s37, %s38
      %p42 = pneg %p36
      %p43 = scmp.eq.s32.totalorder %s27, 1
      %p44 = por %p42, %p43
      %p45 = scmp.ne.s32.totalorder %s37, %s40
      %p46 = scmp.eq.s32.totalorder %s27, 0
      %p47 = por %p45, %p46
      %p48 = scmp.ne.s32.totalorder %s37, %s40
      %p49 = scmp.eq.s32.totalorder %s32, 1
      %p50 = por %p48, %p49
      %p51 = scmp.ne.s32.totalorder %s40, %s41
      %p52 = scmp.eq.s32.totalorder %s32, 0
      %p53 = por %p51, %p52
      %p54 = scmp.ne.s32.totalorder %s40, %s41
      %p55 = scmp.eq.s32.totalorder %s33, 1
      %p56 = por %p54, %p55
      %p58 = scmp.ne.s32.totalorder %s41, %s57
      %p59 = scmp.eq.s32.totalorder %s33, 0
      %p60 = por %p58, %p59
      %s61 = ssub.s32 %s27, %s34
      %p62 = scmp.eq.s32.totalorder %s61, 0
      %s64 = sadd.s32 %s63, 1
      %s65 = scalar_select %p62, %s63, %s64
      %p68 = pneg %p62
      %p69 = scmp.eq.s32.totalorder %s27, 1
      %p70 = por %p68, %p69
      %p71 = scmp.ne.s32.totalorder %s63, %s66
      %p72 = scmp.eq.s32.totalorder %s27, 0
      %p73 = por %p71, %p72
      %p74 = scmp.ne.s32.totalorder %s63, %s66
      %p75 = scmp.eq.s32.totalorder %s32, 1
      %p76 = por %p74, %p75
      %p77 = scmp.ne.s32.totalorder %s66, %s67
      %p78 = scmp.eq.s32.totalorder %s32, 0
      %p79 = por %p77, %p78
      %p80 = scmp.ne.s32.totalorder %s66, %s67
      %p81 = scmp.eq.s32.totalorder %s33, 1
      %p82 = por %p80, %p81
      %p84 = scmp.ne.s32.totalorder %s67, %s83
      %p85 = scmp.eq.s32.totalorder %s33, 0
      %p86 = por %p84, %p85
      %s88 = sadd.s32 %s87, 1
      %p91 = scmp.eq.s32.totalorder %s27, 1
      %p92 = scmp.ne.s32.totalorder %s87, %s89
      %p93 = scmp.eq.s32.totalorder %s27, 0
      %p94 = por %p92, %p93
      %p95 = scmp.ne.s32.totalorder %s87, %s89
      %p96 = scmp.eq.s32.totalorder %s32, 1
      %p97 = por %p95, %p96
      %p98 = scmp.ne.s32.totalorder %s89, %s90
      %p99 = scmp.eq.s32.totalorder %s32, 0
      %p100 = por %p98, %p99
      %p101 = scmp.ne.s32.totalorder %s89, %s90
      %p102 = scmp.eq.s32.totalorder %s33, 1
      %p103 = por %p101, %p102
      %p105 = scmp.ne.s32.totalorder %s90, %s104
      %p106 = scmp.eq.s32.totalorder %s33, 0
      %p107 = por %p105, %p106
      %s109 = sadd.s32 %s108, 1
      %p112 = scmp.eq.s32.totalorder %s27, 1
      %p113 = scmp.ne.s32.totalorder %s108, %s110
      %p114 = scmp.eq.s32.totalorder %s27, 0
      %p115 = por %p113, %p114
      %p116 = scmp.ne.s32.totalorder %s108, %s110
      %p117 = scmp.eq.s32.totalorder %s32, 1
      %p118 = por %p116, %p117
      %p119 = scmp.ne.s32.totalorder %s110, %s111
      %p120 = scmp.eq.s32.totalorder %s32, 0
      %p121 = por %p119, %p120
      %p122 = scmp.ne.s32.totalorder %s110, %s111
      %p123 = scmp.eq.s32.totalorder %s33, 1
      %p124 = por %p122, %p123
      %p126 = scmp.ne.s32.totalorder %s111, %s125
      %p127 = scmp.eq.s32.totalorder %s33, 0
      %p128 = por %p126, %p127
      %s130 = sadd.s32 %s129, 1
      %p133 = scmp.eq.s32.totalorder %s27, 1
      %p134 = scmp.ne.s32.totalorder %s129, %s131
      %p135 = scmp.eq.s32.totalorder %s27, 0
      %p136 = por %p134, %p135
      %p137 = scmp.ne.s32.totalorder %s129, %s131
      %p138 = scmp.eq.s32.totalorder %s32, 1
      %p139 = por %p137, %p138
      %p140 = scmp.ne.s32.totalorder %s131, %s132
      %p141 = scmp.eq.s32.totalorder %s32, 0
      %p142 = por %p140, %p141
      %p143 = scmp.ne.s32.totalorder %s131, %s132
      %p144 = scmp.eq.s32.totalorder %s33, 1
      %p145 = por %p143, %p144
      %p147 = scmp.ne.s32.totalorder %s132, %s146
      %p148 = scmp.eq.s32.totalorder %s33, 0
      %p149 = por %p147, %p148
      %s151 = sadd.s32 %s150, 1
      %p154 = scmp.eq.s32.totalorder %s27, 1
      %p155 = scmp.ne.s32.totalorder %s150, %s152
      %p156 = scmp.eq.s32.totalorder %s27, 0
      %p157 = por %p155, %p156
      %p158 = scmp.ne.s32.totalorder %s150, %s152
      %p159 = scmp.eq.s32.totalorder %s32, 1
      %p160 = por %p158, %p159
      %p161 = scmp.ne.s32.totalorder %s152, %s153
      %p162 = scmp.eq.s32.totalorder %s32, 0
      %p163 = por %p161, %p162
      %p164 = scmp.ne.s32.totalorder %s152, %s153
      %p165 = scmp.eq.s32.totalorder %s33, 1
      %p166 = por %p164, %p165
      %p168 = scmp.ne.s32.totalorder %s153, %s167
      %p169 = scmp.eq.s32.totalorder %s33, 0
      %p170 = por %p168, %p169
      %s172 = sadd.s32 %s171, 1
      %p175 = scmp.eq.s32.totalorder %s27, 1
      %p176 = scmp.ne.s32.totalorder %s171, %s173
      %p177 = scmp.eq.s32.totalorder %s27, 0
      %p178 = por %p176, %p177
      %p179 = scmp.ne.s32.totalorder %s171, %s173
      %p180 = scmp.eq.s32.totalorder %s32, 1
      %p181 = por %p179, %p180
      %p182 = scmp.ne.s32.totalorder %s173, %s174
      %p183 = scmp.eq.s32.totalorder %s32, 0
      %p184 = por %p182, %p183
      %p185 = scmp.ne.s32.totalorder %s173, %s174
      %p186 = scmp.eq.s32.totalorder %s33, 1
      %p187 = por %p185, %p186
      %p189 = scmp.ne.s32.totalorder %s174, %s188
      %p190 = scmp.eq.s32.totalorder %s33, 0
      %p191 = por %p189, %p190
      %s193 = sadd.s32 %s192, 1
      %p196 = scmp.eq.s32.totalorder %s27, 1
      %p197 = scmp.ne.s32.totalorder %s192, %s194
      %p198 = scmp.eq.s32.totalorder %s27, 0
      %p199 = por %p197, %p198
      %p200 = scmp.ne.s32.totalorder %s192, %s194
      %p201 = scmp.eq.s32.totalorder %s32, 1
      %p202 = por %p200, %p201
      %p203 = scmp.ne.s32.totalorder %s194, %s195
      %p204 = scmp.eq.s32.totalorder %s32, 0
      %p205 = por %p203, %p204
      %p206 = scmp.ne.s32.totalorder %s194, %s195
      %p207 = scmp.eq.s32.totalorder %s33, 1
      %p208 = por %p206, %p207
      %p210 = scmp.ne.s32.totalorder %s195, %s209
      %p211 = scmp.eq.s32.totalorder %s33, 0
      %p212 = por %p210, %p211
      %s214 = sadd.s32 %s213, 1
      %p217 = scmp.eq.s32.totalorder %s27, 1
      %p218 = scmp.ne.s32.totalorder %s213, %s215
      %p219 = scmp.eq.s32.totalorder %s27, 0
      %p220 = por %p218, %p219
      %p221 = scmp.ne.s32.totalorder %s213, %s215
      %p222 = scmp.eq.s32.totalorder %s32, 1
      %p223 = por %p221, %p222
      %p224 = scmp.ne.s32.totalorder %s215, %s216
      %p225 = scmp.eq.s32.totalorder %s32, 0
      %p226 = por %p224, %p225
      %p227 = scmp.ne.s32.totalorder %s215, %s216
      %p228 = scmp.eq.s32.totalorder %s33, 1
      %p229 = por %p227, %p228
      %p231 = scmp.ne.s32.totalorder %s216, %s230
      %p232 = scmp.eq.s32.totalorder %s33, 0
      %p233 = por %p231, %p232
      %s235 = sadd.s32 %s234, 1
      %p238 = scmp.eq.s32.totalorder %s27, 1
      %p239 = scmp.ne.s32.totalorder %s234, %s236
      %p240 = scmp.eq.s32.totalorder %s27, 0
      %p241 = por %p239, %p240
      %p242 = scmp.ne.s32.totalorder %s234, %s236
      %p243 = scmp.eq.s32.totalorder %s32, 1
      %p244 = por %p242, %p243
      %p245 = scmp.ne.s32.totalorder %s236, %s237
      %p246 = scmp.eq.s32.totalorder %s32, 0
      %p247 = por %p245, %p246
      %p248 = scmp.ne.s32.totalorder %s236, %s237
      %p249 = scmp.eq.s32.totalorder %s33, 1
      %p250 = por %p248, %p249
      %p252 = scmp.ne.s32.totalorder %s237, %s251
      %p253 = scmp.eq.s32.totalorder %s33, 0
      %p254 = por %p252, %p253
      %s256 = sadd.s32 %s255, 1
      %p259 = scmp.eq.s32.totalorder %s27, 1
      %p260 = scmp.ne.s32.totalorder %s255, %s257
      %p261 = scmp.eq.s32.totalorder %s27, 0
      %p262 = por %p260, %p261
      %p263 = scmp.ne.s32.totalorder %s255, %s257
      %p264 = scmp.eq.s32.totalorder %s32, 1
      %p265 = por %p263, %p264
      %p266 = scmp.ne.s32.totalorder %s257, %s258
      %p267 = scmp.eq.s32.totalorder %s32, 0
      %p268 = por %p266, %p267
      %p269 = scmp.ne.s32.totalorder %s257, %s258
      %p270 = scmp.eq.s32.totalorder %s33, 1
      %p271 = por %p269, %p270
      %p273 = scmp.ne.s32.totalorder %s258, %s272
      %p274 = scmp.eq.s32.totalorder %s33, 0
      %p275 = por %p273, %p274
      %s277 = sadd.s32 %s276, 1
      %p280 = scmp.eq.s32.totalorder %s27, 1
      %p281 = scmp.ne.s32.totalorder %s276, %s278
      %p282 = scmp.eq.s32.totalorder %s27, 0
      %p283 = por %p281, %p282
      %p284 = scmp.ne.s32.totalorder %s276, %s278
      %p285 = scmp.eq.s32.totalorder %s32, 1
      %p286 = por %p284, %p285
      %p287 = scmp.ne.s32.totalorder %s278, %s279
      %p288 = scmp.eq.s32.totalorder %s32, 0
      %p289 = por %p287, %p288
      %p290 = scmp.ne.s32.totalorder %s278, %s279
      %p291 = scmp.eq.s32.totalorder %s33, 1
      %p292 = por %p290, %p291
      %p294 = scmp.ne.s32.totalorder %s279, %s293
      %p295 = scmp.eq.s32.totalorder %s33, 0
      %p296 = por %p294, %p295
      %s298 = sadd.s32 %s297, 1
      %p301 = scmp.eq.s32.totalorder %s27, 1
      %p302 = scmp.ne.s32.totalorder %s297, %s299
      %p303 = scmp.eq.s32.totalorder %s27, 0
      %p304 = por %p302, %p303
      %p305 = scmp.ne.s32.totalorder %s297, %s299
      %p306 = scmp.eq.s32.totalorder %s32, 1
      %p307 = por %p305, %p306
      %p308 = scmp.ne.s32.totalorder %s299, %s300
      %p309 = scmp.eq.s32.totalorder %s32, 0
      %p310 = por %p308, %p309
      %p311 = scmp.ne.s32.totalorder %s299, %s300
      %p312 = scmp.eq.s32.totalorder %s33, 1
      %p313 = por %p311, %p312
      %p315 = scmp.ne.s32.totalorder %s300, %s314
      %p316 = scmp.eq.s32.totalorder %s33, 0
      %p317 = por %p315, %p316
      %s319 = sadd.s32 %s318, 1
      %p322 = scmp.eq.s32.totalorder %s27, 1
      %p323 = scmp.ne.s32.totalorder %s318, %s320
      %p324 = scmp.eq.s32.totalorder %s27, 0
      %p325 = por %p323, %p324
      %p326 = scmp.ne.s32.totalorder %s318, %s320
      %p327 = scmp.eq.s32.totalorder %s32, 1
      %p328 = por %p326, %p327
      %p329 = scmp.ne.s32.totalorder %s320, %s321
      %p330 = scmp.eq.s32.totalorder %s32, 0
      %p331 = por %p329, %p330
      %p332 = scmp.ne.s32.totalorder %s320, %s321
      %p333 = scmp.eq.s32.totalorder %s33, 1
      %p334 = por %p332, %p333
      %p336 = scmp.ne.s32.totalorder %s321, %s335
      %p337 = scmp.eq.s32.totalorder %s33, 0
      %p338 = por %p336, %p337
      %s340 = sadd.s32 %s339, 1
      %p343 = scmp.eq.s32.totalorder %s27, 1
      %p344 = scmp.ne.s32.totalorder %s339, %s341
      %p345 = scmp.eq.s32.totalorder %s27, 0
      %p346 = por %p344, %p345
      %p347 = scmp.ne.s32.totalorder %s339, %s341
      %p348 = scmp.eq.s32.totalorder %s32, 1
      %p349 = por %p347, %p348
      %p350 = scmp.ne.s32.totalorder %s341, %s342
      %p351 = scmp.eq.s32.totalorder %s32, 0
      %p352 = por %p350, %p351
      %p353 = scmp.ne.s32.totalorder %s341, %s342
      %p354 = scmp.eq.s32.totalorder %s33, 1
      %p355 = por %p353, %p354
      %p357 = scmp.ne.s32.totalorder %s342, %s356
      %p358 = scmp.eq.s32.totalorder %s33, 0
      %p359 = por %p357, %p358
      %s361 = sadd.s32 %s360, 1
      %p364 = scmp.eq.s32.totalorder %s27, 1
      %p365 = scmp.ne.s32.totalorder %s360, %s362
      %p366 = scmp.eq.s32.totalorder %s27, 0
      %p367 = por %p365, %p366
      %p368 = scmp.ne.s32.totalorder %s360, %s362
      %p369 = scmp.eq.s32.totalorder %s32, 1
      %p370 = por %p368, %p369
      %p371 = scmp.ne.s32.totalorder %s362, %s363
      %p372 = scmp.eq.s32.totalorder %s32, 0
      %p373 = por %p371, %p372
      %p374 = scmp.ne.s32.totalorder %s362, %s363
      %p375 = scmp.eq.s32.totalorder %s33, 1
      %p376 = por %p374, %p375
      %p378 = scmp.ne.s32.totalorder %s363, %s377
      %p379 = scmp.eq.s32.totalorder %s33, 0
      %p380 = por %p378, %p379
      %p381 = scmp.le.s32.totalorder 1, %s27
      %p382 = scmp.lt.s32.totalorder %s27, 3
      %p383 = pnand %p381, %p382
      %p384 = pneg %p383
      // Predicated region
      $region9: #{collnet_forward.2} parent=5 // pred_check
        _
      $region10: #{collnet_forward.2} parent=5 // pred_check_branch
        %386 = sbr.rel (%p383) target = $region12
      $region11: #{collnet_forward.2} parent=5 // pred_region
        %s387 = ssub.s32 %s27, 1
        // Predicated region
        $region13: #{collnet_forward.2} parent=11 // pred_check
          %p388 = pneg %p100
        $region14: #{collnet_forward.2} parent=11 // pred_check_branch
          %390 = sbr.rel (%p388) target = $region16
        $region15: #{collnet_forward.2} parent=11 // pred_region
          _
        $region16: #{collnet_forward.2} parent=11 // pred_fallthru
          _
        // Predicated region
        $region17: #{collnet_forward.2} parent=11 // pred_check
          %p391 = pneg %p121
        $region18: #{collnet_forward.2} parent=11 // pred_check_branch
          %393 = sbr.rel (%p391) target = $region20
        $region19: #{collnet_forward.2} parent=11 // pred_region
          _
        $region20: #{collnet_forward.2} parent=11 // pred_fallthru
          _
        // Predicated region
        $region21: #{collnet_forward.2} parent=11 // pred_check
          %p394 = pneg %p142
        $region22: #{collnet_forward.2} parent=11 // pred_check_branch
          %396 = sbr.rel (%p394) target = $region24
        $region23: #{collnet_forward.2} parent=11 // pred_region
          _
        $region24: #{collnet_forward.2} parent=11 // pred_fallthru
          _
        // Predicated region
        $region25: #{collnet_forward.2} parent=11 // pred_check
          %p397 = pneg %p163
        $region26: #{collnet_forward.2} parent=11 // pred_check_branch
          %399 = sbr.rel (%p397) target = $region28
        $region27: #{collnet_forward.2} parent=11 // pred_region
          _
        $region28: #{collnet_forward.2} parent=11 // pred_fallthru
          _
        // Predicated region
        $region29: #{collnet_forward.2} parent=11 // pred_check
          %p400 = pneg %p184
        $region30: #{collnet_forward.2} parent=11 // pred_check_branch
          %402 = sbr.rel (%p400) target = $region32
        $region31: #{collnet_forward.2} parent=11 // pred_region
          _
        $region32: #{collnet_forward.2} parent=11 // pred_fallthru
          _
        // Predicated region
        $region33: #{collnet_forward.2} parent=11 // pred_check
          %p403 = pneg %p205
        $region34: #{collnet_forward.2} parent=11 // pred_check_branch
          %405 = sbr.rel (%p403) target = $region36
        $region35: #{collnet_forward.2} parent=11 // pred_region
          _
        $region36: #{collnet_forward.2} parent=11 // pred_fallthru
          _
        // Predicated region
        $region37: #{collnet_forward.2} parent=11 // pred_check
          %p406 = pneg %p226
        $region38: #{collnet_forward.2} parent=11 // pred_check_branch
          %408 = sbr.rel (%p406) target = $region40
        $region39: #{collnet_forward.2} parent=11 // pred_region
          _
        $region40: #{collnet_forward.2} parent=11 // pred_fallthru
          _
        // Predicated region
        $region41: #{collnet_forward.2} parent=11 // pred_check
          %p409 = pneg %p247
        $region42: #{collnet_forward.2} parent=11 // pred_check_branch
          %411 = sbr.rel (%p409) target = $region44
        $region43: #{collnet_forward.2} parent=11 // pred_region
          _
        $region44: #{collnet_forward.2} parent=11 // pred_fallthru
          _
        // Predicated region
        $region45: #{collnet_forward.2} parent=11 // pred_check
          %p412 = pneg %p268
        $region46: #{collnet_forward.2} parent=11 // pred_check_branch
          %414 = sbr.rel (%p412) target = $region48
        $region47: #{collnet_forward.2} parent=11 // pred_region
          _
        $region48: #{collnet_forward.2} parent=11 // pred_fallthru
          _
        // Predicated region
        $region49: #{collnet_forward.2} parent=11 // pred_check
          %p415 = pneg %p289
        $region50: #{collnet_forward.2} parent=11 // pred_check_branch
          %417 = sbr.rel (%p415) target = $region52
        $region51: #{collnet_forward.2} parent=11 // pred_region
          _
        $region52: #{collnet_forward.2} parent=11 // pred_fallthru
          _
      $region12: #{collnet_forward.2} parent=5 // pred_fallthru
        _
      %p418 = scmp.lt.s32.totalorder %s27, 2
      // Predicated region
      $region53: #{collnet_forward.2} parent=5 // pred_check
        %p419 = pneg %p418
      $region54: #{collnet_forward.2} parent=5 // pred_check_branch
        %421 = sbr.rel (%p419) target = $region56
      $region55: #{collnet_forward.2} parent=5 // pred_region
        // Predicated region
        $region57: #{collnet_forward.2} parent=55 // pred_check
          %p422 = pneg %p47
        $region58: #{collnet_forward.2} parent=55 // pred_check_branch
          %424 = sbr.rel (%p422) target = $region60
        $region59: #{collnet_forward.2} parent=55 // pred_region
          %s425 = sand.u32 %s37, 1
          %s426 = sand.u32 %s37, 1
          %s427 = smul.addr %s426, 128
          %s428 = scalar_lea.vmem [#allocation3], %s427
          %s429 = smul.u32 2, %s27
          %s430 = smul.addr %s429, 4
          %s431 = smul.addr %s430, 8
          %s432 = scalar_lea.vmem %s0, %s431
          // Predicated region
          $region61: #{collnet_forward.2} parent=59 // pred_check
            _
          $region62: #{collnet_forward.2} parent=59 // pred_check_branch
            %434 = sbr.rel (0) target = $region64
          $region63: #{collnet_forward.2} parent=59 // pred_region
            // Predicated region
            $region65: #{collnet_forward.2} parent=63 // pred_check
              _
            $region66: #{collnet_forward.2} parent=63 // pred_check_branch
              %436 = sbr.rel (0) target = $region68
            $region67: #{collnet_forward.2} parent=63 // pred_region
              loop: start=0, step=1, limit=1
              $region69: #{collnet_forward.2} parent=67 // loop_pre_header
                _
              $region70: #{collnet_forward.2} parent=67 // loop_header
                %s438 = sphi 0, %s442
                %p439 = scmp.ge.s32.totalorder %s438, 1
                %s443 = sphi %s432, %s432
                %s444 = sphi %s428, %s428
              $region71: #{collnet_forward.2} parent=67 // loop_header_branch
                %441 = sbr.rel (%p439) target = $region75
              $region72: #{collnet_forward.2} parent=67 // loop_body
                %v445 = vld [vmem:[%s443] sm:$0xff]
                %446 = vst [vmem:[%s444] sm:$0xff] %v445
                %v447 = vld [vmem:[%s443 + $0x8] sm:$0xff]
                %448 = vst [vmem:[%s444 + $0x8] sm:$0xff] %v447
                %v449 = vld [vmem:[%s443 + $0x10] sm:$0xff]
                %450 = vst [vmem:[%s444 + $0x10] sm:$0xff] %v449
                %v451 = vld [vmem:[%s443 + $0x18] sm:$0xff]
                %452 = vst [vmem:[%s444 + $0x18] sm:$0xff] %v451
                %v453 = vld [vmem:[%s443 + $0x20] sm:$0xff]
                %454 = vst [vmem:[%s444 + $0x20] sm:$0xff] %v453
                %v455 = vld [vmem:[%s443 + $0x28] sm:$0xff]
                %456 = vst [vmem:[%s444 + $0x28] sm:$0xff] %v455
                %v457 = vld [vmem:[%s443 + $0x30] sm:$0xff]
                %458 = vst [vmem:[%s444 + $0x30] sm:$0xff] %v457
                %v459 = vld [vmem:[%s443 + $0x38] sm:$0xff]
                %460 = vst [vmem:[%s444 + $0x38] sm:$0xff] %v459
                %v461 = vld [vmem:[%s443 + $0x80] sm:$0xff]
                %462 = vst [vmem:[%s444 + $0x40] sm:$0xff] %v461
                %v463 = vld [vmem:[%s443 + $0x88] sm:$0xff]
                %464 = vst [vmem:[%s444 + $0x48] sm:$0xff] %v463
                %v465 = vld [vmem:[%s443 + $0x90] sm:$0xff]
                %466 = vst [vmem:[%s444 + $0x50] sm:$0xff] %v465
                %v467 = vld [vmem:[%s443 + $0x98] sm:$0xff]
                %468 = vst [vmem:[%s444 + $0x58] sm:$0xff] %v467
                %v469 = vld [vmem:[%s443 + $0xa0] sm:$0xff]
                %470 = vst [vmem:[%s444 + $0x60] sm:$0xff] %v469
                %v471 = vld [vmem:[%s443 + $0xa8] sm:$0xff]
                %472 = vst [vmem:[%s444 + $0x68] sm:$0xff] %v471
                %v473 = vld [vmem:[%s443 + $0xb0] sm:$0xff]
                %474 = vst [vmem:[%s444 + $0x70] sm:$0xff] %v473
                %v475 = vld [vmem:[%s443 + $0xb8] sm:$0xff]
                %476 = vst [vmem:[%s444 + $0x78] sm:$0xff] %v475
              $region73: #{collnet_forward.2} parent=67 // loop_footer
                %s442 = sadd.s32 1, %s438
              $region74: #{collnet_forward.2} parent=67 // loop_footer_branch
                %437 = sbr.rel target = $region70
              $region75: #{collnet_forward.2} parent=67 // loop_exit
                _
            $region68: #{collnet_forward.2} parent=63 // pred_fallthru
              _
            // Predicated region
            $region76: #{collnet_forward.2} parent=63 // pred_check
              _
            $region77: #{collnet_forward.2} parent=63 // pred_check_branch
              %478 = sbr.rel target = $region79
            $region78: #{collnet_forward.2} parent=63 // pred_region
              _
            $region79: #{collnet_forward.2} parent=63 // pred_fallthru
              _
          $region64: #{collnet_forward.2} parent=59 // pred_fallthru
            _
          %479 = vnop
        $region60: #{collnet_forward.2} parent=55 // pred_fallthru
          _
        // Predicated region
        $region80: #{collnet_forward.2} parent=55 // pred_check
          %p480 = pneg %p73
        $region81: #{collnet_forward.2} parent=55 // pred_check_branch
          %482 = sbr.rel (%p480) target = $region83
        $region82: #{collnet_forward.2} parent=55 // pred_region
          #allocation12 [shape = 'u32[6]{0}', space=smem, size = 0x18, scoped, tag = 'DMA stride descriptor']
          %s483 = sand.u32 %s63, 1
          %s484 = scalar_lea.sflag [#allocation5], %s483
          %s485 = sand.u32 %s63, 1
          %s486 = smul.addr %s485, 512
          %s487 = scalar_lea.vmem [#allocation4], %s486
          %s488 = smul.u32 2, %s27
          %s490 = ssub.s32 8192, 8192
          %491 = vsyncadd %s484, %s490
          %s492 = smul.addr %s488, 4
          %s493 = smul.addr %s492, 64
          %s494 = scalar_lea.hbm %s1, %s493
          %s496 = sshll.u32 1, 14
          %s497 = sxor.u32 4294967295, %s496
          %s499 = sld [smem:[#allocation0]]
          %s500 = sadd.s32 2, %s499
          %s502 = sshll.u32 7, 26
          %s503 = sxor.u32 4294967295, %s502
          %s504 = sand.u32 0, %s503
          %s505 = sshll.u32 %s500, 26
          %s506 = sor.u32 %s504, %s505
          %s507 = sshll.u32 %s487, 4
          %s508 = int_to_ptr.vmem [resolvable:$true] %s507
          %514 = sst [smem:[#allocation12]] 1024
          %s515 = scalar_lea.smem [#allocation12], 1
          %516 = sst [smem:[%s515]] 512
          %s517 = scalar_lea.smem [#allocation12], 2
          %518 = sst [smem:[%s517]] 2
          %s519 = scalar_lea.smem [#allocation12], 3
          %520 = sst [smem:[%s519]] 256
          %s521 = scalar_lea.smem [#allocation12], 4
          %522 = sst [smem:[%s521]] 256
          %s523 = scalar_lea.smem [#allocation12], 5
          %524 = sst [smem:[%s523]] 16
          %526 = dma.general %s494, 8192, %s508, %s484, [#allocation11], [#allocation12], %s506, 0
        $region83: #{collnet_forward.2} parent=55 // pred_fallthru
          _
      $region56: #{collnet_forward.2} parent=5 // pred_fallthru
        _
      %p527 = scmp.le.s32.totalorder 1, %s27
      %p528 = scmp.lt.s32.totalorder %s27, 3
      %p529 = pnand %p527, %p528
      %p530 = pneg %p529
      // Predicated region
      $region84: #{collnet_forward.2} parent=5 // pred_check
        _
      $region85: #{collnet_forward.2} parent=5 // pred_check_branch
        %532 = sbr.rel (%p529) target = $region87
      $region86: #{collnet_forward.2} parent=5 // pred_region
        %s533 = ssub.s32 %s27, 1
        %s534 = sand.u32 %s40, 1
        %s535 = sand.u32 %s40, 1
        %s536 = smul.addr %s535, 128
        %s537 = scalar_lea.vmem [#allocation3], %s536
        // Predicated region
        $region88: #{collnet_forward.2} parent=86 // pred_check
          %p538 = pneg %p53
        $region89: #{collnet_forward.2} parent=86 // pred_check_branch
          %540 = sbr.rel (%p538) target = $region91
        $region90: #{collnet_forward.2} parent=86 // pred_region
          _
        $region91: #{collnet_forward.2} parent=86 // pred_fallthru
          _
        %s541 = sand.u32 %s66, 1
        %s542 = scalar_lea.sflag [#allocation5], %s541
        %s543 = sand.u32 %s66, 1
        %s544 = smul.addr %s543, 512
        %s545 = scalar_lea.vmem [#allocation4], %s544
        // Predicated region
        $region92: #{collnet_forward.2} parent=86 // pred_check
          %p546 = pneg %p79
        $region93: #{collnet_forward.2} parent=86 // pred_check_branch
          %548 = sbr.rel (%p546) target = $region95
        $region94: #{collnet_forward.2} parent=86 // pred_region
          %549 = dma.done %s542, 8192
        $region95: #{collnet_forward.2} parent=86 // pred_fallthru
          _
        %s550 = sand.u32 %s40, 1
        %s551 = sand.u32 %s40, 1
        %s552 = smul.addr %s551, 128
        %s553 = scalar_lea.vmem [#allocation3], %s552
        %p554 = pneg %p53
        %p555 = pneg %p50
        %s556 = sand.u32 %s66, 1
        %s557 = scalar_lea.sflag [#allocation5], %s556
        %s558 = sand.u32 %s66, 1
        %s559 = smul.addr %s558, 512
        %s560 = scalar_lea.vmem [#allocation4], %s559
        %p561 = pneg %p79
        %p562 = pneg %p76
        %p563 = pneg %p100
        %p564 = pneg %p97
        %p565 = pneg %p121
        %p566 = pneg %p118
        %p567 = pneg %p142
        %p568 = pneg %p139
        %p569 = pneg %p163
        %p570 = pneg %p160
        %p571 = pneg %p184
        %p572 = pneg %p181
        %p573 = pneg %p205
        %p574 = pneg %p202
        %p575 = pneg %p226
        %p576 = pneg %p223
        %p577 = pneg %p247
        %p578 = pneg %p244
        %p579 = pneg %p268
        %p580 = pneg %p265
        %p581 = pneg %p289
        %p582 = pneg %p286
        %p583 = pneg %p310
        %p584 = pneg %p307
        %p585 = pneg %p331
        %p586 = pneg %p328
        %p587 = pneg %p352
        %p588 = pneg %p349
        %p589 = pneg %p373
        %p590 = pneg %p370
        %s591 = smul.u32 2, %s32
        %s592 = smul.u32 2, %s32
        %p593 = scmp.eq.s32.totalorder %s32, 0
        // Predicated region
        $region96: #{collnet_forward.2} parent=86 // pred_check
          %p594 = pneg %p593
        $region97: #{collnet_forward.2} parent=86 // pred_check_branch
          %596 = sbr.rel (%p594) target = $region99
        $region98: #{collnet_forward.2} parent=86 // pred_region
          %597 = vst [vmem:[#allocation2] sm:$0xff] 0.0
          %598 = vst [vmem:[#allocation2 + $0x8] sm:$0xff] 0.0
          %599 = vst [vmem:[#allocation2 + $0x10] sm:$0xff] 0.0
          %600 = vst [vmem:[#allocation2 + $0x18] sm:$0xff] 0.0
          %601 = vst [vmem:[#allocation2 + $0x20] sm:$0xff] 0.0
          %602 = vst [vmem:[#allocation2 + $0x28] sm:$0xff] 0.0
          %603 = vst [vmem:[#allocation2 + $0x30] sm:$0xff] 0.0
          %604 = vst [vmem:[#allocation2 + $0x38] sm:$0xff] 0.0
          %605 = vst [vmem:[#allocation2 + $0x40] sm:$0xff] 0.0
          %606 = vst [vmem:[#allocation2 + $0x48] sm:$0xff] 0.0
          %607 = vst [vmem:[#allocation2 + $0x50] sm:$0xff] 0.0
          %608 = vst [vmem:[#allocation2 + $0x58] sm:$0xff] 0.0
          %609 = vst [vmem:[#allocation2 + $0x60] sm:$0xff] 0.0
          %610 = vst [vmem:[#allocation2 + $0x68] sm:$0xff] 0.0
          %611 = vst [vmem:[#allocation2 + $0x70] sm:$0xff] 0.0
          %612 = vst [vmem:[#allocation2 + $0x78] sm:$0xff] 0.0
        $region99: #{collnet_forward.2} parent=86 // pred_fallthru
          _
        %v613 = vld [vmem:[%s537] sm:$0xff]
        %v614 = vld [vmem:[%s537 + $0x8] sm:$0xff]
        %v615 = vld [vmem:[%s537 + $0x10] sm:$0xff]
        %v616 = vld [vmem:[%s537 + $0x18] sm:$0xff]
        %v617 = vld [vmem:[%s537 + $0x20] sm:$0xff]
        %v618 = vld [vmem:[%s537 + $0x28] sm:$0xff]
        %v619 = vld [vmem:[%s537 + $0x30] sm:$0xff]
        %v620 = vld [vmem:[%s537 + $0x38] sm:$0xff]
        %s621 = scalar_lea.vmem %s537, 64 [#allocation3]
        %v622 = vld [vmem:[%s621] sm:$0xff]
        %v623 = vld [vmem:[%s621 + $0x8] sm:$0xff]
        %v624 = vld [vmem:[%s621 + $0x10] sm:$0xff]
        %v625 = vld [vmem:[%s621 + $0x18] sm:$0xff]
        %v626 = vld [vmem:[%s621 + $0x20] sm:$0xff]
        %v627 = vld [vmem:[%s621 + $0x28] sm:$0xff]
        %v628 = vld [vmem:[%s621 + $0x30] sm:$0xff]
        %v629 = vld [vmem:[%s621 + $0x38] sm:$0xff]
        %v630 = vld [vmem:[%s545] sm:$0xff]
        %v631 = vld [vmem:[%s545 + $0x8] sm:$0xff]
        %v632 = vld [vmem:[%s545 + $0x10] sm:$0xff]
        %v633 = vld [vmem:[%s545 + $0x18] sm:$0xff]
        %v634 = vunpack.c.l.bf16 %v630
        %v635 = vunpack.c.h.bf16 %v630
        %v636 = vunpack.c.l.bf16 %v631
        %v637 = vunpack.c.h.bf16 %v631
        %v638 = vunpack.c.l.bf16 %v632
        %v639 = vunpack.c.h.bf16 %v632
        %v640 = vunpack.c.l.bf16 %v633
        %v641 = vunpack.c.h.bf16 %v633
        %v642 = vmul.f32 %v613, %v634
        %v643 = vmul.f32 %v614, %v635
        %v644 = vmul.f32 %v615, %v636
        %v645 = vmul.f32 %v616, %v637
        %v646 = vmul.f32 %v617, %v638
        %v647 = vmul.f32 %v618, %v639
        %v648 = vmul.f32 %v619, %v640
        %v649 = vmul.f32 %v620, %v641
        %v650 = vadd.f32 %v642, %v646
        %v651 = vrot.slane %v650, 4
        %v652 = vadd.f32 %v650, %v651
        %v653 = vrot.slane %v652, 2
        %v654 = vadd.f32 %v652, %v653
        %v655 = vrot.slane %v654, 1
        %v656 = vadd.f32 %v654, %v655
        %v657 = vadd.f32 %v643, %v647
        %v658 = vrot.slane %v657, 4
        %v659 = vadd.f32 %v657, %v658
        %v660 = vrot.slane %v659, 2
        %v661 = vadd.f32 %v659, %v660
        %v662 = vrot.slane %v661, 1
        %v663 = vadd.f32 %v661, %v662
        %v664 = vadd.f32 %v644, %v648
        %v665 = vrot.slane %v664, 4
        %v666 = vadd.f32 %v664, %v665
        %v667 = vrot.slane %v666, 2
        %v668 = vadd.f32 %v666, %v667
        %v669 = vrot.slane %v668, 1
        %v670 = vadd.f32 %v668, %v669
        %v671 = vadd.f32 %v645, %v649
        %v672 = vrot.slane %v671, 4
        %v673 = vadd.f32 %v671, %v672
        %v674 = vrot.slane %v673, 2
        %v675 = vadd.f32 %v673, %v674
        %v676 = vrot.slane %v675, 1
        %v677 = vadd.f32 %v675, %v676
        %v678 = vld [vmem:[#allocation2] ss:$8 sm:$0xf]
        %v683 = vcombine.low %v656, %v663
        %v684 = vcombine.low %v670, %v677
        %v686 = vunpack.c.l.s4 1966171168
        %v687 = vunpack.c.0.s8 %v686
        %v688 = vlaneseq
        %v689 = vshrl.u32 %v688, 7
        %v690 = vsub.s32 %v687, %v689
        %v691 = vrot.slane %v683, %v690
        %v693 = vunpack.c.l.s4 1966171168
        %v694 = vunpack.c.0.s8 %v693
        %v695 = vlaneseq
        %v696 = vshrl.u32 %v695, 7
        %v697 = vsub.s32 %v694, %v696
        %v698 = vrot.slane %v684, %v697
        %v699 = vcombine.low %v691, %v698
        %v701 = vunpack.c.l.s4 1966171168
        %v702 = vunpack.c.0.s8 %v701
        %v703 = vlaneseq
        %v704 = vshrl.u32 %v703, 7
        %v705 = vsub.s32 %v702, %v704
        %v706 = vrot.slane %v699, %v705
        %v708 = vadd.f32 %v678, %v706
        %v709 = vlaneseq
        %vm710 = vcmp.ge.s32.totalorder %v709, 0
        %vm711 = vcmp.lt.s32.totalorder %v709, 512
        %vm712 = vmand %vm710, %vm711
        %713 = vst.msk [vmem:[#allocation2] ss:$8 sm:$0xf] %vm712, %v708
        %714 = vst.msk [vmem:[#allocation2] ss:$8 sm:$0x0] %vm712, %v708
        %v715 = vmul.f32 %v622, %v634
        %v716 = vmul.f32 %v623, %v635
        %v717 = vmul.f32 %v624, %v636
        %v718 = vmul.f32 %v625, %v637
        %v719 = vmul.f32 %v626, %v638
        %v720 = vmul.f32 %v627, %v639
        %v721 = vmul.f32 %v628, %v640
        %v722 = vmul.f32 %v629, %v641
        %v723 = vadd.f32 %v715, %v719
        %v724 = vrot.slane %v723, 4
        %v725 = vadd.f32 %v723, %v724
        %v726 = vrot.slane %v725, 2
        %v727 = vadd.f32 %v725, %v726
        %v728 = vrot.slane %v727, 1
        %v729 = vadd.f32 %v727, %v728
        %v730 = vadd.f32 %v716, %v720
        %v731 = vrot.slane %v730, 4
        %v732 = vadd.f32 %v730, %v731
        %v733 = vrot.slane %v732, 2
        %v734 = vadd.f32 %v732, %v733
        %v735 = vrot.slane %v734, 1
        %v736 = vadd.f32 %v734, %v735
        %v737 = vadd.f32 %v717, %v721
        %v738 = vrot.slane %v737, 4
        %v739 = vadd.f32 %v737, %v738
        %v740 = vrot.slane %v739, 2
        %v741 = vadd.f32 %v739, %v740
        %v742 = vrot.slane %v741, 1
        %v743 = vadd.f32 %v741, %v742
        %v744 = vadd.f32 %v718, %v722
        %v745 = vrot.slane %v744, 4
        %v746 = vadd.f32 %v744, %v745
        %v747 = vrot.slane %v746, 2
        %v748 = vadd.f32 %v746, %v747
        %v749 = vrot.slane %v748, 1
        %v750 = vadd.f32 %v748, %v749
        %s751 = scalar_lea.vmem [#allocation2], 64
        %v752 = vld [vmem:[%s751] ss:$8 sm:$0xf]
        %v757 = vcombine.low %v729, %v736
        %v758 = vcombine.low %v743, %v750
        %v760 = vunpack.c.l.s4 1966171168
        %v761 = vunpack.c.0.s8 %v760
        %v762 = vlaneseq
        %v763 = vshrl.u32 %v762, 7
        %v764 = vsub.s32 %v761, %v763
        %v765 = vrot.slane %v757, %v764
        %v767 = vunpack.c.l.s4 1966171168
        %v768 = vunpack.c.0.s8 %v767
        %v769 = vlaneseq
        %v770 = vshrl.u32 %v769, 7
        %v771 = vsub.s32 %v768, %v770
        %v772 = vrot.slane %v758, %v771
        %v773 = vcombine.low %v765, %v772
        %v775 = vunpack.c.l.s4 1966171168
        %v776 = vunpack.c.0.s8 %v775
        %v777 = vlaneseq
        %v778 = vshrl.u32 %v777, 7
        %v779 = vsub.s32 %v776, %v778
        %v780 = vrot.slane %v773, %v779
        %v782 = vadd.f32 %v752, %v780
        %783 = vst.msk [vmem:[%s751] ss:$8 sm:$0xf] %vm712, %v782
        %784 = vst.msk [vmem:[%s751] ss:$8 sm:$0x0] %vm712, %v782
        %s785 = scalar_lea.vmem %s545, 32 [#allocation4]
        %v786 = vld [vmem:[%s785] sm:$0xff]
        %v787 = vld [vmem:[%s785 + $0x8] sm:$0xff]
        %v788 = vld [vmem:[%s785 + $0x10] sm:$0xff]
        %v789 = vld [vmem:[%s785 + $0x18] sm:$0xff]
        %v790 = vunpack.c.l.bf16 %v786
        %v791 = vunpack.c.h.bf16 %v786
        %v792 = vunpack.c.l.bf16 %v787
        %v793 = vunpack.c.h.bf16 %v787
        %v794 = vunpack.c.l.bf16 %v788
        %v795 = vunpack.c.h.bf16 %v788
        %v796 = vunpack.c.l.bf16 %v789
        %v797 = vunpack.c.h.bf16 %v789
        %v798 = vmul.f32 %v613, %v790
        %v799 = vmul.f32 %v614, %v791
        %v800 = vmul.f32 %v615, %v792
        %v801 = vmul.f32 %v616, %v793
        %v802 = vmul.f32 %v617, %v794
        %v803 = vmul.f32 %v618, %v795
        %v804 = vmul.f32 %v619, %v796
        %v805 = vmul.f32 %v620, %v797
        %v806 = vadd.f32 %v798, %v802
        %v807 = vrot.slane %v806, 4
        %v808 = vadd.f32 %v806, %v807
        %v809 = vrot.slane %v808, 2
        %v810 = vadd.f32 %v808, %v809
        %v811 = vrot.slane %v810, 1
        %v812 = vadd.f32 %v810, %v811
        %v813 = vadd.f32 %v799, %v803
        %v814 = vrot.slane %v813, 4
        %v815 = vadd.f32 %v813, %v814
        %v816 = vrot.slane %v815, 2
        %v817 = vadd.f32 %v815, %v816
        %v818 = vrot.slane %v817, 1
        %v819 = vadd.f32 %v817, %v818
        %v820 = vadd.f32 %v800, %v804
        %v821 = vrot.slane %v820, 4
        %v822 = vadd.f32 %v820, %v821
        %v823 = vrot.slane %v822, 2
        %v824 = vadd.f32 %v822, %v823
        %v825 = vrot.slane %v824, 1
        %v826 = vadd.f32 %v824, %v825
        %v827 = vadd.f32 %v801, %v805
        %v828 = vrot.slane %v827, 4
        %v829 = vadd.f32 %v827, %v828
        %v830 = vrot.slane %v829, 2
        %v831 = vadd.f32 %v829, %v830
        %v832 = vrot.slane %v831, 1
        %v833 = vadd.f32 %v831, %v832
        %s834 = scalar_lea.vmem [#allocation2], 1
        %v835 = vld [vmem:[%s834] ss:$8 sm:$0xf]
        %v840 = vcombine.low %v812, %v819
        %v841 = vcombine.low %v826, %v833
        %v843 = vunpack.c.l.s4 1966171168
        %v844 = vunpack.c.0.s8 %v843
        %v845 = vlaneseq
        %v846 = vshrl.u32 %v845, 7
        %v847 = vsub.s32 %v844, %v846
        %v848 = vrot.slane %v840, %v847
        %v850 = vunpack.c.l.s4 1966171168
        %v851 = vunpack.c.0.s8 %v850
        %v852 = vlaneseq
        %v853 = vshrl.u32 %v852, 7
        %v854 = vsub.s32 %v851, %v853
        %v855 = vrot.slane %v841, %v854
        %v856 = vcombine.low %v848, %v855
        %v858 = vunpack.c.l.s4 1966171168
        %v859 = vunpack.c.0.s8 %v858
        %v860 = vlaneseq
        %v861 = vshrl.u32 %v860, 7
        %v862 = vsub.s32 %v859, %v861
        %v863 = vrot.slane %v856, %v862
        %v865 = vadd.f32 %v835, %v863
        %866 = vst.msk [vmem:[%s834] ss:$8 sm:$0xf] %vm712, %v865
        %867 = vst.msk [vmem:[%s834] ss:$8 sm:$0x0] %vm712, %v865
        %v868 = vmul.f32 %v622, %v790
        %v869 = vmul.f32 %v623, %v791
        %v870 = vmul.f32 %v624, %v792
        %v871 = vmul.f32 %v625, %v793
        %v872 = vmul.f32 %v626, %v794
        %v873 = vmul.f32 %v627, %v795
        %v874 = vmul.f32 %v628, %v796
        %v875 = vmul.f32 %v629, %v797
        %v876 = vadd.f32 %v868, %v872
        %v877 = vrot.slane %v876, 4
        %v878 = vadd.f32 %v876, %v877
        %v879 = vrot.slane %v878, 2
        %v880 = vadd.f32 %v878, %v879
        %v881 = vrot.slane %v880, 1
        %v882 = vadd.f32 %v880, %v881
        %v883 = vadd.f32 %v869, %v873
        %v884 = vrot.slane %v883, 4
        %v885 = vadd.f32 %v883, %v884
        %v886 = vrot.slane %v885, 2
        %v887 = vadd.f32 %v885, %v886
        %v888 = vrot.slane %v887, 1
        %v889 = vadd.f32 %v887, %v888
        %v890 = vadd.f32 %v870, %v874
        %v891 = vrot.slane %v890, 4
        %v892 = vadd.f32 %v890, %v891
        %v893 = vrot.slane %v892, 2
        %v894 = vadd.f32 %v892, %v893
        %v895 = vrot.slane %v894, 1
        %v896 = vadd.f32 %v894, %v895
        %v897 = vadd.f32 %v871, %v875
        %v898 = vrot.slane %v897, 4
        %v899 = vadd.f32 %v897, %v898
        %v900 = vrot.slane %v899, 2
        %v901 = vadd.f32 %v899, %v900
        %v902 = vrot.slane %v901, 1
        %v903 = vadd.f32 %v901, %v902
        %s904 = scalar_lea.vmem %s751, 1 [#allocation2]
        %v905 = vld [vmem:[%s904] ss:$8 sm:$0xf]
        %v910 = vcombine.low %v882, %v889
        %v911 = vcombine.low %v896, %v903
        %v913 = vunpack.c.l.s4 1966171168
        %v914 = vunpack.c.0.s8 %v913
        %v915 = vlaneseq
        %v916 = vshrl.u32 %v915, 7
        %v917 = vsub.s32 %v914, %v916
        %v918 = vrot.slane %v910, %v917
        %v920 = vunpack.c.l.s4 1966171168
        %v921 = vunpack.c.0.s8 %v920
        %v922 = vlaneseq
        %v923 = vshrl.u32 %v922, 7
        %v924 = vsub.s32 %v921, %v923
        %v925 = vrot.slane %v911, %v924
        %v926 = vcombine.low %v918, %v925
        %v928 = vunpack.c.l.s4 1966171168
        %v929 = vunpack.c.0.s8 %v928
        %v930 = vlaneseq
        %v931 = vshrl.u32 %v930, 7
        %v932 = vsub.s32 %v929, %v931
        %v933 = vrot.slane %v926, %v932
        %v935 = vadd.f32 %v905, %v933
        %936 = vst.msk [vmem:[%s904] ss:$8 sm:$0xf] %vm712, %v935
        %937 = vst.msk [vmem:[%s904] ss:$8 sm:$0x0] %vm712, %v935
        %s938 = scalar_lea.vmem %s545, 64 [#allocation4]
        %v939 = vld [vmem:[%s938] sm:$0xff]
        %v940 = vld [vmem:[%s938 + $0x8] sm:$0xff]
        %v941 = vld [vmem:[%s938 + $0x10] sm:$0xff]
        %v942 = vld [vmem:[%s938 + $0x18] sm:$0xff]
        %v943 = vunpack.c.l.bf16 %v939
        %v944 = vunpack.c.h.bf16 %v939
        %v945 = vunpack.c.l.bf16 %v940
        %v946 = vunpack.c.h.bf16 %v940
        %v947 = vunpack.c.l.bf16 %v941
        %v948 = vunpack.c.h.bf16 %v941
        %v949 = vunpack.c.l.bf16 %v942
        %v950 = vunpack.c.h.bf16 %v942
        %v951 = vmul.f32 %v613, %v943
        %v952 = vmul.f32 %v614, %v944
        %v953 = vmul.f32 %v615, %v945
        %v954 = vmul.f32 %v616, %v946
        %v955 = vmul.f32 %v617, %v947
        %v956 = vmul.f32 %v618, %v948
        %v957 = vmul.f32 %v619, %v949
        %v958 = vmul.f32 %v620, %v950
        %v959 = vadd.f32 %v951, %v955
        %v960 = vrot.slane %v959, 4
        %v961 = vadd.f32 %v959, %v960
        %v962 = vrot.slane %v961, 2
        %v963 = vadd.f32 %v961, %v962
        %v964 = vrot.slane %v963, 1
        %v965 = vadd.f32 %v963, %v964
        %v966 = vadd.f32 %v952, %v956
        %v967 = vrot.slane %v966, 4
        %v968 = vadd.f32 %v966, %v967
        %v969 = vrot.slane %v968, 2
        %v970 = vadd.f32 %v968, %v969
        %v971 = vrot.slane %v970, 1
        %v972 = vadd.f32 %v970, %v971
        %v973 = vadd.f32 %v953, %v957
        %v974 = vrot.slane %v973, 4
        %v975 = vadd.f32 %v973, %v974
        %v976 = vrot.slane %v975, 2
        %v977 = vadd.f32 %v975, %v976
        %v978 = vrot.slane %v977, 1
        %v979 = vadd.f32 %v977, %v978
        %v980 = vadd.f32 %v954, %v958
        %v981 = vrot.slane %v980, 4
        %v982 = vadd.f32 %v980, %v981
        %v983 = vrot.slane %v982, 2
        %v984 = vadd.f32 %v982, %v983
        %v985 = vrot.slane %v984, 1
        %v986 = vadd.f32 %v984, %v985
        %s987 = scalar_lea.vmem [#allocation2], 2
        %v988 = vld [vmem:[%s987] ss:$8 sm:$0xf]
        %v993 = vcombine.low %v965, %v972
        %v994 = vcombine.low %v979, %v986
        %v996 = vunpack.c.l.s4 1966171168
        %v997 = vunpack.c.0.s8 %v996
        %v998 = vlaneseq
        %v999 = vshrl.u32 %v998, 7
        %v1000 = vsub.s32 %v997, %v999
        %v1001 = vrot.slane %v993, %v1000
        %v1003 = vunpack.c.l.s4 1966171168
        %v1004 = vunpack.c.0.s8 %v1003
        %v1005 = vlaneseq
        %v1006 = vshrl.u32 %v1005, 7
        %v1007 = vsub.s32 %v1004, %v1006
        %v1008 = vrot.slane %v994, %v1007
        %v1009 = vcombine.low %v1001, %v1008
        %v1011 = vunpack.c.l.s4 1966171168
        %v1012 = vunpack.c.0.s8 %v1011
        %v1013 = vlaneseq
        %v1014 = vshrl.u32 %v1013, 7
        %v1015 = vsub.s32 %v1012, %v1014
        %v1016 = vrot.slane %v1009, %v1015
        %v1018 = vadd.f32 %v988, %v1016
        %1019 = vst.msk [vmem:[%s987] ss:$8 sm:$0xf] %vm712, %v1018
        %1020 = vst.msk [vmem:[%s987] ss:$8 sm:$0x0] %vm712, %v1018
        %v1021 = vmul.f32 %v622, %v943
        %v1022 = vmul.f32 %v623, %v944
        %v1023 = vmul.f32 %v624, %v945
        %v1024 = vmul.f32 %v625, %v946
        %v1025 = vmul.f32 %v626, %v947
        %v1026 = vmul.f32 %v627, %v948
        %v1027 = vmul.f32 %v628, %v949
        %v1028 = vmul.f32 %v629, %v950
        %v1029 = vadd.f32 %v1021, %v1025
        %v1030 = vrot.slane %v1029, 4
        %v1031 = vadd.f32 %v1029, %v1030
        %v1032 = vrot.slane %v1031, 2
        %v1033 = vadd.f32 %v1031, %v1032
        %v1034 = vrot.slane %v1033, 1
        %v1035 = vadd.f32 %v1033, %v1034
        %v1036 = vadd.f32 %v1022, %v1026
        %v1037 = vrot.slane %v1036, 4
        %v1038 = vadd.f32 %v1036, %v1037
        %v1039 = vrot.slane %v1038, 2
        %v1040 = vadd.f32 %v1038, %v1039
        %v1041 = vrot.slane %v1040, 1
        %v1042 = vadd.f32 %v1040, %v1041
        %v1043 = vadd.f32 %v1023, %v1027
        %v1044 = vrot.slane %v1043, 4
        %v1045 = vadd.f32 %v1043, %v1044
        %v1046 = vrot.slane %v1045, 2
        %v1047 = vadd.f32 %v1045, %v1046
        %v1048 = vrot.slane %v1047, 1
        %v1049 = vadd.f32 %v1047, %v1048
        %v1050 = vadd.f32 %v1024, %v1028
        %v1051 = vrot.slane %v1050, 4
        %v1052 = vadd.f32 %v1050, %v1051
        %v1053 = vrot.slane %v1052, 2
        %v1054 = vadd.f32 %v1052, %v1053
        %v1055 = vrot.slane %v1054, 1
        %v1056 = vadd.f32 %v1054, %v1055
        %s1057 = scalar_lea.vmem %s751, 2 [#allocation2]
        %v1058 = vld [vmem:[%s1057] ss:$8 sm:$0xf]
        %v1063 = vcombine.low %v1035, %v1042
        %v1064 = vcombine.low %v1049, %v1056
        %v1066 = vunpack.c.l.s4 1966171168
        %v1067 = vunpack.c.0.s8 %v1066
        %v1068 = vlaneseq
        %v1069 = vshrl.u32 %v1068, 7
        %v1070 = vsub.s32 %v1067, %v1069
        %v1071 = vrot.slane %v1063, %v1070
        %v1073 = vunpack.c.l.s4 1966171168
        %v1074 = vunpack.c.0.s8 %v1073
        %v1075 = vlaneseq
        %v1076 = vshrl.u32 %v1075, 7
        %v1077 = vsub.s32 %v1074, %v1076
        %v1078 = vrot.slane %v1064, %v1077
        %v1079 = vcombine.low %v1071, %v1078
        %v1081 = vunpack.c.l.s4 1966171168
        %v1082 = vunpack.c.0.s8 %v1081
        %v1083 = vlaneseq
        %v1084 = vshrl.u32 %v1083, 7
        %v1085 = vsub.s32 %v1082, %v1084
        %v1086 = vrot.slane %v1079, %v1085
        %v1088 = vadd.f32 %v1058, %v1086
        %1089 = vst.msk [vmem:[%s1057] ss:$8 sm:$0xf] %vm712, %v1088
        %1090 = vst.msk [vmem:[%s1057] ss:$8 sm:$0x0] %vm712, %v1088
        %s1091 = scalar_lea.vmem %s545, 96 [#allocation4]
        %v1092 = vld [vmem:[%s1091] sm:$0xff]
        %v1093 = vld [vmem:[%s1091 + $0x8] sm:$0xff]
        %v1094 = vld [vmem:[%s1091 + $0x10] sm:$0xff]
        %v1095 = vld [vmem:[%s1091 + $0x18] sm:$0xff]
        %v1096 = vunpack.c.l.bf16 %v1092
        %v1097 = vunpack.c.h.bf16 %v1092
        %v1098 = vunpack.c.l.bf16 %v1093
        %v1099 = vunpack.c.h.bf16 %v1093
        %v1100 = vunpack.c.l.bf16 %v1094
        %v1101 = vunpack.c.h.bf16 %v1094
        %v1102 = vunpack.c.l.bf16 %v1095
        %v1103 = vunpack.c.h.bf16 %v1095
        %v1104 = vmul.f32 %v613, %v1096
        %v1105 = vmul.f32 %v614, %v1097
        %v1106 = vmul.f32 %v615, %v1098
        %v1107 = vmul.f32 %v616, %v1099
        %v1108 = vmul.f32 %v617, %v1100
        %v1109 = vmul.f32 %v618, %v1101
        %v1110 = vmul.f32 %v619, %v1102
        %v1111 = vmul.f32 %v620, %v1103
        %v1112 = vadd.f32 %v1104, %v1108
        %v1113 = vrot.slane %v1112, 4
        %v1114 = vadd.f32 %v1112, %v1113
        %v1115 = vrot.slane %v1114, 2
        %v1116 = vadd.f32 %v1114, %v1115
        %v1117 = vrot.slane %v1116, 1
        %v1118 = vadd.f32 %v1116, %v1117
        %v1119 = vadd.f32 %v1105, %v1109
        %v1120 = vrot.slane %v1119, 4
        %v1121 = vadd.f32 %v1119, %v1120
        %v1122 = vrot.slane %v1121, 2
        %v1123 = vadd.f32 %v1121, %v1122
        %v1124 = vrot.slane %v1123, 1
        %v1125 = vadd.f32 %v1123, %v1124
        %v1126 = vadd.f32 %v1106, %v1110
        %v1127 = vrot.slane %v1126, 4
        %v1128 = vadd.f32 %v1126, %v1127
        %v1129 = vrot.slane %v1128, 2
        %v1130 = vadd.f32 %v1128, %v1129
        %v1131 = vrot.slane %v1130, 1
        %v1132 = vadd.f32 %v1130, %v1131
        %v1133 = vadd.f32 %v1107, %v1111
        %v1134 = vrot.slane %v1133, 4
        %v1135 = vadd.f32 %v1133, %v1134
        %v1136 = vrot.slane %v1135, 2
        %v1137 = vadd.f32 %v1135, %v1136
        %v1138 = vrot.slane %v1137, 1
        %v1139 = vadd.f32 %v1137, %v1138
        %s1140 = scalar_lea.vmem [#allocation2], 3
        %v1141 = vld [vmem:[%s1140] ss:$8 sm:$0xf]
        %v1146 = vcombine.low %v1118, %v1125
        %v1147 = vcombine.low %v1132, %v1139
        %v1149 = vunpack.c.l.s4 1966171168
        %v1150 = vunpack.c.0.s8 %v1149
        %v1151 = vlaneseq
        %v1152 = vshrl.u32 %v1151, 7
        %v1153 = vsub.s32 %v1150, %v1152
        %v1154 = vrot.slane %v1146, %v1153
        %v1156 = vunpack.c.l.s4 1966171168
        %v1157 = vunpack.c.0.s8 %v1156
        %v1158 = vlaneseq
        %v1159 = vshrl.u32 %v1158, 7
        %v1160 = vsub.s32 %v1157, %v1159
        %v1161 = vrot.slane %v1147, %v1160
        %v1162 = vcombine.low %v1154, %v1161
        %v1164 = vunpack.c.l.s4 1966171168
        %v1165 = vunpack.c.0.s8 %v1164
        %v1166 = vlaneseq
        %v1167 = vshrl.u32 %v1166, 7
        %v1168 = vsub.s32 %v1165, %v1167
        %v1169 = vrot.slane %v1162, %v1168
        %v1171 = vadd.f32 %v1141, %v1169
        %1172 = vst.msk [vmem:[%s1140] ss:$8 sm:$0xf] %vm712, %v1171
        %1173 = vst.msk [vmem:[%s1140] ss:$8 sm:$0x0] %vm712, %v1171
        %v1174 = vmul.f32 %v622, %v1096
        %v1175 = vmul.f32 %v623, %v1097
        %v1176 = vmul.f32 %v624, %v1098
        %v1177 = vmul.f32 %v625, %v1099
        %v1178 = vmul.f32 %v626, %v1100
        %v1179 = vmul.f32 %v627, %v1101
        %v1180 = vmul.f32 %v628, %v1102
        %v1181 = vmul.f32 %v629, %v1103
        %v1182 = vadd.f32 %v1174, %v1178
        %v1183 = vrot.slane %v1182, 4
        %v1184 = vadd.f32 %v1182, %v1183
        %v1185 = vrot.slane %v1184, 2
        %v1186 = vadd.f32 %v1184, %v1185
        %v1187 = vrot.slane %v1186, 1
        %v1188 = vadd.f32 %v1186, %v1187
        %v1189 = vadd.f32 %v1175, %v1179
        %v1190 = vrot.slane %v1189, 4
        %v1191 = vadd.f32 %v1189, %v1190
        %v1192 = vrot.slane %v1191, 2
        %v1193 = vadd.f32 %v1191, %v1192
        %v1194 = vrot.slane %v1193, 1
        %v1195 = vadd.f32 %v1193, %v1194
        %v1196 = vadd.f32 %v1176, %v1180
        %v1197 = vrot.slane %v1196, 4
        %v1198 = vadd.f32 %v1196, %v1197
        %v1199 = vrot.slane %v1198, 2
        %v1200 = vadd.f32 %v1198, %v1199
        %v1201 = vrot.slane %v1200, 1
        %v1202 = vadd.f32 %v1200, %v1201
        %v1203 = vadd.f32 %v1177, %v1181
        %v1204 = vrot.slane %v1203, 4
        %v1205 = vadd.f32 %v1203, %v1204
        %v1206 = vrot.slane %v1205, 2
        %v1207 = vadd.f32 %v1205, %v1206
        %v1208 = vrot.slane %v1207, 1
        %v1209 = vadd.f32 %v1207, %v1208
        %s1210 = scalar_lea.vmem %s751, 3 [#allocation2]
        %v1211 = vld [vmem:[%s1210] ss:$8 sm:$0xf]
        %v1216 = vcombine.low %v1188, %v1195
        %v1217 = vcombine.low %v1202, %v1209
        %v1219 = vunpack.c.l.s4 1966171168
        %v1220 = vunpack.c.0.s8 %v1219
        %v1221 = vlaneseq
        %v1222 = vshrl.u32 %v1221, 7
        %v1223 = vsub.s32 %v1220, %v1222
        %v1224 = vrot.slane %v1216, %v1223
        %v1226 = vunpack.c.l.s4 1966171168
        %v1227 = vunpack.c.0.s8 %v1226
        %v1228 = vlaneseq
        %v1229 = vshrl.u32 %v1228, 7
        %v1230 = vsub.s32 %v1227, %v1229
        %v1231 = vrot.slane %v1217, %v1230
        %v1232 = vcombine.low %v1224, %v1231
        %v1234 = vunpack.c.l.s4 1966171168
        %v1235 = vunpack.c.0.s8 %v1234
        %v1236 = vlaneseq
        %v1237 = vshrl.u32 %v1236, 7
        %v1238 = vsub.s32 %v1235, %v1237
        %v1239 = vrot.slane %v1232, %v1238
        %v1241 = vadd.f32 %v1211, %v1239
        %1242 = vst.msk [vmem:[%s1210] ss:$8 sm:$0xf] %vm712, %v1241
        %1243 = vst.msk [vmem:[%s1210] ss:$8 sm:$0x0] %vm712, %v1241
        %s1244 = scalar_lea.vmem %s545, 128 [#allocation4]
        %v1245 = vld [vmem:[%s1244] sm:$0xff]
        %v1246 = vld [vmem:[%s1244 + $0x8] sm:$0xff]
        %v1247 = vld [vmem:[%s1244 + $0x10] sm:$0xff]
        %v1248 = vld [vmem:[%s1244 + $0x18] sm:$0xff]
        %v1249 = vunpack.c.l.bf16 %v1245
        %v1250 = vunpack.c.h.bf16 %v1245
        %v1251 = vunpack.c.l.bf16 %v1246
        %v1252 = vunpack.c.h.bf16 %v1246
        %v1253 = vunpack.c.l.bf16 %v1247
        %v1254 = vunpack.c.h.bf16 %v1247
        %v1255 = vunpack.c.l.bf16 %v1248
        %v1256 = vunpack.c.h.bf16 %v1248
        %v1257 = vmul.f32 %v613, %v1249
        %v1258 = vmul.f32 %v614, %v1250
        %v1259 = vmul.f32 %v615, %v1251
        %v1260 = vmul.f32 %v616, %v1252
        %v1261 = vmul.f32 %v617, %v1253
        %v1262 = vmul.f32 %v618, %v1254
        %v1263 = vmul.f32 %v619, %v1255
        %v1264 = vmul.f32 %v620, %v1256
        %v1265 = vadd.f32 %v1257, %v1261
        %v1266 = vrot.slane %v1265, 4
        %v1267 = vadd.f32 %v1265, %v1266
        %v1268 = vrot.slane %v1267, 2
        %v1269 = vadd.f32 %v1267, %v1268
        %v1270 = vrot.slane %v1269, 1
        %v1271 = vadd.f32 %v1269, %v1270
        %v1272 = vadd.f32 %v1258, %v1262
        %v1273 = vrot.slane %v1272, 4
        %v1274 = vadd.f32 %v1272, %v1273
        %v1275 = vrot.slane %v1274, 2
        %v1276 = vadd.f32 %v1274, %v1275
        %v1277 = vrot.slane %v1276, 1
        %v1278 = vadd.f32 %v1276, %v1277
        %v1279 = vadd.f32 %v1259, %v1263
        %v1280 = vrot.slane %v1279, 4
        %v1281 = vadd.f32 %v1279, %v1280
        %v1282 = vrot.slane %v1281, 2
        %v1283 = vadd.f32 %v1281, %v1282
        %v1284 = vrot.slane %v1283, 1
        %v1285 = vadd.f32 %v1283, %v1284
        %v1286 = vadd.f32 %v1260, %v1264
        %v1287 = vrot.slane %v1286, 4
        %v1288 = vadd.f32 %v1286, %v1287
        %v1289 = vrot.slane %v1288, 2
        %v1290 = vadd.f32 %v1288, %v1289
        %v1291 = vrot.slane %v1290, 1
        %v1292 = vadd.f32 %v1290, %v1291
        %s1293 = scalar_lea.vmem [#allocation2], 4
        %v1294 = vld [vmem:[%s1293] ss:$8 sm:$0xf]
        %v1299 = vcombine.low %v1271, %v1278
        %v1300 = vcombine.low %v1285, %v1292
        %v1302 = vunpack.c.l.s4 1966171168
        %v1303 = vunpack.c.0.s8 %v1302
        %v1304 = vlaneseq
        %v1305 = vshrl.u32 %v1304, 7
        %v1306 = vsub.s32 %v1303, %v1305
        %v1307 = vrot.slane %v1299, %v1306
        %v1309 = vunpack.c.l.s4 1966171168
        %v1310 = vunpack.c.0.s8 %v1309
        %v1311 = vlaneseq
        %v1312 = vshrl.u32 %v1311, 7
        %v1313 = vsub.s32 %v1310, %v1312
        %v1314 = vrot.slane %v1300, %v1313
        %v1315 = vcombine.low %v1307, %v1314
        %v1317 = vunpack.c.l.s4 1966171168
        %v1318 = vunpack.c.0.s8 %v1317
        %v1319 = vlaneseq
        %v1320 = vshrl.u32 %v1319, 7
        %v1321 = vsub.s32 %v1318, %v1320
        %v1322 = vrot.slane %v1315, %v1321
        %v1324 = vadd.f32 %v1294, %v1322
        %1325 = vst.msk [vmem:[%s1293] ss:$8 sm:$0xf] %vm712, %v1324
        %1326 = vst.msk [vmem:[%s1293] ss:$8 sm:$0x0] %vm712, %v1324
        %v1327 = vmul.f32 %v622, %v1249
        %v1328 = vmul.f32 %v623, %v1250
        %v1329 = vmul.f32 %v624, %v1251
        %v1330 = vmul.f32 %v625, %v1252
        %v1331 = vmul.f32 %v626, %v1253
        %v1332 = vmul.f32 %v627, %v1254
        %v1333 = vmul.f32 %v628, %v1255
        %v1334 = vmul.f32 %v629, %v1256
        %v1335 = vadd.f32 %v1327, %v1331
        %v1336 = vrot.slane %v1335, 4
        %v1337 = vadd.f32 %v1335, %v1336
        %v1338 = vrot.slane %v1337, 2
        %v1339 = vadd.f32 %v1337, %v1338
        %v1340 = vrot.slane %v1339, 1
        %v1341 = vadd.f32 %v1339, %v1340
        %v1342 = vadd.f32 %v1328, %v1332
        %v1343 = vrot.slane %v1342, 4
        %v1344 = vadd.f32 %v1342, %v1343
        %v1345 = vrot.slane %v1344, 2
        %v1346 = vadd.f32 %v1344, %v1345
        %v1347 = vrot.slane %v1346, 1
        %v1348 = vadd.f32 %v1346, %v1347
        %v1349 = vadd.f32 %v1329, %v1333
        %v1350 = vrot.slane %v1349, 4
        %v1351 = vadd.f32 %v1349, %v1350
        %v1352 = vrot.slane %v1351, 2
        %v1353 = vadd.f32 %v1351, %v1352
        %v1354 = vrot.slane %v1353, 1
        %v1355 = vadd.f32 %v1353, %v1354
        %v1356 = vadd.f32 %v1330, %v1334
        %v1357 = vrot.slane %v1356, 4
        %v1358 = vadd.f32 %v1356, %v1357
        %v1359 = vrot.slane %v1358, 2
        %v1360 = vadd.f32 %v1358, %v1359
        %v1361 = vrot.slane %v1360, 1
        %v1362 = vadd.f32 %v1360, %v1361
        %s1363 = scalar_lea.vmem %s751, 4 [#allocation2]
        %v1364 = vld [vmem:[%s1363] ss:$8 sm:$0xf]
        %v1369 = vcombine.low %v1341, %v1348
        %v1370 = vcombine.low %v1355, %v1362
        %v1372 = vunpack.c.l.s4 1966171168
        %v1373 = vunpack.c.0.s8 %v1372
        %v1374 = vlaneseq
        %v1375 = vshrl.u32 %v1374, 7
        %v1376 = vsub.s32 %v1373, %v1375
        %v1377 = vrot.slane %v1369, %v1376
        %v1379 = vunpack.c.l.s4 1966171168
        %v1380 = vunpack.c.0.s8 %v1379
        %v1381 = vlaneseq
        %v1382 = vshrl.u32 %v1381, 7
        %v1383 = vsub.s32 %v1380, %v1382
        %v1384 = vrot.slane %v1370, %v1383
        %v1385 = vcombine.low %v1377, %v1384
        %v1387 = vunpack.c.l.s4 1966171168
        %v1388 = vunpack.c.0.s8 %v1387
        %v1389 = vlaneseq
        %v1390 = vshrl.u32 %v1389, 7
        %v1391 = vsub.s32 %v1388, %v1390
        %v1392 = vrot.slane %v1385, %v1391
        %v1394 = vadd.f32 %v1364, %v1392
        %1395 = vst.msk [vmem:[%s1363] ss:$8 sm:$0xf] %vm712, %v1394
        %1396 = vst.msk [vmem:[%s1363] ss:$8 sm:$0x0] %vm712, %v1394
        %s1397 = scalar_lea.vmem %s545, 160 [#allocation4]
        %v1398 = vld [vmem:[%s1397] sm:$0xff]
        %v1399 = vld [vmem:[%s1397 + $0x8] sm:$0xff]
        %v1400 = vld [vmem:[%s1397 + $0x10] sm:$0xff]
        %v1401 = vld [vmem:[%s1397 + $0x18] sm:$0xff]
        %v1402 = vunpack.c.l.bf16 %v1398
        %v1403 = vunpack.c.h.bf16 %v1398
        %v1404 = vunpack.c.l.bf16 %v1399
        %v1405 = vunpack.c.h.bf16 %v1399
        %v1406 = vunpack.c.l.bf16 %v1400
        %v1407 = vunpack.c.h.bf16 %v1400
        %v1408 = vunpack.c.l.bf16 %v1401
        %v1409 = vunpack.c.h.bf16 %v1401
        %v1410 = vmul.f32 %v613, %v1402
        %v1411 = vmul.f32 %v614, %v1403
        %v1412 = vmul.f32 %v615, %v1404
        %v1413 = vmul.f32 %v616, %v1405
        %v1414 = vmul.f32 %v617, %v1406
        %v1415 = vmul.f32 %v618, %v1407
        %v1416 = vmul.f32 %v619, %v1408
        %v1417 = vmul.f32 %v620, %v1409
        %v1418 = vadd.f32 %v1410, %v1414
        %v1419 = vrot.slane %v1418, 4
        %v1420 = vadd.f32 %v1418, %v1419
        %v1421 = vrot.slane %v1420, 2
        %v1422 = vadd.f32 %v1420, %v1421
        %v1423 = vrot.slane %v1422, 1
        %v1424 = vadd.f32 %v1422, %v1423
        %v1425 = vadd.f32 %v1411, %v1415
        %v1426 = vrot.slane %v1425, 4
        %v1427 = vadd.f32 %v1425, %v1426
        %v1428 = vrot.slane %v1427, 2
        %v1429 = vadd.f32 %v1427, %v1428
        %v1430 = vrot.slane %v1429, 1
        %v1431 = vadd.f32 %v1429, %v1430
        %v1432 = vadd.f32 %v1412, %v1416
        %v1433 = vrot.slane %v1432, 4
        %v1434 = vadd.f32 %v1432, %v1433
        %v1435 = vrot.slane %v1434, 2
        %v1436 = vadd.f32 %v1434, %v1435
        %v1437 = vrot.slane %v1436, 1
        %v1438 = vadd.f32 %v1436, %v1437
        %v1439 = vadd.f32 %v1413, %v1417
        %v1440 = vrot.slane %v1439, 4
        %v1441 = vadd.f32 %v1439, %v1440
        %v1442 = vrot.slane %v1441, 2
        %v1443 = vadd.f32 %v1441, %v1442
        %v1444 = vrot.slane %v1443, 1
        %v1445 = vadd.f32 %v1443, %v1444
        %s1446 = scalar_lea.vmem [#allocation2], 5
        %v1447 = vld [vmem:[%s1446] ss:$8 sm:$0xf]
        %v1452 = vcombine.low %v1424, %v1431
        %v1453 = vcombine.low %v1438, %v1445
        %v1455 = vunpack.c.l.s4 1966171168
        %v1456 = vunpack.c.0.s8 %v1455
        %v1457 = vlaneseq
        %v1458 = vshrl.u32 %v1457, 7
        %v1459 = vsub.s32 %v1456, %v1458
        %v1460 = vrot.slane %v1452, %v1459
        %v1462 = vunpack.c.l.s4 1966171168
        %v1463 = vunpack.c.0.s8 %v1462
        %v1464 = vlaneseq
        %v1465 = vshrl.u32 %v1464, 7
        %v1466 = vsub.s32 %v1463, %v1465
        %v1467 = vrot.slane %v1453, %v1466
        %v1468 = vcombine.low %v1460, %v1467
        %v1470 = vunpack.c.l.s4 1966171168
        %v1471 = vunpack.c.0.s8 %v1470
        %v1472 = vlaneseq
        %v1473 = vshrl.u32 %v1472, 7
        %v1474 = vsub.s32 %v1471, %v1473
        %v1475 = vrot.slane %v1468, %v1474
        %v1477 = vadd.f32 %v1447, %v1475
        %1478 = vst.msk [vmem:[%s1446] ss:$8 sm:$0xf] %vm712, %v1477
        %1479 = vst.msk [vmem:[%s1446] ss:$8 sm:$0x0] %vm712, %v1477
        %v1480 = vmul.f32 %v622, %v1402
        %v1481 = vmul.f32 %v623, %v1403
        %v1482 = vmul.f32 %v624, %v1404
        %v1483 = vmul.f32 %v625, %v1405
        %v1484 = vmul.f32 %v626, %v1406
        %v1485 = vmul.f32 %v627, %v1407
        %v1486 = vmul.f32 %v628, %v1408
        %v1487 = vmul.f32 %v629, %v1409
        %v1488 = vadd.f32 %v1480, %v1484
        %v1489 = vrot.slane %v1488, 4
        %v1490 = vadd.f32 %v1488, %v1489
        %v1491 = vrot.slane %v1490, 2
        %v1492 = vadd.f32 %v1490, %v1491
        %v1493 = vrot.slane %v1492, 1
        %v1494 = vadd.f32 %v1492, %v1493
        %v1495 = vadd.f32 %v1481, %v1485
        %v1496 = vrot.slane %v1495, 4
        %v1497 = vadd.f32 %v1495, %v1496
        %v1498 = vrot.slane %v1497, 2
        %v1499 = vadd.f32 %v1497, %v1498
        %v1500 = vrot.slane %v1499, 1
        %v1501 = vadd.f32 %v1499, %v1500
        %v1502 = vadd.f32 %v1482, %v1486
        %v1503 = vrot.slane %v1502, 4
        %v1504 = vadd.f32 %v1502, %v1503
        %v1505 = vrot.slane %v1504, 2
        %v1506 = vadd.f32 %v1504, %v1505
        %v1507 = vrot.slane %v1506, 1
        %v1508 = vadd.f32 %v1506, %v1507
        %v1509 = vadd.f32 %v1483, %v1487
        %v1510 = vrot.slane %v1509, 4
        %v1511 = vadd.f32 %v1509, %v1510
        %v1512 = vrot.slane %v1511, 2
        %v1513 = vadd.f32 %v1511, %v1512
        %v1514 = vrot.slane %v1513, 1
        %v1515 = vadd.f32 %v1513, %v1514
        %s1516 = scalar_lea.vmem %s751, 5 [#allocation2]
        %v1517 = vld [vmem:[%s1516] ss:$8 sm:$0xf]
        %v1522 = vcombine.low %v1494, %v1501
        %v1523 = vcombine.low %v1508, %v1515
        %v1525 = vunpack.c.l.s4 1966171168
        %v1526 = vunpack.c.0.s8 %v1525
        %v1527 = vlaneseq
        %v1528 = vshrl.u32 %v1527, 7
        %v1529 = vsub.s32 %v1526, %v1528
        %v1530 = vrot.slane %v1522, %v1529
        %v1532 = vunpack.c.l.s4 1966171168
        %v1533 = vunpack.c.0.s8 %v1532
        %v1534 = vlaneseq
        %v1535 = vshrl.u32 %v1534, 7
        %v1536 = vsub.s32 %v1533, %v1535
        %v1537 = vrot.slane %v1523, %v1536
        %v1538 = vcombine.low %v1530, %v1537
        %v1540 = vunpack.c.l.s4 1966171168
        %v1541 = vunpack.c.0.s8 %v1540
        %v1542 = vlaneseq
        %v1543 = vshrl.u32 %v1542, 7
        %v1544 = vsub.s32 %v1541, %v1543
        %v1545 = vrot.slane %v1538, %v1544
        %v1547 = vadd.f32 %v1517, %v1545
        %1548 = vst.msk [vmem:[%s1516] ss:$8 sm:$0xf] %vm712, %v1547
        %1549 = vst.msk [vmem:[%s1516] ss:$8 sm:$0x0] %vm712, %v1547
        %s1550 = scalar_lea.vmem %s545, 192 [#allocation4]
        %v1551 = vld [vmem:[%s1550] sm:$0xff]
        %v1552 = vld [vmem:[%s1550 + $0x8] sm:$0xff]
        %v1553 = vld [vmem:[%s1550 + $0x10] sm:$0xff]
        %v1554 = vld [vmem:[%s1550 + $0x18] sm:$0xff]
        %v1555 = vunpack.c.l.bf16 %v1551
        %v1556 = vunpack.c.h.bf16 %v1551
        %v1557 = vunpack.c.l.bf16 %v1552
        %v1558 = vunpack.c.h.bf16 %v1552
        %v1559 = vunpack.c.l.bf16 %v1553
        %v1560 = vunpack.c.h.bf16 %v1553
        %v1561 = vunpack.c.l.bf16 %v1554
        %v1562 = vunpack.c.h.bf16 %v1554
        %v1563 = vmul.f32 %v613, %v1555
        %v1564 = vmul.f32 %v614, %v1556
        %v1565 = vmul.f32 %v615, %v1557
        %v1566 = vmul.f32 %v616, %v1558
        %v1567 = vmul.f32 %v617, %v1559
        %v1568 = vmul.f32 %v618, %v1560
        %v1569 = vmul.f32 %v619, %v1561
        %v1570 = vmul.f32 %v620, %v1562
        %v1571 = vadd.f32 %v1563, %v1567
        %v1572 = vrot.slane %v1571, 4
        %v1573 = vadd.f32 %v1571, %v1572
        %v1574 = vrot.slane %v1573, 2
        %v1575 = vadd.f32 %v1573, %v1574
        %v1576 = vrot.slane %v1575, 1
        %v1577 = vadd.f32 %v1575, %v1576
        %v1578 = vadd.f32 %v1564, %v1568
        %v1579 = vrot.slane %v1578, 4
        %v1580 = vadd.f32 %v1578, %v1579
        %v1581 = vrot.slane %v1580, 2
        %v1582 = vadd.f32 %v1580, %v1581
        %v1583 = vrot.slane %v1582, 1
        %v1584 = vadd.f32 %v1582, %v1583
        %v1585 = vadd.f32 %v1565, %v1569
        %v1586 = vrot.slane %v1585, 4
        %v1587 = vadd.f32 %v1585, %v1586
        %v1588 = vrot.slane %v1587, 2
        %v1589 = vadd.f32 %v1587, %v1588
        %v1590 = vrot.slane %v1589, 1
        %v1591 = vadd.f32 %v1589, %v1590
        %v1592 = vadd.f32 %v1566, %v1570
        %v1593 = vrot.slane %v1592, 4
        %v1594 = vadd.f32 %v1592, %v1593
        %v1595 = vrot.slane %v1594, 2
        %v1596 = vadd.f32 %v1594, %v1595
        %v1597 = vrot.slane %v1596, 1
        %v1598 = vadd.f32 %v1596, %v1597
        %s1599 = scalar_lea.vmem [#allocation2], 6
        %v1600 = vld [vmem:[%s1599] ss:$8 sm:$0xf]
        %v1605 = vcombine.low %v1577, %v1584
        %v1606 = vcombine.low %v1591, %v1598
        %v1608 = vunpack.c.l.s4 1966171168
        %v1609 = vunpack.c.0.s8 %v1608
        %v1610 = vlaneseq
        %v1611 = vshrl.u32 %v1610, 7
        %v1612 = vsub.s32 %v1609, %v1611
        %v1613 = vrot.slane %v1605, %v1612
        %v1615 = vunpack.c.l.s4 1966171168
        %v1616 = vunpack.c.0.s8 %v1615
        %v1617 = vlaneseq
        %v1618 = vshrl.u32 %v1617, 7
        %v1619 = vsub.s32 %v1616, %v1618
        %v1620 = vrot.slane %v1606, %v1619
        %v1621 = vcombine.low %v1613, %v1620
        %v1623 = vunpack.c.l.s4 1966171168
        %v1624 = vunpack.c.0.s8 %v1623
        %v1625 = vlaneseq
        %v1626 = vshrl.u32 %v1625, 7
        %v1627 = vsub.s32 %v1624, %v1626
        %v1628 = vrot.slane %v1621, %v1627
        %v1630 = vadd.f32 %v1600, %v1628
        %1631 = vst.msk [vmem:[%s1599] ss:$8 sm:$0xf] %vm712, %v1630
        %1632 = vst.msk [vmem:[%s1599] ss:$8 sm:$0x0] %vm712, %v1630
        %v1633 = vmul.f32 %v622, %v1555
        %v1634 = vmul.f32 %v623, %v1556
        %v1635 = vmul.f32 %v624, %v1557
        %v1636 = vmul.f32 %v625, %v1558
        %v1637 = vmul.f32 %v626, %v1559
        %v1638 = vmul.f32 %v627, %v1560
        %v1639 = vmul.f32 %v628, %v1561
        %v1640 = vmul.f32 %v629, %v1562
        %v1641 = vadd.f32 %v1633, %v1637
        %v1642 = vrot.slane %v1641, 4
        %v1643 = vadd.f32 %v1641, %v1642
        %v1644 = vrot.slane %v1643, 2
        %v1645 = vadd.f32 %v1643, %v1644
        %v1646 = vrot.slane %v1645, 1
        %v1647 = vadd.f32 %v1645, %v1646
        %v1648 = vadd.f32 %v1634, %v1638
        %v1649 = vrot.slane %v1648, 4
        %v1650 = vadd.f32 %v1648, %v1649
        %v1651 = vrot.slane %v1650, 2
        %v1652 = vadd.f32 %v1650, %v1651
        %v1653 = vrot.slane %v1652, 1
        %v1654 = vadd.f32 %v1652, %v1653
        %v1655 = vadd.f32 %v1635, %v1639
        %v1656 = vrot.slane %v1655, 4
        %v1657 = vadd.f32 %v1655, %v1656
        %v1658 = vrot.slane %v1657, 2
        %v1659 = vadd.f32 %v1657, %v1658
        %v1660 = vrot.slane %v1659, 1
        %v1661 = vadd.f32 %v1659, %v1660
        %v1662 = vadd.f32 %v1636, %v1640
        %v1663 = vrot.slane %v1662, 4
        %v1664 = vadd.f32 %v1662, %v1663
        %v1665 = vrot.slane %v1664, 2
        %v1666 = vadd.f32 %v1664, %v1665
        %v1667 = vrot.slane %v1666, 1
        %v1668 = vadd.f32 %v1666, %v1667
        %s1669 = scalar_lea.vmem %s751, 6 [#allocation2]
        %v1670 = vld [vmem:[%s1669] ss:$8 sm:$0xf]
        %v1675 = vcombine.low %v1647, %v1654
        %v1676 = vcombine.low %v1661, %v1668
        %v1678 = vunpack.c.l.s4 1966171168
        %v1679 = vunpack.c.0.s8 %v1678
        %v1680 = vlaneseq
        %v1681 = vshrl.u32 %v1680, 7
        %v1682 = vsub.s32 %v1679, %v1681
        %v1683 = vrot.slane %v1675, %v1682
        %v1685 = vunpack.c.l.s4 1966171168
        %v1686 = vunpack.c.0.s8 %v1685
        %v1687 = vlaneseq
        %v1688 = vshrl.u32 %v1687, 7
        %v1689 = vsub.s32 %v1686, %v1688
        %v1690 = vrot.slane %v1676, %v1689
        %v1691 = vcombine.low %v1683, %v1690
        %v1693 = vunpack.c.l.s4 1966171168
        %v1694 = vunpack.c.0.s8 %v1693
        %v1695 = vlaneseq
        %v1696 = vshrl.u32 %v1695, 7
        %v1697 = vsub.s32 %v1694, %v1696
        %v1698 = vrot.slane %v1691, %v1697
        %v1700 = vadd.f32 %v1670, %v1698
        %1701 = vst.msk [vmem:[%s1669] ss:$8 sm:$0xf] %vm712, %v1700
        %1702 = vst.msk [vmem:[%s1669] ss:$8 sm:$0x0] %vm712, %v1700
        %s1703 = scalar_lea.vmem %s545, 224 [#allocation4]
        %v1704 = vld [vmem:[%s1703] sm:$0xff]
        %v1705 = vld [vmem:[%s1703 + $0x8] sm:$0xff]
        %v1706 = vld [vmem:[%s1703 + $0x10] sm:$0xff]
        %v1707 = vld [vmem:[%s1703 + $0x18] sm:$0xff]
        %v1708 = vunpack.c.l.bf16 %v1704
        %v1709 = vunpack.c.h.bf16 %v1704
        %v1710 = vunpack.c.l.bf16 %v1705
        %v1711 = vunpack.c.h.bf16 %v1705
        %v1712 = vunpack.c.l.bf16 %v1706
        %v1713 = vunpack.c.h.bf16 %v1706
        %v1714 = vunpack.c.l.bf16 %v1707
        %v1715 = vunpack.c.h.bf16 %v1707
        %v1716 = vmul.f32 %v613, %v1708
        %v1717 = vmul.f32 %v614, %v1709
        %v1718 = vmul.f32 %v615, %v1710
        %v1719 = vmul.f32 %v616, %v1711
        %v1720 = vmul.f32 %v617, %v1712
        %v1721 = vmul.f32 %v618, %v1713
        %v1722 = vmul.f32 %v619, %v1714
        %v1723 = vmul.f32 %v620, %v1715
        %v1724 = vadd.f32 %v1716, %v1720
        %v1725 = vrot.slane %v1724, 4
        %v1726 = vadd.f32 %v1724, %v1725
        %v1727 = vrot.slane %v1726, 2
        %v1728 = vadd.f32 %v1726, %v1727
        %v1729 = vrot.slane %v1728, 1
        %v1730 = vadd.f32 %v1728, %v1729
        %v1731 = vadd.f32 %v1717, %v1721
        %v1732 = vrot.slane %v1731, 4
        %v1733 = vadd.f32 %v1731, %v1732
        %v1734 = vrot.slane %v1733, 2
        %v1735 = vadd.f32 %v1733, %v1734
        %v1736 = vrot.slane %v1735, 1
        %v1737 = vadd.f32 %v1735, %v1736
        %v1738 = vadd.f32 %v1718, %v1722
        %v1739 = vrot.slane %v1738, 4
        %v1740 = vadd.f32 %v1738, %v1739
        %v1741 = vrot.slane %v1740, 2
        %v1742 = vadd.f32 %v1740, %v1741
        %v1743 = vrot.slane %v1742, 1
        %v1744 = vadd.f32 %v1742, %v1743
        %v1745 = vadd.f32 %v1719, %v1723
        %v1746 = vrot.slane %v1745, 4
        %v1747 = vadd.f32 %v1745, %v1746
        %v1748 = vrot.slane %v1747, 2
        %v1749 = vadd.f32 %v1747, %v1748
        %v1750 = vrot.slane %v1749, 1
        %v1751 = vadd.f32 %v1749, %v1750
        %s1752 = scalar_lea.vmem [#allocation2], 7
        %v1753 = vld [vmem:[%s1752] ss:$8 sm:$0xf]
        %v1758 = vcombine.low %v1730, %v1737
        %v1759 = vcombine.low %v1744, %v1751
        %v1761 = vunpack.c.l.s4 1966171168
        %v1762 = vunpack.c.0.s8 %v1761
        %v1763 = vlaneseq
        %v1764 = vshrl.u32 %v1763, 7
        %v1765 = vsub.s32 %v1762, %v1764
        %v1766 = vrot.slane %v1758, %v1765
        %v1768 = vunpack.c.l.s4 1966171168
        %v1769 = vunpack.c.0.s8 %v1768
        %v1770 = vlaneseq
        %v1771 = vshrl.u32 %v1770, 7
        %v1772 = vsub.s32 %v1769, %v1771
        %v1773 = vrot.slane %v1759, %v1772
        %v1774 = vcombine.low %v1766, %v1773
        %v1776 = vunpack.c.l.s4 1966171168
        %v1777 = vunpack.c.0.s8 %v1776
        %v1778 = vlaneseq
        %v1779 = vshrl.u32 %v1778, 7
        %v1780 = vsub.s32 %v1777, %v1779
        %v1781 = vrot.slane %v1774, %v1780
        %v1783 = vadd.f32 %v1753, %v1781
        %1784 = vst.msk [vmem:[%s1752] ss:$8 sm:$0xf] %vm712, %v1783
        %1785 = vst.msk [vmem:[%s1752] ss:$8 sm:$0x0] %vm712, %v1783
        %v1786 = vmul.f32 %v622, %v1708
        %v1787 = vmul.f32 %v623, %v1709
        %v1788 = vmul.f32 %v624, %v1710
        %v1789 = vmul.f32 %v625, %v1711
        %v1790 = vmul.f32 %v626, %v1712
        %v1791 = vmul.f32 %v627, %v1713
        %v1792 = vmul.f32 %v628, %v1714
        %v1793 = vmul.f32 %v629, %v1715
        %v1794 = vadd.f32 %v1786, %v1790
        %v1795 = vrot.slane %v1794, 4
        %v1796 = vadd.f32 %v1794, %v1795
        %v1797 = vrot.slane %v1796, 2
        %v1798 = vadd.f32 %v1796, %v1797
        %v1799 = vrot.slane %v1798, 1
        %v1800 = vadd.f32 %v1798, %v1799
        %v1801 = vadd.f32 %v1787, %v1791
        %v1802 = vrot.slane %v1801, 4
        %v1803 = vadd.f32 %v1801, %v1802
        %v1804 = vrot.slane %v1803, 2
        %v1805 = vadd.f32 %v1803, %v1804
        %v1806 = vrot.slane %v1805, 1
        %v1807 = vadd.f32 %v1805, %v1806
        %v1808 = vadd.f32 %v1788, %v1792
        %v1809 = vrot.slane %v1808, 4
        %v1810 = vadd.f32 %v1808, %v1809
        %v1811 = vrot.slane %v1810, 2
        %v1812 = vadd.f32 %v1810, %v1811
        %v1813 = vrot.slane %v1812, 1
        %v1814 = vadd.f32 %v1812, %v1813
        %v1815 = vadd.f32 %v1789, %v1793
        %v1816 = vrot.slane %v1815, 4
        %v1817 = vadd.f32 %v1815, %v1816
        %v1818 = vrot.slane %v1817, 2
        %v1819 = vadd.f32 %v1817, %v1818
        %v1820 = vrot.slane %v1819, 1
        %v1821 = vadd.f32 %v1819, %v1820
        %s1822 = scalar_lea.vmem %s751, 7 [#allocation2]
        %v1823 = vld [vmem:[%s1822] ss:$8 sm:$0xf]
        %v1828 = vcombine.low %v1800, %v1807
        %v1829 = vcombine.low %v1814, %v1821
        %v1831 = vunpack.c.l.s4 1966171168
        %v1832 = vunpack.c.0.s8 %v1831
        %v1833 = vlaneseq
        %v1834 = vshrl.u32 %v1833, 7
        %v1835 = vsub.s32 %v1832, %v1834
        %v1836 = vrot.slane %v1828, %v1835
        %v1838 = vunpack.c.l.s4 1966171168
        %v1839 = vunpack.c.0.s8 %v1838
        %v1840 = vlaneseq
        %v1841 = vshrl.u32 %v1840, 7
        %v1842 = vsub.s32 %v1839, %v1841
        %v1843 = vrot.slane %v1829, %v1842
        %v1844 = vcombine.low %v1836, %v1843
        %v1846 = vunpack.c.l.s4 1966171168
        %v1847 = vunpack.c.0.s8 %v1846
        %v1848 = vlaneseq
        %v1849 = vshrl.u32 %v1848, 7
        %v1850 = vsub.s32 %v1847, %v1849
        %v1851 = vrot.slane %v1844, %v1850
        %v1853 = vadd.f32 %v1823, %v1851
        %1854 = vst.msk [vmem:[%s1822] ss:$8 sm:$0xf] %vm712, %v1853
        %1855 = vst.msk [vmem:[%s1822] ss:$8 sm:$0x0] %vm712, %v1853
        %s1856 = scalar_lea.vmem %s545, 256 [#allocation4]
        %v1857 = vld [vmem:[%s1856] sm:$0xff]
        %v1858 = vld [vmem:[%s1856 + $0x8] sm:$0xff]
        %v1859 = vld [vmem:[%s1856 + $0x10] sm:$0xff]
        %v1860 = vld [vmem:[%s1856 + $0x18] sm:$0xff]
        %v1861 = vunpack.c.l.bf16 %v1857
        %v1862 = vunpack.c.h.bf16 %v1857
        %v1863 = vunpack.c.l.bf16 %v1858
        %v1864 = vunpack.c.h.bf16 %v1858
        %v1865 = vunpack.c.l.bf16 %v1859
        %v1866 = vunpack.c.h.bf16 %v1859
        %v1867 = vunpack.c.l.bf16 %v1860
        %v1868 = vunpack.c.h.bf16 %v1860
        %v1869 = vmul.f32 %v613, %v1861
        %v1870 = vmul.f32 %v614, %v1862
        %v1871 = vmul.f32 %v615, %v1863
        %v1872 = vmul.f32 %v616, %v1864
        %v1873 = vmul.f32 %v617, %v1865
        %v1874 = vmul.f32 %v618, %v1866
        %v1875 = vmul.f32 %v619, %v1867
        %v1876 = vmul.f32 %v620, %v1868
        %v1877 = vadd.f32 %v1869, %v1873
        %v1878 = vrot.slane %v1877, 4
        %v1879 = vadd.f32 %v1877, %v1878
        %v1880 = vrot.slane %v1879, 2
        %v1881 = vadd.f32 %v1879, %v1880
        %v1882 = vrot.slane %v1881, 1
        %v1883 = vadd.f32 %v1881, %v1882
        %v1884 = vadd.f32 %v1870, %v1874
        %v1885 = vrot.slane %v1884, 4
        %v1886 = vadd.f32 %v1884, %v1885
        %v1887 = vrot.slane %v1886, 2
        %v1888 = vadd.f32 %v1886, %v1887
        %v1889 = vrot.slane %v1888, 1
        %v1890 = vadd.f32 %v1888, %v1889
        %v1891 = vadd.f32 %v1871, %v1875
        %v1892 = vrot.slane %v1891, 4
        %v1893 = vadd.f32 %v1891, %v1892
        %v1894 = vrot.slane %v1893, 2
        %v1895 = vadd.f32 %v1893, %v1894
        %v1896 = vrot.slane %v1895, 1
        %v1897 = vadd.f32 %v1895, %v1896
        %v1898 = vadd.f32 %v1872, %v1876
        %v1899 = vrot.slane %v1898, 4
        %v1900 = vadd.f32 %v1898, %v1899
        %v1901 = vrot.slane %v1900, 2
        %v1902 = vadd.f32 %v1900, %v1901
        %v1903 = vrot.slane %v1902, 1
        %v1904 = vadd.f32 %v1902, %v1903
        %s1905 = scalar_lea.vmem [#allocation2], 32
        %v1906 = vld [vmem:[%s1905] ss:$8 sm:$0xf]
        %v1911 = vcombine.low %v1883, %v1890
        %v1912 = vcombine.low %v1897, %v1904
        %v1914 = vunpack.c.l.s4 1966171168
        %v1915 = vunpack.c.0.s8 %v1914
        %v1916 = vlaneseq
        %v1917 = vshrl.u32 %v1916, 7
        %v1918 = vsub.s32 %v1915, %v1917
        %v1919 = vrot.slane %v1911, %v1918
        %v1921 = vunpack.c.l.s4 1966171168
        %v1922 = vunpack.c.0.s8 %v1921
        %v1923 = vlaneseq
        %v1924 = vshrl.u32 %v1923, 7
        %v1925 = vsub.s32 %v1922, %v1924
        %v1926 = vrot.slane %v1912, %v1925
        %v1927 = vcombine.low %v1919, %v1926
        %v1929 = vunpack.c.l.s4 1966171168
        %v1930 = vunpack.c.0.s8 %v1929
        %v1931 = vlaneseq
        %v1932 = vshrl.u32 %v1931, 7
        %v1933 = vsub.s32 %v1930, %v1932
        %v1934 = vrot.slane %v1927, %v1933
        %v1936 = vadd.f32 %v1906, %v1934
        %1937 = vst.msk [vmem:[%s1905] ss:$8 sm:$0xf] %vm712, %v1936
        %1938 = vst.msk [vmem:[%s1905] ss:$8 sm:$0x0] %vm712, %v1936
        %v1939 = vmul.f32 %v622, %v1861
        %v1940 = vmul.f32 %v623, %v1862
        %v1941 = vmul.f32 %v624, %v1863
        %v1942 = vmul.f32 %v625, %v1864
        %v1943 = vmul.f32 %v626, %v1865
        %v1944 = vmul.f32 %v627, %v1866
        %v1945 = vmul.f32 %v628, %v1867
        %v1946 = vmul.f32 %v629, %v1868
        %v1947 = vadd.f32 %v1939, %v1943
        %v1948 = vrot.slane %v1947, 4
        %v1949 = vadd.f32 %v1947, %v1948
        %v1950 = vrot.slane %v1949, 2
        %v1951 = vadd.f32 %v1949, %v1950
        %v1952 = vrot.slane %v1951, 1
        %v1953 = vadd.f32 %v1951, %v1952
        %v1954 = vadd.f32 %v1940, %v1944
        %v1955 = vrot.slane %v1954, 4
        %v1956 = vadd.f32 %v1954, %v1955
        %v1957 = vrot.slane %v1956, 2
        %v1958 = vadd.f32 %v1956, %v1957
        %v1959 = vrot.slane %v1958, 1
        %v1960 = vadd.f32 %v1958, %v1959
        %v1961 = vadd.f32 %v1941, %v1945
        %v1962 = vrot.slane %v1961, 4
        %v1963 = vadd.f32 %v1961, %v1962
        %v1964 = vrot.slane %v1963, 2
        %v1965 = vadd.f32 %v1963, %v1964
        %v1966 = vrot.slane %v1965, 1
        %v1967 = vadd.f32 %v1965, %v1966
        %v1968 = vadd.f32 %v1942, %v1946
        %v1969 = vrot.slane %v1968, 4
        %v1970 = vadd.f32 %v1968, %v1969
        %v1971 = vrot.slane %v1970, 2
        %v1972 = vadd.f32 %v1970, %v1971
        %v1973 = vrot.slane %v1972, 1
        %v1974 = vadd.f32 %v1972, %v1973
        %s1975 = scalar_lea.vmem %s751, 32 [#allocation2]
        %v1976 = vld [vmem:[%s1975] ss:$8 sm:$0xf]
        %v1981 = vcombine.low %v1953, %v1960
        %v1982 = vcombine.low %v1967, %v1974
        %v1984 = vunpack.c.l.s4 1966171168
        %v1985 = vunpack.c.0.s8 %v1984
        %v1986 = vlaneseq
        %v1987 = vshrl.u32 %v1986, 7
        %v1988 = vsub.s32 %v1985, %v1987
        %v1989 = vrot.slane %v1981, %v1988
        %v1991 = vunpack.c.l.s4 1966171168
        %v1992 = vunpack.c.0.s8 %v1991
        %v1993 = vlaneseq
        %v1994 = vshrl.u32 %v1993, 7
        %v1995 = vsub.s32 %v1992, %v1994
        %v1996 = vrot.slane %v1982, %v1995
        %v1997 = vcombine.low %v1989, %v1996
        %v1999 = vunpack.c.l.s4 1966171168
        %v2000 = vunpack.c.0.s8 %v1999
        %v2001 = vlaneseq
        %v2002 = vshrl.u32 %v2001, 7
        %v2003 = vsub.s32 %v2000, %v2002
        %v2004 = vrot.slane %v1997, %v2003
        %v2006 = vadd.f32 %v1976, %v2004
        %2007 = vst.msk [vmem:[%s1975] ss:$8 sm:$0xf] %vm712, %v2006
        %2008 = vst.msk [vmem:[%s1975] ss:$8 sm:$0x0] %vm712, %v2006
        %s2009 = scalar_lea.vmem %s545, 288 [#allocation4]
        %v2010 = vld [vmem:[%s2009] sm:$0xff]
        %v2011 = vld [vmem:[%s2009 + $0x8] sm:$0xff]
        %v2012 = vld [vmem:[%s2009 + $0x10] sm:$0xff]
        %v2013 = vld [vmem:[%s2009 + $0x18] sm:$0xff]
        %v2014 = vunpack.c.l.bf16 %v2010
        %v2015 = vunpack.c.h.bf16 %v2010
        %v2016 = vunpack.c.l.bf16 %v2011
        %v2017 = vunpack.c.h.bf16 %v2011
        %v2018 = vunpack.c.l.bf16 %v2012
        %v2019 = vunpack.c.h.bf16 %v2012
        %v2020 = vunpack.c.l.bf16 %v2013
        %v2021 = vunpack.c.h.bf16 %v2013
        %v2022 = vmul.f32 %v613, %v2014
        %v2023 = vmul.f32 %v614, %v2015
        %v2024 = vmul.f32 %v615, %v2016
        %v2025 = vmul.f32 %v616, %v2017
        %v2026 = vmul.f32 %v617, %v2018
        %v2027 = vmul.f32 %v618, %v2019
        %v2028 = vmul.f32 %v619, %v2020
        %v2029 = vmul.f32 %v620, %v2021
        %v2030 = vadd.f32 %v2022, %v2026
        %v2031 = vrot.slane %v2030, 4
        %v2032 = vadd.f32 %v2030, %v2031
        %v2033 = vrot.slane %v2032, 2
        %v2034 = vadd.f32 %v2032, %v2033
        %v2035 = vrot.slane %v2034, 1
        %v2036 = vadd.f32 %v2034, %v2035
        %v2037 = vadd.f32 %v2023, %v2027
        %v2038 = vrot.slane %v2037, 4
        %v2039 = vadd.f32 %v2037, %v2038
        %v2040 = vrot.slane %v2039, 2
        %v2041 = vadd.f32 %v2039, %v2040
        %v2042 = vrot.slane %v2041, 1
        %v2043 = vadd.f32 %v2041, %v2042
        %v2044 = vadd.f32 %v2024, %v2028
        %v2045 = vrot.slane %v2044, 4
        %v2046 = vadd.f32 %v2044, %v2045
        %v2047 = vrot.slane %v2046, 2
        %v2048 = vadd.f32 %v2046, %v2047
        %v2049 = vrot.slane %v2048, 1
        %v2050 = vadd.f32 %v2048, %v2049
        %v2051 = vadd.f32 %v2025, %v2029
        %v2052 = vrot.slane %v2051, 4
        %v2053 = vadd.f32 %v2051, %v2052
        %v2054 = vrot.slane %v2053, 2
        %v2055 = vadd.f32 %v2053, %v2054
        %v2056 = vrot.slane %v2055, 1
        %v2057 = vadd.f32 %v2055, %v2056
        %s2058 = scalar_lea.vmem [#allocation2], 33
        %v2059 = vld [vmem:[%s2058] ss:$8 sm:$0xf]
        %v2064 = vcombine.low %v2036, %v2043
        %v2065 = vcombine.low %v2050, %v2057
        %v2067 = vunpack.c.l.s4 1966171168
        %v2068 = vunpack.c.0.s8 %v2067
        %v2069 = vlaneseq
        %v2070 = vshrl.u32 %v2069, 7
        %v2071 = vsub.s32 %v2068, %v2070
        %v2072 = vrot.slane %v2064, %v2071
        %v2074 = vunpack.c.l.s4 1966171168
        %v2075 = vunpack.c.0.s8 %v2074
        %v2076 = vlaneseq
        %v2077 = vshrl.u32 %v2076, 7
        %v2078 = vsub.s32 %v2075, %v2077
        %v2079 = vrot.slane %v2065, %v2078
        %v2080 = vcombine.low %v2072, %v2079
        %v2082 = vunpack.c.l.s4 1966171168
        %v2083 = vunpack.c.0.s8 %v2082
        %v2084 = vlaneseq
        %v2085 = vshrl.u32 %v2084, 7
        %v2086 = vsub.s32 %v2083, %v2085
        %v2087 = vrot.slane %v2080, %v2086
        %v2089 = vadd.f32 %v2059, %v2087
        %2090 = vst.msk [vmem:[%s2058] ss:$8 sm:$0xf] %vm712, %v2089
        %2091 = vst.msk [vmem:[%s2058] ss:$8 sm:$0x0] %vm712, %v2089
        %v2092 = vmul.f32 %v622, %v2014
        %v2093 = vmul.f32 %v623, %v2015
        %v2094 = vmul.f32 %v624, %v2016
        %v2095 = vmul.f32 %v625, %v2017
        %v2096 = vmul.f32 %v626, %v2018
        %v2097 = vmul.f32 %v627, %v2019
        %v2098 = vmul.f32 %v628, %v2020
        %v2099 = vmul.f32 %v629, %v2021
        %v2100 = vadd.f32 %v2092, %v2096
        %v2101 = vrot.slane %v2100, 4
        %v2102 = vadd.f32 %v2100, %v2101
        %v2103 = vrot.slane %v2102, 2
        %v2104 = vadd.f32 %v2102, %v2103
        %v2105 = vrot.slane %v2104, 1
        %v2106 = vadd.f32 %v2104, %v2105
        %v2107 = vadd.f32 %v2093, %v2097
        %v2108 = vrot.slane %v2107, 4
        %v2109 = vadd.f32 %v2107, %v2108
        %v2110 = vrot.slane %v2109, 2
        %v2111 = vadd.f32 %v2109, %v2110
        %v2112 = vrot.slane %v2111, 1
        %v2113 = vadd.f32 %v2111, %v2112
        %v2114 = vadd.f32 %v2094, %v2098
        %v2115 = vrot.slane %v2114, 4
        %v2116 = vadd.f32 %v2114, %v2115
        %v2117 = vrot.slane %v2116, 2
        %v2118 = vadd.f32 %v2116, %v2117
        %v2119 = vrot.slane %v2118, 1
        %v2120 = vadd.f32 %v2118, %v2119
        %v2121 = vadd.f32 %v2095, %v2099
        %v2122 = vrot.slane %v2121, 4
        %v2123 = vadd.f32 %v2121, %v2122
        %v2124 = vrot.slane %v2123, 2
        %v2125 = vadd.f32 %v2123, %v2124
        %v2126 = vrot.slane %v2125, 1
        %v2127 = vadd.f32 %v2125, %v2126
        %s2128 = scalar_lea.vmem %s751, 33 [#allocation2]
        %v2129 = vld [vmem:[%s2128] ss:$8 sm:$0xf]
        %v2134 = vcombine.low %v2106, %v2113
        %v2135 = vcombine.low %v2120, %v2127
        %v2137 = vunpack.c.l.s4 1966171168
        %v2138 = vunpack.c.0.s8 %v2137
        %v2139 = vlaneseq
        %v2140 = vshrl.u32 %v2139, 7
        %v2141 = vsub.s32 %v2138, %v2140
        %v2142 = vrot.slane %v2134, %v2141
        %v2144 = vunpack.c.l.s4 1966171168
        %v2145 = vunpack.c.0.s8 %v2144
        %v2146 = vlaneseq
        %v2147 = vshrl.u32 %v2146, 7
        %v2148 = vsub.s32 %v2145, %v2147
        %v2149 = vrot.slane %v2135, %v2148
        %v2150 = vcombine.low %v2142, %v2149
        %v2152 = vunpack.c.l.s4 1966171168
        %v2153 = vunpack.c.0.s8 %v2152
        %v2154 = vlaneseq
        %v2155 = vshrl.u32 %v2154, 7
        %v2156 = vsub.s32 %v2153, %v2155
        %v2157 = vrot.slane %v2150, %v2156
        %v2159 = vadd.f32 %v2129, %v2157
        %2160 = vst.msk [vmem:[%s2128] ss:$8 sm:$0xf] %vm712, %v2159
        %2161 = vst.msk [vmem:[%s2128] ss:$8 sm:$0x0] %vm712, %v2159
        %s2162 = scalar_lea.vmem %s545, 320 [#allocation4]
        %v2163 = vld [vmem:[%s2162] sm:$0xff]
        %v2164 = vld [vmem:[%s2162 + $0x8] sm:$0xff]
        %v2165 = vld [vmem:[%s2162 + $0x10] sm:$0xff]
        %v2166 = vld [vmem:[%s2162 + $0x18] sm:$0xff]
        %v2167 = vunpack.c.l.bf16 %v2163
        %v2168 = vunpack.c.h.bf16 %v2163
        %v2169 = vunpack.c.l.bf16 %v2164
        %v2170 = vunpack.c.h.bf16 %v2164
        %v2171 = vunpack.c.l.bf16 %v2165
        %v2172 = vunpack.c.h.bf16 %v2165
        %v2173 = vunpack.c.l.bf16 %v2166
        %v2174 = vunpack.c.h.bf16 %v2166
        %v2175 = vmul.f32 %v613, %v2167
        %v2176 = vmul.f32 %v614, %v2168
        %v2177 = vmul.f32 %v615, %v2169
        %v2178 = vmul.f32 %v616, %v2170
        %v2179 = vmul.f32 %v617, %v2171
        %v2180 = vmul.f32 %v618, %v2172
        %v2181 = vmul.f32 %v619, %v2173
        %v2182 = vmul.f32 %v620, %v2174
        %v2183 = vadd.f32 %v2175, %v2179
        %v2184 = vrot.slane %v2183, 4
        %v2185 = vadd.f32 %v2183, %v2184
        %v2186 = vrot.slane %v2185, 2
        %v2187 = vadd.f32 %v2185, %v2186
        %v2188 = vrot.slane %v2187, 1
        %v2189 = vadd.f32 %v2187, %v2188
        %v2190 = vadd.f32 %v2176, %v2180
        %v2191 = vrot.slane %v2190, 4
        %v2192 = vadd.f32 %v2190, %v2191
        %v2193 = vrot.slane %v2192, 2
        %v2194 = vadd.f32 %v2192, %v2193
        %v2195 = vrot.slane %v2194, 1
        %v2196 = vadd.f32 %v2194, %v2195
        %v2197 = vadd.f32 %v2177, %v2181
        %v2198 = vrot.slane %v2197, 4
        %v2199 = vadd.f32 %v2197, %v2198
        %v2200 = vrot.slane %v2199, 2
        %v2201 = vadd.f32 %v2199, %v2200
        %v2202 = vrot.slane %v2201, 1
        %v2203 = vadd.f32 %v2201, %v2202
        %v2204 = vadd.f32 %v2178, %v2182
        %v2205 = vrot.slane %v2204, 4
        %v2206 = vadd.f32 %v2204, %v2205
        %v2207 = vrot.slane %v2206, 2
        %v2208 = vadd.f32 %v2206, %v2207
        %v2209 = vrot.slane %v2208, 1
        %v2210 = vadd.f32 %v2208, %v2209
        %s2211 = scalar_lea.vmem [#allocation2], 34
        %v2212 = vld [vmem:[%s2211] ss:$8 sm:$0xf]
        %v2217 = vcombine.low %v2189, %v2196
        %v2218 = vcombine.low %v2203, %v2210
        %v2220 = vunpack.c.l.s4 1966171168
        %v2221 = vunpack.c.0.s8 %v2220
        %v2222 = vlaneseq
        %v2223 = vshrl.u32 %v2222, 7
        %v2224 = vsub.s32 %v2221, %v2223
        %v2225 = vrot.slane %v2217, %v2224
        %v2227 = vunpack.c.l.s4 1966171168
        %v2228 = vunpack.c.0.s8 %v2227
        %v2229 = vlaneseq
        %v2230 = vshrl.u32 %v2229, 7
        %v2231 = vsub.s32 %v2228, %v2230
        %v2232 = vrot.slane %v2218, %v2231
        %v2233 = vcombine.low %v2225, %v2232
        %v2235 = vunpack.c.l.s4 1966171168
        %v2236 = vunpack.c.0.s8 %v2235
        %v2237 = vlaneseq
        %v2238 = vshrl.u32 %v2237, 7
        %v2239 = vsub.s32 %v2236, %v2238
        %v2240 = vrot.slane %v2233, %v2239
        %v2242 = vadd.f32 %v2212, %v2240
        %2243 = vst.msk [vmem:[%s2211] ss:$8 sm:$0xf] %vm712, %v2242
        %2244 = vst.msk [vmem:[%s2211] ss:$8 sm:$0x0] %vm712, %v2242
        %v2245 = vmul.f32 %v622, %v2167
        %v2246 = vmul.f32 %v623, %v2168
        %v2247 = vmul.f32 %v624, %v2169
        %v2248 = vmul.f32 %v625, %v2170
        %v2249 = vmul.f32 %v626, %v2171
        %v2250 = vmul.f32 %v627, %v2172
        %v2251 = vmul.f32 %v628, %v2173
        %v2252 = vmul.f32 %v629, %v2174
        %v2253 = vadd.f32 %v2245, %v2249
        %v2254 = vrot.slane %v2253, 4
        %v2255 = vadd.f32 %v2253, %v2254
        %v2256 = vrot.slane %v2255, 2
        %v2257 = vadd.f32 %v2255, %v2256
        %v2258 = vrot.slane %v2257, 1
        %v2259 = vadd.f32 %v2257, %v2258
        %v2260 = vadd.f32 %v2246, %v2250
        %v2261 = vrot.slane %v2260, 4
        %v2262 = vadd.f32 %v2260, %v2261
        %v2263 = vrot.slane %v2262, 2
        %v2264 = vadd.f32 %v2262, %v2263
        %v2265 = vrot.slane %v2264, 1
        %v2266 = vadd.f32 %v2264, %v2265
        %v2267 = vadd.f32 %v2247, %v2251
        %v2268 = vrot.slane %v2267, 4
        %v2269 = vadd.f32 %v2267, %v2268
        %v2270 = vrot.slane %v2269, 2
        %v2271 = vadd.f32 %v2269, %v2270
        %v2272 = vrot.slane %v2271, 1
        %v2273 = vadd.f32 %v2271, %v2272
        %v2274 = vadd.f32 %v2248, %v2252
        %v2275 = vrot.slane %v2274, 4
        %v2276 = vadd.f32 %v2274, %v2275
        %v2277 = vrot.slane %v2276, 2
        %v2278 = vadd.f32 %v2276, %v2277
        %v2279 = vrot.slane %v2278, 1
        %v2280 = vadd.f32 %v2278, %v2279
        %s2281 = scalar_lea.vmem %s751, 34 [#allocation2]
        %v2282 = vld [vmem:[%s2281] ss:$8 sm:$0xf]
        %v2287 = vcombine.low %v2259, %v2266
        %v2288 = vcombine.low %v2273, %v2280
        %v2290 = vunpack.c.l.s4 1966171168
        %v2291 = vunpack.c.0.s8 %v2290
        %v2292 = vlaneseq
        %v2293 = vshrl.u32 %v2292, 7
        %v2294 = vsub.s32 %v2291, %v2293
        %v2295 = vrot.slane %v2287, %v2294
        %v2297 = vunpack.c.l.s4 1966171168
        %v2298 = vunpack.c.0.s8 %v2297
        %v2299 = vlaneseq
        %v2300 = vshrl.u32 %v2299, 7
        %v2301 = vsub.s32 %v2298, %v2300
        %v2302 = vrot.slane %v2288, %v2301
        %v2303 = vcombine.low %v2295, %v2302
        %v2305 = vunpack.c.l.s4 1966171168
        %v2306 = vunpack.c.0.s8 %v2305
        %v2307 = vlaneseq
        %v2308 = vshrl.u32 %v2307, 7
        %v2309 = vsub.s32 %v2306, %v2308
        %v2310 = vrot.slane %v2303, %v2309
        %v2312 = vadd.f32 %v2282, %v2310
        %2313 = vst.msk [vmem:[%s2281] ss:$8 sm:$0xf] %vm712, %v2312
        %2314 = vst.msk [vmem:[%s2281] ss:$8 sm:$0x0] %vm712, %v2312
        %s2315 = scalar_lea.vmem %s545, 352 [#allocation4]
        %v2316 = vld [vmem:[%s2315] sm:$0xff]
        %v2317 = vld [vmem:[%s2315 + $0x8] sm:$0xff]
        %v2318 = vld [vmem:[%s2315 + $0x10] sm:$0xff]
        %v2319 = vld [vmem:[%s2315 + $0x18] sm:$0xff]
        %v2320 = vunpack.c.l.bf16 %v2316
        %v2321 = vunpack.c.h.bf16 %v2316
        %v2322 = vunpack.c.l.bf16 %v2317
        %v2323 = vunpack.c.h.bf16 %v2317
        %v2324 = vunpack.c.l.bf16 %v2318
        %v2325 = vunpack.c.h.bf16 %v2318
        %v2326 = vunpack.c.l.bf16 %v2319
        %v2327 = vunpack.c.h.bf16 %v2319
        %v2328 = vmul.f32 %v613, %v2320
        %v2329 = vmul.f32 %v614, %v2321
        %v2330 = vmul.f32 %v615, %v2322
        %v2331 = vmul.f32 %v616, %v2323
        %v2332 = vmul.f32 %v617, %v2324
        %v2333 = vmul.f32 %v618, %v2325
        %v2334 = vmul.f32 %v619, %v2326
        %v2335 = vmul.f32 %v620, %v2327
        %v2336 = vadd.f32 %v2328, %v2332
        %v2337 = vrot.slane %v2336, 4
        %v2338 = vadd.f32 %v2336, %v2337
        %v2339 = vrot.slane %v2338, 2
        %v2340 = vadd.f32 %v2338, %v2339
        %v2341 = vrot.slane %v2340, 1
        %v2342 = vadd.f32 %v2340, %v2341
        %v2343 = vadd.f32 %v2329, %v2333
        %v2344 = vrot.slane %v2343, 4
        %v2345 = vadd.f32 %v2343, %v2344
        %v2346 = vrot.slane %v2345, 2
        %v2347 = vadd.f32 %v2345, %v2346
        %v2348 = vrot.slane %v2347, 1
        %v2349 = vadd.f32 %v2347, %v2348
        %v2350 = vadd.f32 %v2330, %v2334
        %v2351 = vrot.slane %v2350, 4
        %v2352 = vadd.f32 %v2350, %v2351
        %v2353 = vrot.slane %v2352, 2
        %v2354 = vadd.f32 %v2352, %v2353
        %v2355 = vrot.slane %v2354, 1
        %v2356 = vadd.f32 %v2354, %v2355
        %v2357 = vadd.f32 %v2331, %v2335
        %v2358 = vrot.slane %v2357, 4
        %v2359 = vadd.f32 %v2357, %v2358
        %v2360 = vrot.slane %v2359, 2
        %v2361 = vadd.f32 %v2359, %v2360
        %v2362 = vrot.slane %v2361, 1
        %v2363 = vadd.f32 %v2361, %v2362
        %s2364 = scalar_lea.vmem [#allocation2], 35
        %v2365 = vld [vmem:[%s2364] ss:$8 sm:$0xf]
        %v2370 = vcombine.low %v2342, %v2349
        %v2371 = vcombine.low %v2356, %v2363
        %v2373 = vunpack.c.l.s4 1966171168
        %v2374 = vunpack.c.0.s8 %v2373
        %v2375 = vlaneseq
        %v2376 = vshrl.u32 %v2375, 7
        %v2377 = vsub.s32 %v2374, %v2376
        %v2378 = vrot.slane %v2370, %v2377
        %v2380 = vunpack.c.l.s4 1966171168
        %v2381 = vunpack.c.0.s8 %v2380
        %v2382 = vlaneseq
        %v2383 = vshrl.u32 %v2382, 7
        %v2384 = vsub.s32 %v2381, %v2383
        %v2385 = vrot.slane %v2371, %v2384
        %v2386 = vcombine.low %v2378, %v2385
        %v2388 = vunpack.c.l.s4 1966171168
        %v2389 = vunpack.c.0.s8 %v2388
        %v2390 = vlaneseq
        %v2391 = vshrl.u32 %v2390, 7
        %v2392 = vsub.s32 %v2389, %v2391
        %v2393 = vrot.slane %v2386, %v2392
        %v2395 = vadd.f32 %v2365, %v2393
        %2396 = vst.msk [vmem:[%s2364] ss:$8 sm:$0xf] %vm712, %v2395
        %2397 = vst.msk [vmem:[%s2364] ss:$8 sm:$0x0] %vm712, %v2395
        %v2398 = vmul.f32 %v622, %v2320
        %v2399 = vmul.f32 %v623, %v2321
        %v2400 = vmul.f32 %v624, %v2322
        %v2401 = vmul.f32 %v625, %v2323
        %v2402 = vmul.f32 %v626, %v2324
        %v2403 = vmul.f32 %v627, %v2325
        %v2404 = vmul.f32 %v628, %v2326
        %v2405 = vmul.f32 %v629, %v2327
        %v2406 = vadd.f32 %v2398, %v2402
        %v2407 = vrot.slane %v2406, 4
        %v2408 = vadd.f32 %v2406, %v2407
        %v2409 = vrot.slane %v2408, 2
        %v2410 = vadd.f32 %v2408, %v2409
        %v2411 = vrot.slane %v2410, 1
        %v2412 = vadd.f32 %v2410, %v2411
        %v2413 = vadd.f32 %v2399, %v2403
        %v2414 = vrot.slane %v2413, 4
        %v2415 = vadd.f32 %v2413, %v2414
        %v2416 = vrot.slane %v2415, 2
        %v2417 = vadd.f32 %v2415, %v2416
        %v2418 = vrot.slane %v2417, 1
        %v2419 = vadd.f32 %v2417, %v2418
        %v2420 = vadd.f32 %v2400, %v2404
        %v2421 = vrot.slane %v2420, 4
        %v2422 = vadd.f32 %v2420, %v2421
        %v2423 = vrot.slane %v2422, 2
        %v2424 = vadd.f32 %v2422, %v2423
        %v2425 = vrot.slane %v2424, 1
        %v2426 = vadd.f32 %v2424, %v2425
        %v2427 = vadd.f32 %v2401, %v2405
        %v2428 = vrot.slane %v2427, 4
        %v2429 = vadd.f32 %v2427, %v2428
        %v2430 = vrot.slane %v2429, 2
        %v2431 = vadd.f32 %v2429, %v2430
        %v2432 = vrot.slane %v2431, 1
        %v2433 = vadd.f32 %v2431, %v2432
        %s2434 = scalar_lea.vmem %s751, 35 [#allocation2]
        %v2435 = vld [vmem:[%s2434] ss:$8 sm:$0xf]
        %v2440 = vcombine.low %v2412, %v2419
        %v2441 = vcombine.low %v2426, %v2433
        %v2443 = vunpack.c.l.s4 1966171168
        %v2444 = vunpack.c.0.s8 %v2443
        %v2445 = vlaneseq
        %v2446 = vshrl.u32 %v2445, 7
        %v2447 = vsub.s32 %v2444, %v2446
        %v2448 = vrot.slane %v2440, %v2447
        %v2450 = vunpack.c.l.s4 1966171168
        %v2451 = vunpack.c.0.s8 %v2450
        %v2452 = vlaneseq
        %v2453 = vshrl.u32 %v2452, 7
        %v2454 = vsub.s32 %v2451, %v2453
        %v2455 = vrot.slane %v2441, %v2454
        %v2456 = vcombine.low %v2448, %v2455
        %v2458 = vunpack.c.l.s4 1966171168
        %v2459 = vunpack.c.0.s8 %v2458
        %v2460 = vlaneseq
        %v2461 = vshrl.u32 %v2460, 7
        %v2462 = vsub.s32 %v2459, %v2461
        %v2463 = vrot.slane %v2456, %v2462
        %v2465 = vadd.f32 %v2435, %v2463
        %2466 = vst.msk [vmem:[%s2434] ss:$8 sm:$0xf] %vm712, %v2465
        %2467 = vst.msk [vmem:[%s2434] ss:$8 sm:$0x0] %vm712, %v2465
        %s2468 = scalar_lea.vmem %s545, 384 [#allocation4]
        %v2469 = vld [vmem:[%s2468] sm:$0xff]
        %v2470 = vld [vmem:[%s2468 + $0x8] sm:$0xff]
        %v2471 = vld [vmem:[%s2468 + $0x10] sm:$0xff]
        %v2472 = vld [vmem:[%s2468 + $0x18] sm:$0xff]
        %v2473 = vunpack.c.l.bf16 %v2469
        %v2474 = vunpack.c.h.bf16 %v2469
        %v2475 = vunpack.c.l.bf16 %v2470
        %v2476 = vunpack.c.h.bf16 %v2470
        %v2477 = vunpack.c.l.bf16 %v2471
        %v2478 = vunpack.c.h.bf16 %v2471
        %v2479 = vunpack.c.l.bf16 %v2472
        %v2480 = vunpack.c.h.bf16 %v2472
        %v2481 = vmul.f32 %v613, %v2473
        %v2482 = vmul.f32 %v614, %v2474
        %v2483 = vmul.f32 %v615, %v2475
        %v2484 = vmul.f32 %v616, %v2476
        %v2485 = vmul.f32 %v617, %v2477
        %v2486 = vmul.f32 %v618, %v2478
        %v2487 = vmul.f32 %v619, %v2479
        %v2488 = vmul.f32 %v620, %v2480
        %v2489 = vadd.f32 %v2481, %v2485
        %v2490 = vrot.slane %v2489, 4
        %v2491 = vadd.f32 %v2489, %v2490
        %v2492 = vrot.slane %v2491, 2
        %v2493 = vadd.f32 %v2491, %v2492
        %v2494 = vrot.slane %v2493, 1
        %v2495 = vadd.f32 %v2493, %v2494
        %v2496 = vadd.f32 %v2482, %v2486
        %v2497 = vrot.slane %v2496, 4
        %v2498 = vadd.f32 %v2496, %v2497
        %v2499 = vrot.slane %v2498, 2
        %v2500 = vadd.f32 %v2498, %v2499
        %v2501 = vrot.slane %v2500, 1
        %v2502 = vadd.f32 %v2500, %v2501
        %v2503 = vadd.f32 %v2483, %v2487
        %v2504 = vrot.slane %v2503, 4
        %v2505 = vadd.f32 %v2503, %v2504
        %v2506 = vrot.slane %v2505, 2
        %v2507 = vadd.f32 %v2505, %v2506
        %v2508 = vrot.slane %v2507, 1
        %v2509 = vadd.f32 %v2507, %v2508
        %v2510 = vadd.f32 %v2484, %v2488
        %v2511 = vrot.slane %v2510, 4
        %v2512 = vadd.f32 %v2510, %v2511
        %v2513 = vrot.slane %v2512, 2
        %v2514 = vadd.f32 %v2512, %v2513
        %v2515 = vrot.slane %v2514, 1
        %v2516 = vadd.f32 %v2514, %v2515
        %s2517 = scalar_lea.vmem [#allocation2], 36
        %v2518 = vld [vmem:[%s2517] ss:$8 sm:$0xf]
        %v2523 = vcombine.low %v2495, %v2502
        %v2524 = vcombine.low %v2509, %v2516
        %v2526 = vunpack.c.l.s4 1966171168
        %v2527 = vunpack.c.0.s8 %v2526
        %v2528 = vlaneseq
        %v2529 = vshrl.u32 %v2528, 7
        %v2530 = vsub.s32 %v2527, %v2529
        %v2531 = vrot.slane %v2523, %v2530
        %v2533 = vunpack.c.l.s4 1966171168
        %v2534 = vunpack.c.0.s8 %v2533
        %v2535 = vlaneseq
        %v2536 = vshrl.u32 %v2535, 7
        %v2537 = vsub.s32 %v2534, %v2536
        %v2538 = vrot.slane %v2524, %v2537
        %v2539 = vcombine.low %v2531, %v2538
        %v2541 = vunpack.c.l.s4 1966171168
        %v2542 = vunpack.c.0.s8 %v2541
        %v2543 = vlaneseq
        %v2544 = vshrl.u32 %v2543, 7
        %v2545 = vsub.s32 %v2542, %v2544
        %v2546 = vrot.slane %v2539, %v2545
        %v2548 = vadd.f32 %v2518, %v2546
        %2549 = vst.msk [vmem:[%s2517] ss:$8 sm:$0xf] %vm712, %v2548
        %2550 = vst.msk [vmem:[%s2517] ss:$8 sm:$0x0] %vm712, %v2548
        %v2551 = vmul.f32 %v622, %v2473
        %v2552 = vmul.f32 %v623, %v2474
        %v2553 = vmul.f32 %v624, %v2475
        %v2554 = vmul.f32 %v625, %v2476
        %v2555 = vmul.f32 %v626, %v2477
        %v2556 = vmul.f32 %v627, %v2478
        %v2557 = vmul.f32 %v628, %v2479
        %v2558 = vmul.f32 %v629, %v2480
        %v2559 = vadd.f32 %v2551, %v2555
        %v2560 = vrot.slane %v2559, 4
        %v2561 = vadd.f32 %v2559, %v2560
        %v2562 = vrot.slane %v2561, 2
        %v2563 = vadd.f32 %v2561, %v2562
        %v2564 = vrot.slane %v2563, 1
        %v2565 = vadd.f32 %v2563, %v2564
        %v2566 = vadd.f32 %v2552, %v2556
        %v2567 = vrot.slane %v2566, 4
        %v2568 = vadd.f32 %v2566, %v2567
        %v2569 = vrot.slane %v2568, 2
        %v2570 = vadd.f32 %v2568, %v2569
        %v2571 = vrot.slane %v2570, 1
        %v2572 = vadd.f32 %v2570, %v2571
        %v2573 = vadd.f32 %v2553, %v2557
        %v2574 = vrot.slane %v2573, 4
        %v2575 = vadd.f32 %v2573, %v2574
        %v2576 = vrot.slane %v2575, 2
        %v2577 = vadd.f32 %v2575, %v2576
        %v2578 = vrot.slane %v2577, 1
        %v2579 = vadd.f32 %v2577, %v2578
        %v2580 = vadd.f32 %v2554, %v2558
        %v2581 = vrot.slane %v2580, 4
        %v2582 = vadd.f32 %v2580, %v2581
        %v2583 = vrot.slane %v2582, 2
        %v2584 = vadd.f32 %v2582, %v2583
        %v2585 = vrot.slane %v2584, 1
        %v2586 = vadd.f32 %v2584, %v2585
        %s2587 = scalar_lea.vmem %s751, 36 [#allocation2]
        %v2588 = vld [vmem:[%s2587] ss:$8 sm:$0xf]
        %v2593 = vcombine.low %v2565, %v2572
        %v2594 = vcombine.low %v2579, %v2586
        %v2596 = vunpack.c.l.s4 1966171168
        %v2597 = vunpack.c.0.s8 %v2596
        %v2598 = vlaneseq
        %v2599 = vshrl.u32 %v2598, 7
        %v2600 = vsub.s32 %v2597, %v2599
        %v2601 = vrot.slane %v2593, %v2600
        %v2603 = vunpack.c.l.s4 1966171168
        %v2604 = vunpack.c.0.s8 %v2603
        %v2605 = vlaneseq
        %v2606 = vshrl.u32 %v2605, 7
        %v2607 = vsub.s32 %v2604, %v2606
        %v2608 = vrot.slane %v2594, %v2607
        %v2609 = vcombine.low %v2601, %v2608
        %v2611 = vunpack.c.l.s4 1966171168
        %v2612 = vunpack.c.0.s8 %v2611
        %v2613 = vlaneseq
        %v2614 = vshrl.u32 %v2613, 7
        %v2615 = vsub.s32 %v2612, %v2614
        %v2616 = vrot.slane %v2609, %v2615
        %v2618 = vadd.f32 %v2588, %v2616
        %2619 = vst.msk [vmem:[%s2587] ss:$8 sm:$0xf] %vm712, %v2618
        %2620 = vst.msk [vmem:[%s2587] ss:$8 sm:$0x0] %vm712, %v2618
        %s2621 = scalar_lea.vmem %s545, 416 [#allocation4]
        %v2622 = vld [vmem:[%s2621] sm:$0xff]
        %v2623 = vld [vmem:[%s2621 + $0x8] sm:$0xff]
        %v2624 = vld [vmem:[%s2621 + $0x10] sm:$0xff]
        %v2625 = vld [vmem:[%s2621 + $0x18] sm:$0xff]
        %v2626 = vunpack.c.l.bf16 %v2622
        %v2627 = vunpack.c.h.bf16 %v2622
        %v2628 = vunpack.c.l.bf16 %v2623
        %v2629 = vunpack.c.h.bf16 %v2623
        %v2630 = vunpack.c.l.bf16 %v2624
        %v2631 = vunpack.c.h.bf16 %v2624
        %v2632 = vunpack.c.l.bf16 %v2625
        %v2633 = vunpack.c.h.bf16 %v2625
        %v2634 = vmul.f32 %v613, %v2626
        %v2635 = vmul.f32 %v614, %v2627
        %v2636 = vmul.f32 %v615, %v2628
        %v2637 = vmul.f32 %v616, %v2629
        %v2638 = vmul.f32 %v617, %v2630
        %v2639 = vmul.f32 %v618, %v2631
        %v2640 = vmul.f32 %v619, %v2632
        %v2641 = vmul.f32 %v620, %v2633
        %v2642 = vadd.f32 %v2634, %v2638
        %v2643 = vrot.slane %v2642, 4
        %v2644 = vadd.f32 %v2642, %v2643
        %v2645 = vrot.slane %v2644, 2
        %v2646 = vadd.f32 %v2644, %v2645
        %v2647 = vrot.slane %v2646, 1
        %v2648 = vadd.f32 %v2646, %v2647
        %v2649 = vadd.f32 %v2635, %v2639
        %v2650 = vrot.slane %v2649, 4
        %v2651 = vadd.f32 %v2649, %v2650
        %v2652 = vrot.slane %v2651, 2
        %v2653 = vadd.f32 %v2651, %v2652
        %v2654 = vrot.slane %v2653, 1
        %v2655 = vadd.f32 %v2653, %v2654
        %v2656 = vadd.f32 %v2636, %v2640
        %v2657 = vrot.slane %v2656, 4
        %v2658 = vadd.f32 %v2656, %v2657
        %v2659 = vrot.slane %v2658, 2
        %v2660 = vadd.f32 %v2658, %v2659
        %v2661 = vrot.slane %v2660, 1
        %v2662 = vadd.f32 %v2660, %v2661
        %v2663 = vadd.f32 %v2637, %v2641
        %v2664 = vrot.slane %v2663, 4
        %v2665 = vadd.f32 %v2663, %v2664
        %v2666 = vrot.slane %v2665, 2
        %v2667 = vadd.f32 %v2665, %v2666
        %v2668 = vrot.slane %v2667, 1
        %v2669 = vadd.f32 %v2667, %v2668
        %s2670 = scalar_lea.vmem [#allocation2], 37
        %v2671 = vld [vmem:[%s2670] ss:$8 sm:$0xf]
        %v2676 = vcombine.low %v2648, %v2655
        %v2677 = vcombine.low %v2662, %v2669
        %v2679 = vunpack.c.l.s4 1966171168
        %v2680 = vunpack.c.0.s8 %v2679
        %v2681 = vlaneseq
        %v2682 = vshrl.u32 %v2681, 7
        %v2683 = vsub.s32 %v2680, %v2682
        %v2684 = vrot.slane %v2676, %v2683
        %v2686 = vunpack.c.l.s4 1966171168
        %v2687 = vunpack.c.0.s8 %v2686
        %v2688 = vlaneseq
        %v2689 = vshrl.u32 %v2688, 7
        %v2690 = vsub.s32 %v2687, %v2689
        %v2691 = vrot.slane %v2677, %v2690
        %v2692 = vcombine.low %v2684, %v2691
        %v2694 = vunpack.c.l.s4 1966171168
        %v2695 = vunpack.c.0.s8 %v2694
        %v2696 = vlaneseq
        %v2697 = vshrl.u32 %v2696, 7
        %v2698 = vsub.s32 %v2695, %v2697
        %v2699 = vrot.slane %v2692, %v2698
        %v2701 = vadd.f32 %v2671, %v2699
        %2702 = vst.msk [vmem:[%s2670] ss:$8 sm:$0xf] %vm712, %v2701
        %2703 = vst.msk [vmem:[%s2670] ss:$8 sm:$0x0] %vm712, %v2701
        %v2704 = vmul.f32 %v622, %v2626
        %v2705 = vmul.f32 %v623, %v2627
        %v2706 = vmul.f32 %v624, %v2628
        %v2707 = vmul.f32 %v625, %v2629
        %v2708 = vmul.f32 %v626, %v2630
        %v2709 = vmul.f32 %v627, %v2631
        %v2710 = vmul.f32 %v628, %v2632
        %v2711 = vmul.f32 %v629, %v2633
        %v2712 = vadd.f32 %v2704, %v2708
        %v2713 = vrot.slane %v2712, 4
        %v2714 = vadd.f32 %v2712, %v2713
        %v2715 = vrot.slane %v2714, 2
        %v2716 = vadd.f32 %v2714, %v2715
        %v2717 = vrot.slane %v2716, 1
        %v2718 = vadd.f32 %v2716, %v2717
        %v2719 = vadd.f32 %v2705, %v2709
        %v2720 = vrot.slane %v2719, 4
        %v2721 = vadd.f32 %v2719, %v2720
        %v2722 = vrot.slane %v2721, 2
        %v2723 = vadd.f32 %v2721, %v2722
        %v2724 = vrot.slane %v2723, 1
        %v2725 = vadd.f32 %v2723, %v2724
        %v2726 = vadd.f32 %v2706, %v2710
        %v2727 = vrot.slane %v2726, 4
        %v2728 = vadd.f32 %v2726, %v2727
        %v2729 = vrot.slane %v2728, 2
        %v2730 = vadd.f32 %v2728, %v2729
        %v2731 = vrot.slane %v2730, 1
        %v2732 = vadd.f32 %v2730, %v2731
        %v2733 = vadd.f32 %v2707, %v2711
        %v2734 = vrot.slane %v2733, 4
        %v2735 = vadd.f32 %v2733, %v2734
        %v2736 = vrot.slane %v2735, 2
        %v2737 = vadd.f32 %v2735, %v2736
        %v2738 = vrot.slane %v2737, 1
        %v2739 = vadd.f32 %v2737, %v2738
        %s2740 = scalar_lea.vmem %s751, 37 [#allocation2]
        %v2741 = vld [vmem:[%s2740] ss:$8 sm:$0xf]
        %v2746 = vcombine.low %v2718, %v2725
        %v2747 = vcombine.low %v2732, %v2739
        %v2749 = vunpack.c.l.s4 1966171168
        %v2750 = vunpack.c.0.s8 %v2749
        %v2751 = vlaneseq
        %v2752 = vshrl.u32 %v2751, 7
        %v2753 = vsub.s32 %v2750, %v2752
        %v2754 = vrot.slane %v2746, %v2753
        %v2756 = vunpack.c.l.s4 1966171168
        %v2757 = vunpack.c.0.s8 %v2756
        %v2758 = vlaneseq
        %v2759 = vshrl.u32 %v2758, 7
        %v2760 = vsub.s32 %v2757, %v2759
        %v2761 = vrot.slane %v2747, %v2760
        %v2762 = vcombine.low %v2754, %v2761
        %v2764 = vunpack.c.l.s4 1966171168
        %v2765 = vunpack.c.0.s8 %v2764
        %v2766 = vlaneseq
        %v2767 = vshrl.u32 %v2766, 7
        %v2768 = vsub.s32 %v2765, %v2767
        %v2769 = vrot.slane %v2762, %v2768
        %v2771 = vadd.f32 %v2741, %v2769
        %2772 = vst.msk [vmem:[%s2740] ss:$8 sm:$0xf] %vm712, %v2771
        %2773 = vst.msk [vmem:[%s2740] ss:$8 sm:$0x0] %vm712, %v2771
        %s2774 = scalar_lea.vmem %s545, 448 [#allocation4]
        %v2775 = vld [vmem:[%s2774] sm:$0xff]
        %v2776 = vld [vmem:[%s2774 + $0x8] sm:$0xff]
        %v2777 = vld [vmem:[%s2774 + $0x10] sm:$0xff]
        %v2778 = vld [vmem:[%s2774 + $0x18] sm:$0xff]
        %v2779 = vunpack.c.l.bf16 %v2775
        %v2780 = vunpack.c.h.bf16 %v2775
        %v2781 = vunpack.c.l.bf16 %v2776
        %v2782 = vunpack.c.h.bf16 %v2776
        %v2783 = vunpack.c.l.bf16 %v2777
        %v2784 = vunpack.c.h.bf16 %v2777
        %v2785 = vunpack.c.l.bf16 %v2778
        %v2786 = vunpack.c.h.bf16 %v2778
        %v2787 = vmul.f32 %v613, %v2779
        %v2788 = vmul.f32 %v614, %v2780
        %v2789 = vmul.f32 %v615, %v2781
        %v2790 = vmul.f32 %v616, %v2782
        %v2791 = vmul.f32 %v617, %v2783
        %v2792 = vmul.f32 %v618, %v2784
        %v2793 = vmul.f32 %v619, %v2785
        %v2794 = vmul.f32 %v620, %v2786
        %v2795 = vadd.f32 %v2787, %v2791
        %v2796 = vrot.slane %v2795, 4
        %v2797 = vadd.f32 %v2795, %v2796
        %v2798 = vrot.slane %v2797, 2
        %v2799 = vadd.f32 %v2797, %v2798
        %v2800 = vrot.slane %v2799, 1
        %v2801 = vadd.f32 %v2799, %v2800
        %v2802 = vadd.f32 %v2788, %v2792
        %v2803 = vrot.slane %v2802, 4
        %v2804 = vadd.f32 %v2802, %v2803
        %v2805 = vrot.slane %v2804, 2
        %v2806 = vadd.f32 %v2804, %v2805
        %v2807 = vrot.slane %v2806, 1
        %v2808 = vadd.f32 %v2806, %v2807
        %v2809 = vadd.f32 %v2789, %v2793
        %v2810 = vrot.slane %v2809, 4
        %v2811 = vadd.f32 %v2809, %v2810
        %v2812 = vrot.slane %v2811, 2
        %v2813 = vadd.f32 %v2811, %v2812
        %v2814 = vrot.slane %v2813, 1
        %v2815 = vadd.f32 %v2813, %v2814
        %v2816 = vadd.f32 %v2790, %v2794
        %v2817 = vrot.slane %v2816, 4
        %v2818 = vadd.f32 %v2816, %v2817
        %v2819 = vrot.slane %v2818, 2
        %v2820 = vadd.f32 %v2818, %v2819
        %v2821 = vrot.slane %v2820, 1
        %v2822 = vadd.f32 %v2820, %v2821
        %s2823 = scalar_lea.vmem [#allocation2], 38
        %v2824 = vld [vmem:[%s2823] ss:$8 sm:$0xf]
        %v2829 = vcombine.low %v2801, %v2808
        %v2830 = vcombine.low %v2815, %v2822
        %v2832 = vunpack.c.l.s4 1966171168
        %v2833 = vunpack.c.0.s8 %v2832
        %v2834 = vlaneseq
        %v2835 = vshrl.u32 %v2834, 7
        %v2836 = vsub.s32 %v2833, %v2835
        %v2837 = vrot.slane %v2829, %v2836
        %v2839 = vunpack.c.l.s4 1966171168
        %v2840 = vunpack.c.0.s8 %v2839
        %v2841 = vlaneseq
        %v2842 = vshrl.u32 %v2841, 7
        %v2843 = vsub.s32 %v2840, %v2842
        %v2844 = vrot.slane %v2830, %v2843
        %v2845 = vcombine.low %v2837, %v2844
        %v2847 = vunpack.c.l.s4 1966171168
        %v2848 = vunpack.c.0.s8 %v2847
        %v2849 = vlaneseq
        %v2850 = vshrl.u32 %v2849, 7
        %v2851 = vsub.s32 %v2848, %v2850
        %v2852 = vrot.slane %v2845, %v2851
        %v2854 = vadd.f32 %v2824, %v2852
        %2855 = vst.msk [vmem:[%s2823] ss:$8 sm:$0xf] %vm712, %v2854
        %2856 = vst.msk [vmem:[%s2823] ss:$8 sm:$0x0] %vm712, %v2854
        %v2857 = vmul.f32 %v622, %v2779
        %v2858 = vmul.f32 %v623, %v2780
        %v2859 = vmul.f32 %v624, %v2781
        %v2860 = vmul.f32 %v625, %v2782
        %v2861 = vmul.f32 %v626, %v2783
        %v2862 = vmul.f32 %v627, %v2784
        %v2863 = vmul.f32 %v628, %v2785
        %v2864 = vmul.f32 %v629, %v2786
        %v2865 = vadd.f32 %v2857, %v2861
        %v2866 = vrot.slane %v2865, 4
        %v2867 = vadd.f32 %v2865, %v2866
        %v2868 = vrot.slane %v2867, 2
        %v2869 = vadd.f32 %v2867, %v2868
        %v2870 = vrot.slane %v2869, 1
        %v2871 = vadd.f32 %v2869, %v2870
        %v2872 = vadd.f32 %v2858, %v2862
        %v2873 = vrot.slane %v2872, 4
        %v2874 = vadd.f32 %v2872, %v2873
        %v2875 = vrot.slane %v2874, 2
        %v2876 = vadd.f32 %v2874, %v2875
        %v2877 = vrot.slane %v2876, 1
        %v2878 = vadd.f32 %v2876, %v2877
        %v2879 = vadd.f32 %v2859, %v2863
        %v2880 = vrot.slane %v2879, 4
        %v2881 = vadd.f32 %v2879, %v2880
        %v2882 = vrot.slane %v2881, 2
        %v2883 = vadd.f32 %v2881, %v2882
        %v2884 = vrot.slane %v2883, 1
        %v2885 = vadd.f32 %v2883, %v2884
        %v2886 = vadd.f32 %v2860, %v2864
        %v2887 = vrot.slane %v2886, 4
        %v2888 = vadd.f32 %v2886, %v2887
        %v2889 = vrot.slane %v2888, 2
        %v2890 = vadd.f32 %v2888, %v2889
        %v2891 = vrot.slane %v2890, 1
        %v2892 = vadd.f32 %v2890, %v2891
        %s2893 = scalar_lea.vmem %s751, 38 [#allocation2]
        %v2894 = vld [vmem:[%s2893] ss:$8 sm:$0xf]
        %v2899 = vcombine.low %v2871, %v2878
        %v2900 = vcombine.low %v2885, %v2892
        %v2902 = vunpack.c.l.s4 1966171168
        %v2903 = vunpack.c.0.s8 %v2902
        %v2904 = vlaneseq
        %v2905 = vshrl.u32 %v2904, 7
        %v2906 = vsub.s32 %v2903, %v2905
        %v2907 = vrot.slane %v2899, %v2906
        %v2909 = vunpack.c.l.s4 1966171168
        %v2910 = vunpack.c.0.s8 %v2909
        %v2911 = vlaneseq
        %v2912 = vshrl.u32 %v2911, 7
        %v2913 = vsub.s32 %v2910, %v2912
        %v2914 = vrot.slane %v2900, %v2913
        %v2915 = vcombine.low %v2907, %v2914
        %v2917 = vunpack.c.l.s4 1966171168
        %v2918 = vunpack.c.0.s8 %v2917
        %v2919 = vlaneseq
        %v2920 = vshrl.u32 %v2919, 7
        %v2921 = vsub.s32 %v2918, %v2920
        %v2922 = vrot.slane %v2915, %v2921
        %v2924 = vadd.f32 %v2894, %v2922
        %2925 = vst.msk [vmem:[%s2893] ss:$8 sm:$0xf] %vm712, %v2924
        %2926 = vst.msk [vmem:[%s2893] ss:$8 sm:$0x0] %vm712, %v2924
        %s2927 = scalar_lea.vmem %s545, 480 [#allocation4]
        %v2928 = vld [vmem:[%s2927] sm:$0xff]
        %v2929 = vld [vmem:[%s2927 + $0x8] sm:$0xff]
        %v2930 = vld [vmem:[%s2927 + $0x10] sm:$0xff]
        %v2931 = vld [vmem:[%s2927 + $0x18] sm:$0xff]
        %v2932 = vunpack.c.l.bf16 %v2928
        %v2933 = vunpack.c.h.bf16 %v2928
        %v2934 = vunpack.c.l.bf16 %v2929
        %v2935 = vunpack.c.h.bf16 %v2929
        %v2936 = vunpack.c.l.bf16 %v2930
        %v2937 = vunpack.c.h.bf16 %v2930
        %v2938 = vunpack.c.l.bf16 %v2931
        %v2939 = vunpack.c.h.bf16 %v2931
        %v2940 = vmul.f32 %v613, %v2932
        %v2941 = vmul.f32 %v614, %v2933
        %v2942 = vmul.f32 %v615, %v2934
        %v2943 = vmul.f32 %v616, %v2935
        %v2944 = vmul.f32 %v617, %v2936
        %v2945 = vmul.f32 %v618, %v2937
        %v2946 = vmul.f32 %v619, %v2938
        %v2947 = vmul.f32 %v620, %v2939
        %v2948 = vadd.f32 %v2940, %v2944
        %v2949 = vrot.slane %v2948, 4
        %v2950 = vadd.f32 %v2948, %v2949
        %v2951 = vrot.slane %v2950, 2
        %v2952 = vadd.f32 %v2950, %v2951
        %v2953 = vrot.slane %v2952, 1
        %v2954 = vadd.f32 %v2952, %v2953
        %v2955 = vadd.f32 %v2941, %v2945
        %v2956 = vrot.slane %v2955, 4
        %v2957 = vadd.f32 %v2955, %v2956
        %v2958 = vrot.slane %v2957, 2
        %v2959 = vadd.f32 %v2957, %v2958
        %v2960 = vrot.slane %v2959, 1
        %v2961 = vadd.f32 %v2959, %v2960
        %v2962 = vadd.f32 %v2942, %v2946
        %v2963 = vrot.slane %v2962, 4
        %v2964 = vadd.f32 %v2962, %v2963
        %v2965 = vrot.slane %v2964, 2
        %v2966 = vadd.f32 %v2964, %v2965
        %v2967 = vrot.slane %v2966, 1
        %v2968 = vadd.f32 %v2966, %v2967
        %v2969 = vadd.f32 %v2943, %v2947
        %v2970 = vrot.slane %v2969, 4
        %v2971 = vadd.f32 %v2969, %v2970
        %v2972 = vrot.slane %v2971, 2
        %v2973 = vadd.f32 %v2971, %v2972
        %v2974 = vrot.slane %v2973, 1
        %v2975 = vadd.f32 %v2973, %v2974
        %s2976 = scalar_lea.vmem [#allocation2], 39
        %v2977 = vld [vmem:[%s2976] ss:$8 sm:$0xf]
        %v2982 = vcombine.low %v2954, %v2961
        %v2983 = vcombine.low %v2968, %v2975
        %v2985 = vunpack.c.l.s4 1966171168
        %v2986 = vunpack.c.0.s8 %v2985
        %v2987 = vlaneseq
        %v2988 = vshrl.u32 %v2987, 7
        %v2989 = vsub.s32 %v2986, %v2988
        %v2990 = vrot.slane %v2982, %v2989
        %v2992 = vunpack.c.l.s4 1966171168
        %v2993 = vunpack.c.0.s8 %v2992
        %v2994 = vlaneseq
        %v2995 = vshrl.u32 %v2994, 7
        %v2996 = vsub.s32 %v2993, %v2995
        %v2997 = vrot.slane %v2983, %v2996
        %v2998 = vcombine.low %v2990, %v2997
        %v3000 = vunpack.c.l.s4 1966171168
        %v3001 = vunpack.c.0.s8 %v3000
        %v3002 = vlaneseq
        %v3003 = vshrl.u32 %v3002, 7
        %v3004 = vsub.s32 %v3001, %v3003
        %v3005 = vrot.slane %v2998, %v3004
        %v3007 = vadd.f32 %v2977, %v3005
        %3008 = vst.msk [vmem:[%s2976] ss:$8 sm:$0xf] %vm712, %v3007
        %3009 = vst.msk [vmem:[%s2976] ss:$8 sm:$0x0] %vm712, %v3007
        %v3010 = vmul.f32 %v622, %v2932
        %v3011 = vmul.f32 %v623, %v2933
        %v3012 = vmul.f32 %v624, %v2934
        %v3013 = vmul.f32 %v625, %v2935
        %v3014 = vmul.f32 %v626, %v2936
        %v3015 = vmul.f32 %v627, %v2937
        %v3016 = vmul.f32 %v628, %v2938
        %v3017 = vmul.f32 %v629, %v2939
        %v3018 = vadd.f32 %v3010, %v3014
        %v3019 = vrot.slane %v3018, 4
        %v3020 = vadd.f32 %v3018, %v3019
        %v3021 = vrot.slane %v3020, 2
        %v3022 = vadd.f32 %v3020, %v3021
        %v3023 = vrot.slane %v3022, 1
        %v3024 = vadd.f32 %v3022, %v3023
        %v3025 = vadd.f32 %v3011, %v3015
        %v3026 = vrot.slane %v3025, 4
        %v3027 = vadd.f32 %v3025, %v3026
        %v3028 = vrot.slane %v3027, 2
        %v3029 = vadd.f32 %v3027, %v3028
        %v3030 = vrot.slane %v3029, 1
        %v3031 = vadd.f32 %v3029, %v3030
        %v3032 = vadd.f32 %v3012, %v3016
        %v3033 = vrot.slane %v3032, 4
        %v3034 = vadd.f32 %v3032, %v3033
        %v3035 = vrot.slane %v3034, 2
        %v3036 = vadd.f32 %v3034, %v3035
        %v3037 = vrot.slane %v3036, 1
        %v3038 = vadd.f32 %v3036, %v3037
        %v3039 = vadd.f32 %v3013, %v3017
        %v3040 = vrot.slane %v3039, 4
        %v3041 = vadd.f32 %v3039, %v3040
        %v3042 = vrot.slane %v3041, 2
        %v3043 = vadd.f32 %v3041, %v3042
        %v3044 = vrot.slane %v3043, 1
        %v3045 = vadd.f32 %v3043, %v3044
        %s3046 = scalar_lea.vmem %s751, 39 [#allocation2]
        %v3047 = vld [vmem:[%s3046] ss:$8 sm:$0xf]
        %v3052 = vcombine.low %v3024, %v3031
        %v3053 = vcombine.low %v3038, %v3045
        %v3055 = vunpack.c.l.s4 1966171168
        %v3056 = vunpack.c.0.s8 %v3055
        %v3057 = vlaneseq
        %v3058 = vshrl.u32 %v3057, 7
        %v3059 = vsub.s32 %v3056, %v3058
        %v3060 = vrot.slane %v3052, %v3059
        %v3062 = vunpack.c.l.s4 1966171168
        %v3063 = vunpack.c.0.s8 %v3062
        %v3064 = vlaneseq
        %v3065 = vshrl.u32 %v3064, 7
        %v3066 = vsub.s32 %v3063, %v3065
        %v3067 = vrot.slane %v3053, %v3066
        %v3068 = vcombine.low %v3060, %v3067
        %v3070 = vunpack.c.l.s4 1966171168
        %v3071 = vunpack.c.0.s8 %v3070
        %v3072 = vlaneseq
        %v3073 = vshrl.u32 %v3072, 7
        %v3074 = vsub.s32 %v3071, %v3073
        %v3075 = vrot.slane %v3068, %v3074
        %v3077 = vadd.f32 %v3047, %v3075
        %3078 = vst.msk [vmem:[%s3046] ss:$8 sm:$0xf] %vm712, %v3077
        %3079 = vst.msk [vmem:[%s3046] ss:$8 sm:$0x0] %vm712, %v3077
        %p3080 = scmp.eq.s32.totalorder %s32, 1
        // Predicated region
        $region100: #{collnet_forward.2} parent=86 // pred_check
          %p3081 = pneg %p3080
        $region101: #{collnet_forward.2} parent=86 // pred_check_branch
          %3083 = sbr.rel (%p3081) target = $region103
        $region102: #{collnet_forward.2} parent=86 // pred_region
          %v3084 = vld [vmem:[#allocation2] sm:$0xff]
          %v3085 = vld [vmem:[#allocation2 + $0x8] sm:$0xff]
          %v3086 = vld [vmem:[#allocation2 + $0x10] sm:$0xff]
          %v3087 = vld [vmem:[#allocation2 + $0x18] sm:$0xff]
          %v3088 = vld [vmem:[#allocation2 + $0x20] sm:$0xff]
          %v3089 = vld [vmem:[#allocation2 + $0x28] sm:$0xff]
          %v3090 = vld [vmem:[#allocation2 + $0x30] sm:$0xff]
          %v3091 = vld [vmem:[#allocation2 + $0x38] sm:$0xff]
          %v3092 = vld [vmem:[#allocation2 + $0x40] sm:$0xff]
          %v3093 = vld [vmem:[#allocation2 + $0x48] sm:$0xff]
          %v3094 = vld [vmem:[#allocation2 + $0x50] sm:$0xff]
          %v3095 = vld [vmem:[#allocation2 + $0x58] sm:$0xff]
          %v3096 = vld [vmem:[#allocation2 + $0x60] sm:$0xff]
          %v3097 = vld [vmem:[#allocation2 + $0x68] sm:$0xff]
          %v3098 = vld [vmem:[#allocation2 + $0x70] sm:$0xff]
          %v3099 = vld [vmem:[#allocation2 + $0x78] sm:$0xff]
          %v3100 = vadd.f32 %v3084, %v3085
          %v3101 = vadd.f32 %v3100, %v3086
          %v3102 = vadd.f32 %v3101, %v3087
          %3103 = vadd.xlane.f32.xlu0 %v3102
          %v3104 = vpop.xlane.xlu0 %3103
          %v3105 = vadd.f32 %v3088, %v3089
          %v3106 = vadd.f32 %v3105, %v3090
          %v3107 = vadd.f32 %v3106, %v3091
          %3108 = vadd.xlane.f32.xlu0 %v3107
          %v3109 = vpop.xlane.xlu0 %3108
          %v3110 = vadd.f32 %v3092, %v3093
          %v3111 = vadd.f32 %v3110, %v3094
          %v3112 = vadd.f32 %v3111, %v3095
          %3113 = vadd.xlane.f32.xlu0 %v3112
          %v3114 = vpop.xlane.xlu0 %3113
          %v3115 = vadd.f32 %v3096, %v3097
          %v3116 = vadd.f32 %v3115, %v3098
          %v3117 = vadd.f32 %v3116, %v3099
          %3118 = vadd.xlane.f32.xlu0 %v3117
          %v3119 = vpop.xlane.xlu0 %3118
          %v3120 = vld [vmem:[%s2] sm:$0x1]
          %v3122 = vlaneseq
          %v3123 = vshrl.u32 %v3122, 7
          %v3124 = vsub.s32 0, %v3123
          %v3125 = vrot.slane %v3120, %v3124
          %3127 = vbcast.lane.b32.xlu0 %v3125, 256
          %v3128 = vpop.permute.xlu0 %3127
          %s3130 = sor.u32 256, 8
          %3131 = vbcast.lane.b32.xlu0 %v3125, %s3130
          %v3132 = vpop.permute.xlu0 %3131
          %v3135 = vadd.f32 %v3104, %v3128
          %v3136 = vadd.f32 %v3109, %v3132
          %v3137 = vadd.f32 %v3114, %v3128
          %v3138 = vadd.f32 %v3119, %v3132
          %3141 = vset.pattern.permute.xlu0 0
          %3142 = vperm.xlu0 %3141, %v3135
          %v3143 = vpop.permute.xlu0 %3142
          %3144 = vset.pattern.permute.xlu0 0
          %3145 = vperm.xlu0 %3144, %v3137
          %v3146 = vpop.permute.xlu0 %3145
          %v3147 = vlaneseq
          %v3148 = vand.u32 %v3147, 127
          %v3149 = vlaneseq
          %v3150 = vshrl.u32 %v3149, 7
          %v3151 = vsub.s32 %v3148, %v3150
          %v3152 = vrot.slane %v3143, %v3151
          %v3153 = vlaneseq
          %v3154 = vshrl.u32 %v3153, 7
          %v3155 = vsub.s32 %v3148, %v3154
          %v3156 = vrot.slane %v3146, %v3155
          %vm3157 = vcmask 1041409
          %v3158 = vsel %vm3157, %v3156, %v3152
          %vm3160 = vcmask 58368
          %3161 = vst.msk [vmem:[#allocation7] sm:$0x3] %vm3160, %v3158
          %3164 = vset.pattern.permute.xlu0 0
          %3165 = vperm.xlu0 %3164, %v3136
          %v3166 = vpop.permute.xlu0 %3165
          %3167 = vset.pattern.permute.xlu0 0
          %3168 = vperm.xlu0 %3167, %v3138
          %v3169 = vpop.permute.xlu0 %3168
          %v3170 = vlaneseq
          %v3171 = vshrl.u32 %v3170, 7
          %v3172 = vsub.s32 %v3148, %v3171
          %v3173 = vrot.slane %v3166, %v3172
          %v3174 = vlaneseq
          %v3175 = vshrl.u32 %v3174, 7
          %v3176 = vsub.s32 %v3148, %v3175
          %v3177 = vrot.slane %v3169, %v3176
          %v3178 = vsel %vm3157, %v3177, %v3173
          %3180 = vst.msk [vmem:[#allocation8] sm:$0x3] %vm3160, %v3178
          %v3181 = vmul.f32 %v3136, 0.5
          %v3182 = vmul.f32 %v3138, 0.5
          %v3183 = vmul.f32 %v3181, 1.442695
          %v3184 = vpow.pop %v3183
          %v3185 = vmul.f32 %v3182, 1.442695
          %v3186 = vpow.pop %v3185
          %v3187 = vld [vmem:[%s3] sm:$0x3]
          %v3189 = vlaneseq
          %v3190 = vshrl.u32 %v3189, 7
          %v3191 = vsub.s32 0, %v3190
          %v3192 = vrot.slane %v3187, %v3191
          %3194 = vbcast.lane.b32.xlu0 %v3192, 256
          %v3195 = vpop.permute.xlu0 %3194
          %v3196 = vlaneseq
          %v3197 = vshrl.u32 %v3196, 7
          %v3198 = vsub.s32 1, %v3197
          %v3199 = vrot.slane %v3187, %v3198
          %3201 = vbcast.lane.b32.xlu0 %v3199, 256
          %v3202 = vpop.permute.xlu0 %3201
          %v3205 = vmul.f32 %v3184, %v3195
          %v3206 = vmul.f32 %v3186, %v3202
          %v3207 = vadd.f32 %v3135, %v3205
          %v3208 = vadd.f32 %v3137, %v3206
          %3211 = vset.pattern.permute.xlu0 0
          %3212 = vperm.xlu0 %3211, %v3207
          %v3213 = vpop.permute.xlu0 %3212
          %3214 = vset.pattern.permute.xlu0 0
          %3215 = vperm.xlu0 %3214, %v3208
          %v3216 = vpop.permute.xlu0 %3215
          %v3217 = vlaneseq
          %v3218 = vshrl.u32 %v3217, 7
          %v3219 = vsub.s32 %v3148, %v3218
          %v3220 = vrot.slane %v3213, %v3219
          %v3221 = vlaneseq
          %v3222 = vshrl.u32 %v3221, 7
          %v3223 = vsub.s32 %v3148, %v3222
          %v3224 = vrot.slane %v3216, %v3223
          %v3225 = vsel %vm3157, %v3224, %v3220
          %3227 = vst.msk [vmem:[%s14] sm:$0x3] %vm3160, %v3225
          %v3228 = vld [vmem:[%s4] sm:$0x3]
          %v3229 = vld [vmem:[%s5] sm:$0xff]
          %v3230 = vld [vmem:[%s5 + $0x8] sm:$0xff]
          %v3231 = vld [vmem:[%s5 + $0x10] sm:$0x1f]
          %v3232 = vld [vmem:[%s6] sm:$0xff]
          %vm3233 = vcmask 64512
          %v3234 = vsel %vm3233, %v3225, 0
          %3236 = vmatprep.subr.mxu0 0.0
          %3237 = vmatpush1.msra.mxu0 %v3232
          %3238 = vmatprep.subr.mxu0 0.0
          %3239 = vmatpush1.msra.mxu0 0.0
          %3240 = vmatprep.subr.mxu0 0.0
          %3241 = vmatpush1.msra.mxu0 0.0
          %3242 = vmatprep.subr.mxu0 0.0
          %3243 = vmatpush1.msra.mxu0 0.0
          %3244 = vmatprep.subr.mxu0 0.0
          %3245 = vmatpush1.msra.mxu0 0.0
          %3246 = vmatprep.subr.mxu0 0.0
          %3247 = vmatpush1.msra.mxu0 0.0
          %3248 = vmatprep.subr.mxu0 0.0
          %3249 = vmatpush1.msra.mxu0 0.0
          %3250 = vmatprep.subr.mxu0 0.0
          %3251 = vmatpush1.msra.mxu0 0.0
          %3252 = vmatprep.subr.mxu0 0.0
          %3253 = vmatpush1.msra.mxu0 0.0
          %3254 = vmatprep.subr.mxu0 0.0
          %3255 = vmatpush1.msra.mxu0 0.0
          %3256 = vmatprep.subr.mxu0 0.0
          %3257 = vmatpush1.msra.mxu0 0.0
          %3258 = vmatprep.subr.mxu0 0.0
          %3259 = vmatpush1.msra.mxu0 0.0
          %3260 = vmatprep.subr.mxu0 0.0
          %3261 = vmatpush1.msra.mxu0 0.0
          %3262 = vmatprep.subr.mxu0 0.0
          %3263 = vmatpush1.msra.mxu0 0.0
          %3264 = vmatprep.subr.mxu0 0.0
          %3265 = vmatpush1.msra.mxu0 0.0
          %3266 = vmatprep.subr.mxu0 0.0
          %3267 = vmatpush1.msra.mxu0 0.0
          %3268 = vmatprep.subr.mxu0 0.0
          %3269 = vmatpush1.msra.mxu0 0.0
          %3270 = vmatprep.subr.mxu0 0.0
          %3271 = vmatpush1.msra.mxu0 0.0
          %3272 = vmatprep.subr.mxu0 0.0
          %3273 = vmatpush1.msra.mxu0 0.0
          %3274 = vmatprep.subr.mxu0 0.0
          %3275 = vmatpush1.msra.mxu0 0.0
          %3276 = vmatprep.subr.mxu0 0.0
          %3277 = vmatpush1.msra.mxu0 0.0
          %3278 = vmatprep.subr.mxu0 0.0
          %3279 = vmatpush1.msra.mxu0 0.0
          %3280 = vmatprep.subr.mxu0 0.0
          %3281 = vmatpush1.msra.mxu0 0.0
          %3282 = vmatprep.subr.mxu0 0.0
          %3283 = vmatpush1.msra.mxu0 0.0
          %3284 = vmatprep.subr.mxu0 0.0
          %3285 = vmatpush1.msra.mxu0 0.0
          %3286 = vmatprep.subr.mxu0 0.0
          %3287 = vmatpush1.msra.mxu0 0.0
          %3288 = vmatprep.subr.mxu0 0.0
          %3289 = vmatpush1.msra.mxu0 0.0
          %3290 = vmatprep.subr.mxu0 0.0
          %3291 = vmatpush1.msra.mxu0 0.0
          %3292 = vmatprep.subr.mxu0 0.0
          %3293 = vmatpush1.msra.mxu0 0.0
          %3294 = vmatprep.subr.mxu0 0.0
          %3295 = vmatpush1.msra.mxu0 0.0
          %3296 = vmatprep.subr.mxu0 0.0
          %3297 = vmatpush1.msra.mxu0 0.0
          %3298 = vmatprep.subr.mxu0 0.0
          %3299 = vmatpush1.msra.mxu0 0.0
          %3300 = vmatprep.mubr.f32.mxu0 0.0
          %3301 = vmatmul.mubr.f32.gmra.mrb[0].mxu0 %v3234
          %v3302 = vpop.f32.mrb[0].mxu0
          %v3303 = vadd.f32 0.0, %v3302
          %v3304 = vpop.f32.mrb[0].mxu0
          %3305 = vdwg.mxu0
          %vm3306 = vcmask 171008
          %v3308 = vsel %vm3306, %v3228, 0
          %vm3310 = vcmask 1044480
          %v3312 = vsel %vm3310, %v3231, 0
          %3314 = vmatprep.subr.mxu0 0.0
          %3315 = vmatpush1.msra.mxu0 %v3229
          %3316 = vmatprep.subr.mxu0 0.0
          %3317 = vmatpush1.msra.mxu0 %v3230
          %3318 = vmatprep.subr.mxu0 0.0
          %3319 = vmatpush1.msra.mxu0 %v3312
          %3320 = vmatprep.subr.mxu0 0.0
          %3321 = vmatpush1.msra.mxu0 0.0
          %3322 = vmatprep.subr.mxu0 0.0
          %3323 = vmatpush1.msra.mxu0 0.0
          %3324 = vmatprep.subr.mxu0 0.0
          %3325 = vmatpush1.msra.mxu0 0.0
          %3326 = vmatprep.subr.mxu0 0.0
          %3327 = vmatpush1.msra.mxu0 0.0
          %3328 = vmatprep.subr.mxu0 0.0
          %3329 = vmatpush1.msra.mxu0 0.0
          %3330 = vmatprep.subr.mxu0 0.0
          %3331 = vmatpush1.msra.mxu0 0.0
          %3332 = vmatprep.subr.mxu0 0.0
          %3333 = vmatpush1.msra.mxu0 0.0
          %3334 = vmatprep.subr.mxu0 0.0
          %3335 = vmatpush1.msra.mxu0 0.0
          %3336 = vmatprep.subr.mxu0 0.0
          %3337 = vmatpush1.msra.mxu0 0.0
          %3338 = vmatprep.subr.mxu0 0.0
          %3339 = vmatpush1.msra.mxu0 0.0
          %3340 = vmatprep.subr.mxu0 0.0
          %3341 = vmatpush1.msra.mxu0 0.0
          %3342 = vmatprep.subr.mxu0 0.0
          %3343 = vmatpush1.msra.mxu0 0.0
          %3344 = vmatprep.subr.mxu0 0.0
          %3345 = vmatpush1.msra.mxu0 0.0
          %3346 = vmatprep.subr.mxu0 0.0
          %3347 = vmatpush1.msra.mxu0 0.0
          %3348 = vmatprep.subr.mxu0 0.0
          %3349 = vmatpush1.msra.mxu0 0.0
          %3350 = vmatprep.subr.mxu0 0.0
          %3351 = vmatpush1.msra.mxu0 0.0
          %3352 = vmatprep.subr.mxu0 0.0
          %3353 = vmatpush1.msra.mxu0 0.0
          %3354 = vmatprep.subr.mxu0 0.0
          %3355 = vmatpush1.msra.mxu0 0.0
          %3356 = vmatprep.subr.mxu0 0.0
          %3357 = vmatpush1.msra.mxu0 0.0
          %3358 = vmatprep.subr.mxu0 0.0
          %3359 = vmatpush1.msra.mxu0 0.0
          %3360 = vmatprep.subr.mxu0 0.0
          %3361 = vmatpush1.msra.mxu0 0.0
          %3362 = vmatprep.subr.mxu0 0.0
          %3363 = vmatpush1.msra.mxu0 0.0
          %3364 = vmatprep.subr.mxu0 0.0
          %3365 = vmatpush1.msra.mxu0 0.0
          %3366 = vmatprep.subr.mxu0 0.0
          %3367 = vmatpush1.msra.mxu0 0.0
          %3368 = vmatprep.subr.mxu0 0.0
          %3369 = vmatpush1.msra.mxu0 0.0
          %3370 = vmatprep.subr.mxu0 0.0
          %3371 = vmatpush1.msra.mxu0 0.0
          %3372 = vmatprep.subr.mxu0 0.0
          %3373 = vmatpush1.msra.mxu0 0.0
          %3374 = vmatprep.subr.mxu0 0.0
          %3375 = vmatpush1.msra.mxu0 0.0
          %3376 = vmatprep.subr.mxu0 0.0
          %3377 = vmatpush1.msra.mxu0 0.0
          %3378 = vmatprep.mubr.f32.mxu0 0.0
          %3379 = vmatmul.mubr.f32.gmra.mrb[0].mxu0 %v3308
          %v3380 = vpop.f32.mrb[0].mxu0
          %v3381 = vadd.f32 %v3303, %v3380
          %v3382 = vpop.f32.mrb[0].mxu0
          %3383 = vdwg.mxu0
          %v3384 = vld [vmem:[%s7] sm:$0x1]
          %v3386 = vlaneseq
          %v3387 = vshrl.u32 %v3386, 7
          %v3388 = vsub.s32 0, %v3387
          %v3389 = vrot.slane %v3384, %v3388
          %v3391 = vadd.f32 %v3381, %v3389
          %v3392 = vtanh.pop %v3391
          %v3393 = vld [vmem:[%s8] sm:$0xff]
          %v3394 = vld [vmem:[%s8 + $0x8] sm:$0xff]
          %v3395 = vld [vmem:[%s8 + $0x10] sm:$0xff]
          %v3396 = vld [vmem:[%s8 + $0x18] sm:$0xff]
          %v3397 = vld [vmem:[%s9] sm:$0x1]
          %v3399 = vlaneseq
          %v3400 = vshrl.u32 %v3399, 7
          %v3401 = vsub.s32 0, %v3400
          %v3402 = vrot.slane %v3397, %v3401
          %vm3404 = vcmask 261120
          %v3406 = vsel %vm3404, %v3392, 0
          %3408 = vmatprep.subr.mxu0 0.0
          %3409 = vmatpush1.msra.mxu0 %v3393
          %3410 = vmatprep.subr.mxu0 0.0
          %3411 = vmatpush1.msra.mxu0 %v3394
          %3412 = vmatprep.subr.mxu0 0.0
          %3413 = vmatpush1.msra.mxu0 %v3395
          %3414 = vmatprep.subr.mxu0 0.0
          %3415 = vmatpush1.msra.mxu0 %v3396
          %3416 = vmatprep.subr.mxu0 0.0
          %3417 = vmatpush1.msra.mxu0 0.0
          %3418 = vmatprep.subr.mxu0 0.0
          %3419 = vmatpush1.msra.mxu0 0.0
          %3420 = vmatprep.subr.mxu0 0.0
          %3421 = vmatpush1.msra.mxu0 0.0
          %3422 = vmatprep.subr.mxu0 0.0
          %3423 = vmatpush1.msra.mxu0 0.0
          %3424 = vmatprep.subr.mxu0 0.0
          %3425 = vmatpush1.msra.mxu0 0.0
          %3426 = vmatprep.subr.mxu0 0.0
          %3427 = vmatpush1.msra.mxu0 0.0
          %3428 = vmatprep.subr.mxu0 0.0
          %3429 = vmatpush1.msra.mxu0 0.0
          %3430 = vmatprep.subr.mxu0 0.0
          %3431 = vmatpush1.msra.mxu0 0.0
          %3432 = vmatprep.subr.mxu0 0.0
          %3433 = vmatpush1.msra.mxu0 0.0
          %3434 = vmatprep.subr.mxu0 0.0
          %3435 = vmatpush1.msra.mxu0 0.0
          %3436 = vmatprep.subr.mxu0 0.0
          %3437 = vmatpush1.msra.mxu0 0.0
          %3438 = vmatprep.subr.mxu0 0.0
          %3439 = vmatpush1.msra.mxu0 0.0
          %3440 = vmatprep.subr.mxu0 0.0
          %3441 = vmatpush1.msra.mxu0 0.0
          %3442 = vmatprep.subr.mxu0 0.0
          %3443 = vmatpush1.msra.mxu0 0.0
          %3444 = vmatprep.subr.mxu0 0.0
          %3445 = vmatpush1.msra.mxu0 0.0
          %3446 = vmatprep.subr.mxu0 0.0
          %3447 = vmatpush1.msra.mxu0 0.0
          %3448 = vmatprep.subr.mxu0 0.0
          %3449 = vmatpush1.msra.mxu0 0.0
          %3450 = vmatprep.subr.mxu0 0.0
          %3451 = vmatpush1.msra.mxu0 0.0
          %3452 = vmatprep.subr.mxu0 0.0
          %3453 = vmatpush1.msra.mxu0 0.0
          %3454 = vmatprep.subr.mxu0 0.0
          %3455 = vmatpush1.msra.mxu0 0.0
          %3456 = vmatprep.subr.mxu0 0.0
          %3457 = vmatpush1.msra.mxu0 0.0
          %3458 = vmatprep.subr.mxu0 0.0
          %3459 = vmatpush1.msra.mxu0 0.0
          %3460 = vmatprep.subr.mxu0 0.0
          %3461 = vmatpush1.msra.mxu0 0.0
          %3462 = vmatprep.subr.mxu0 0.0
          %3463 = vmatpush1.msra.mxu0 0.0
          %3464 = vmatprep.subr.mxu0 0.0
          %3465 = vmatpush1.msra.mxu0 0.0
          %3466 = vmatprep.subr.mxu0 0.0
          %3467 = vmatpush1.msra.mxu0 0.0
          %3468 = vmatprep.subr.mxu0 0.0
          %3469 = vmatpush1.msra.mxu0 0.0
          %3470 = vmatprep.subr.mxu0 0.0
          %3471 = vmatpush1.msra.mxu0 0.0
          %3472 = vmatprep.mubr.f32.mxu0 0.0
          %3473 = vmatmul.mubr.f32.gmra.mrb[0].mxu0 %v3406
          %v3474 = vpop.f32.mrb[0].mxu0
          %v3475 = vadd.f32 %v3402, %v3474
          %v3476 = vpop.f32.mrb[0].mxu0
          %3477 = vdwg.mxu0
          %v3478 = vtanh.pop %v3475
          %v3479 = vld [vmem:[%s10] sm:$0xff]
          %v3480 = vld [vmem:[%s10 + $0x8] sm:$0xff]
          %v3481 = vld [vmem:[%s11] sm:$0x1]
          %v3483 = vlaneseq
          %v3484 = vshrl.u32 %v3483, 7
          %v3485 = vsub.s32 0, %v3484
          %v3486 = vrot.slane %v3481, %v3485
          %vm3488 = vcmask 130048
          %v3490 = vsel %vm3488, %v3478, 0
          %3492 = vmatprep.subr.mxu0 0.0
          %3493 = vmatpush1.msra.mxu0 %v3479
          %3494 = vmatprep.subr.mxu0 0.0
          %3495 = vmatpush1.msra.mxu0 %v3480
          %3496 = vmatprep.subr.mxu0 0.0
          %3497 = vmatpush1.msra.mxu0 0.0
          %3498 = vmatprep.subr.mxu0 0.0
          %3499 = vmatpush1.msra.mxu0 0.0
          %3500 = vmatprep.subr.mxu0 0.0
          %3501 = vmatpush1.msra.mxu0 0.0
          %3502 = vmatprep.subr.mxu0 0.0
          %3503 = vmatpush1.msra.mxu0 0.0
          %3504 = vmatprep.subr.mxu0 0.0
          %3505 = vmatpush1.msra.mxu0 0.0
          %3506 = vmatprep.subr.mxu0 0.0
          %3507 = vmatpush1.msra.mxu0 0.0
          %3508 = vmatprep.subr.mxu0 0.0
          %3509 = vmatpush1.msra.mxu0 0.0
          %3510 = vmatprep.subr.mxu0 0.0
          %3511 = vmatpush1.msra.mxu0 0.0
          %3512 = vmatprep.subr.mxu0 0.0
          %3513 = vmatpush1.msra.mxu0 0.0
          %3514 = vmatprep.subr.mxu0 0.0
          %3515 = vmatpush1.msra.mxu0 0.0
          %3516 = vmatprep.subr.mxu0 0.0
          %3517 = vmatpush1.msra.mxu0 0.0
          %3518 = vmatprep.subr.mxu0 0.0
          %3519 = vmatpush1.msra.mxu0 0.0
          %3520 = vmatprep.subr.mxu0 0.0
          %3521 = vmatpush1.msra.mxu0 0.0
          %3522 = vmatprep.subr.mxu0 0.0
          %3523 = vmatpush1.msra.mxu0 0.0
          %3524 = vmatprep.subr.mxu0 0.0
          %3525 = vmatpush1.msra.mxu0 0.0
          %3526 = vmatprep.subr.mxu0 0.0
          %3527 = vmatpush1.msra.mxu0 0.0
          %3528 = vmatprep.subr.mxu0 0.0
          %3529 = vmatpush1.msra.mxu0 0.0
          %3530 = vmatprep.subr.mxu0 0.0
          %3531 = vmatpush1.msra.mxu0 0.0
          %3532 = vmatprep.subr.mxu0 0.0
          %3533 = vmatpush1.msra.mxu0 0.0
          %3534 = vmatprep.subr.mxu0 0.0
          %3535 = vmatpush1.msra.mxu0 0.0
          %3536 = vmatprep.subr.mxu0 0.0
          %3537 = vmatpush1.msra.mxu0 0.0
          %3538 = vmatprep.subr.mxu0 0.0
          %3539 = vmatpush1.msra.mxu0 0.0
          %3540 = vmatprep.subr.mxu0 0.0
          %3541 = vmatpush1.msra.mxu0 0.0
          %3542 = vmatprep.subr.mxu0 0.0
          %3543 = vmatpush1.msra.mxu0 0.0
          %3544 = vmatprep.subr.mxu0 0.0
          %3545 = vmatpush1.msra.mxu0 0.0
          %3546 = vmatprep.subr.mxu0 0.0
          %3547 = vmatpush1.msra.mxu0 0.0
          %3548 = vmatprep.subr.mxu0 0.0
          %3549 = vmatpush1.msra.mxu0 0.0
          %3550 = vmatprep.subr.mxu0 0.0
          %3551 = vmatpush1.msra.mxu0 0.0
          %3552 = vmatprep.subr.mxu0 0.0
          %3553 = vmatpush1.msra.mxu0 0.0
          %3554 = vmatprep.subr.mxu0 0.0
          %3555 = vmatpush1.msra.mxu0 0.0
          %3556 = vmatprep.mubr.f32.mxu0 0.0
          %3557 = vmatmul.mubr.f32.gmra.mrb[0].mxu0 %v3490
          %v3558 = vpop.f32.mrb[0].mxu0
          %v3559 = vadd.f32 %v3486, %v3558
          %v3560 = vpop.f32.mrb[0].mxu0
          %3561 = vdwg.mxu0
          %v3562 = vtanh.pop %v3559
          %vm3563 = vcmask 25600
          %3564 = vst.msk [vmem:[#allocation10] sm:$0x3] %vm3563, %v3562
        $region103: #{collnet_forward.2} parent=86 // pred_fallthru
          _
        // Predicated region
        $region104: #{collnet_forward.2} parent=86 // pred_check
          %p3565 = pneg %p307
        $region105: #{collnet_forward.2} parent=86 // pred_check_branch
          %3567 = sbr.rel (%p3565) target = $region107
        $region106: #{collnet_forward.2} parent=86 // pred_region
          %s3569 = ssub.s32 32, 32
          %3570 = vsyncadd [#allocation6], %s3569
          %s3572 = sshll.u32 [#allocation7], 4
          %s3573 = int_to_ptr.vmem [resolvable:$true] %s3572
          %3575 = dma.vmem_to_hbm [thread:$0]  %s3573, 32, %s12, [#allocation6]
        $region107: #{collnet_forward.2} parent=86 // pred_fallthru
          _
        // Predicated region
        $region108: #{collnet_forward.2} parent=86 // pred_check
          %p3576 = pneg %p328
        $region109: #{collnet_forward.2} parent=86 // pred_check_branch
          %3578 = sbr.rel (%p3576) target = $region111
        $region110: #{collnet_forward.2} parent=86 // pred_region
          %s3580 = ssub.s32 32, 32
          %3581 = vsyncadd [#allocation9], %s3580
          %s3583 = sshll.u32 [#allocation8], 4
          %s3584 = int_to_ptr.vmem [resolvable:$true] %s3583
          %3586 = dma.vmem_to_hbm [thread:$0]  %s3584, 32, %s13, [#allocation9]
        $region111: #{collnet_forward.2} parent=86 // pred_fallthru
          _
        // Predicated region
        $region112: #{collnet_forward.2} parent=86 // pred_check
          %p3587 = pneg %p349
        $region113: #{collnet_forward.2} parent=86 // pred_check_branch
          %3589 = sbr.rel (%p3587) target = $region115
        $region114: #{collnet_forward.2} parent=86 // pred_region
          _
        $region115: #{collnet_forward.2} parent=86 // pred_fallthru
          _
        // Predicated region
        $region116: #{collnet_forward.2} parent=86 // pred_check
          %p3590 = pneg %p370
        $region117: #{collnet_forward.2} parent=86 // pred_check_branch
          %3592 = sbr.rel (%p3590) target = $region119
        $region118: #{collnet_forward.2} parent=86 // pred_region
          %s3594 = ssub.s32 32, 32
          %3595 = vsyncadd [#allocation9], %s3594
          %s3597 = sshll.u32 [#allocation10], 4
          %s3598 = int_to_ptr.vmem [resolvable:$true] %s3597
          %3600 = dma.vmem_to_hbm [thread:$0]  %s3598, 32, %s15, [#allocation9]
        $region119: #{collnet_forward.2} parent=86 // pred_fallthru
          _
        // Predicated region
        $region120: #{collnet_forward.2} parent=86 // pred_check
          %p3601 = pneg %p307
        $region121: #{collnet_forward.2} parent=86 // pred_check_branch
          %3603 = sbr.rel (%p3601) target = $region123
        $region122: #{collnet_forward.2} parent=86 // pred_region
          %3604 = dma.done [#allocation6], 32
        $region123: #{collnet_forward.2} parent=86 // pred_fallthru
          _
        // Predicated region
        $region124: #{collnet_forward.2} parent=86 // pred_check
          %p3605 = pneg %p328
        $region125: #{collnet_forward.2} parent=86 // pred_check_branch
          %3607 = sbr.rel (%p3605) target = $region127
        $region126: #{collnet_forward.2} parent=86 // pred_region
          %3608 = dma.done [#allocation9], 32
        $region127: #{collnet_forward.2} parent=86 // pred_fallthru
          _
        // Predicated region
        $region128: #{collnet_forward.2} parent=86 // pred_check
          %p3609 = pneg %p349
        $region129: #{collnet_forward.2} parent=86 // pred_check_branch
          %3611 = sbr.rel (%p3609) target = $region131
        $region130: #{collnet_forward.2} parent=86 // pred_region
          _
        $region131: #{collnet_forward.2} parent=86 // pred_fallthru
          _
        // Predicated region
        $region132: #{collnet_forward.2} parent=86 // pred_check
          %p3612 = pneg %p370
        $region133: #{collnet_forward.2} parent=86 // pred_check_branch
          %3614 = sbr.rel (%p3612) target = $region135
        $region134: #{collnet_forward.2} parent=86 // pred_region
          %3615 = dma.done [#allocation9], 32
        $region135: #{collnet_forward.2} parent=86 // pred_fallthru
          _
      $region87: #{collnet_forward.2} parent=5 // pred_fallthru
        _
      %p3616 = scmp.le.s32.totalorder 2, %s27
      // Predicated region
      $region136: #{collnet_forward.2} parent=5 // pred_check
        %p3617 = pneg %p3616
      $region137: #{collnet_forward.2} parent=5 // pred_check_branch
        %3619 = sbr.rel (%p3617) target = $region139
      $region138: #{collnet_forward.2} parent=5 // pred_region
        %s3620 = ssub.s32 %s27, 2
      $region139: #{collnet_forward.2} parent=5 // pred_fallthru
        _
    $region6: #{collnet_forward.2} parent=1 // loop_footer
      %s31 = sadd.s32 1, %s27
    $region7: #{collnet_forward.2} parent=1 // loop_footer_branch
      %26 = sbr.rel target = $region3
    $region8: #{collnet_forward.2} parent=1 // loop_exit
      _
    %3621 = vsyncpa [#allocation5], 1
    %s3622 = scalar_lea.sflag [#allocation5], 1
    %3623 = vsyncpa %s3622, 1
    %3624 = vsyncpa [#allocation6], 1
    %s3625 = scalar_lea.sflag [#allocation6], 1
    %3626 = vsyncpa %s3625, 1
    %3627 = vsyncpa [#allocation9], 1

</llo_original>
